<compile_context>
chip_gen: v5e
topology: v5e:2x2
jax: 0.10.0
libtpu: 0.0.40
codegen_flags: <defaults>
</compile_context>

<pallas_src>
import functools

import jax
import jax.numpy as jnp
from jax import lax
from jax.experimental import pallas as pl
from jax.experimental.pallas import tpu as pltpu

CNN_FEAT = 64
_EPS = 1e-5


def _sigmoid(v):
    return 1.0 / (1.0 + jnp.exp(-v))


# ---------------------------------------------------------------------------
# Kernel 1: fused CNN (3 branches block-diag + comb) + GRU layer-0 input proj.
# grid = (B,), one batch element per program ("parallel" -> 2 cores on v7x).
# ---------------------------------------------------------------------------
def _cnn_kernel(im1_ref, w1_ref, b1_ref, w2_ref, b2_ref,
                wc1_ref, bc1_ref, wc2_ref, bc2_ref,
                wi0_ref, bi0_ref, out_ref, pada_ref, padb_ref):
    T = out_ref.shape[1]          # pooled sequence length
    C = b1_ref.shape[1]           # 3 * CNN_FEAT = 192
    bf16 = jnp.bfloat16

    # --- branch conv1 (k=5, pad=2), block-diagonal over 3 branches, BN folded.
    # im2col rows [0:T] are even output times, [T:2T] odd output times, so the
    # MaxPool1d(2,2) becomes a max of two contiguous halves (no strided reads).
    y1 = jnp.dot(im1_ref[0], w1_ref[...],
                 preferred_element_type=jnp.float32) + b1_ref[...]
    pooled = jnp.maximum(jnp.maximum(y1[0:T, :], y1[T:2 * T, :]), 0.0)

    # --- branch conv2 (k=3, pad=1), block-diagonal, BN folded, ReLU.
    zrow = jnp.zeros((1, C), jnp.float32)
    padb_ref[0:1, :] = zrow
    padb_ref[T + 1:T + 2, :] = zrow
    padb_ref[1:T + 1, :] = pooled
    acc = b2_ref[...]
    for k in range(3):
        acc = acc + jnp.dot(padb_ref[k:k + T, :].astype(bf16), w2_ref[k],
                            preferred_element_type=jnp.float32)
    y2 = jnp.maximum(acc, 0.0)

    # --- comb conv1 (k=5, pad=2), BN folded, ReLU.
    pada_ref[0:2, :] = jnp.zeros((2, C), jnp.float32)
    pada_ref[T + 2:T + 4, :] = jnp.zeros((2, C), jnp.float32)
    pada_ref[2:T + 2, :] = y2
    acc = bc1_ref[...]
    for k in range(5):
        acc = acc + jnp.dot(pada_ref[k:k + T, :].astype(bf16), wc1_ref[k],
                            preferred_element_type=jnp.float32)
    yc1 = jnp.maximum(acc, 0.0)

    # --- comb conv2 (k=3, pad=1), BN folded, ReLU (padb boundary rows still 0).
    padb_ref[1:T + 1, :] = yc1
    acc = bc2_ref[...]
    for k in range(3):
        acc = acc + jnp.dot(padb_ref[k:k + T, :].astype(bf16), wc2_ref[k],
                            preferred_element_type=jnp.float32)
    yc2 = jnp.maximum(acc, 0.0)

    # --- hoisted GRU layer-0 input projection: x @ [Wir|Wiz|Win] + bi (f32).
    out_ref[0] = (jnp.dot(yc2, wi0_ref[...], preferred_element_type=jnp.float32)
                  + bi0_ref[...])


def cnn_forward(im1, p):
    B, TT, KC = im1.shape
    T = TT // 2
    C = p["b1"].shape[-1]
    G = p["bi0"].shape[-1]

    def rep(arr):
        n = arr.ndim
        return pl.BlockSpec(arr.shape, lambda b, _n=n: (0,) * _n)

    return pl.pallas_call(
        _cnn_kernel,
        out_shape=jax.ShapeDtypeStruct((B, T, G), jnp.float32),
        grid=(B,),
        in_specs=[
            pl.BlockSpec((1, TT, KC), lambda b: (b, 0, 0)),
            rep(p["w1"]), rep(p["b1"]), rep(p["w2"]), rep(p["b2"]),
            rep(p["wc1"]), rep(p["bc1"]), rep(p["wc2"]), rep(p["bc2"]),
            rep(p["wi0"]), rep(p["bi0"]),
        ],
        out_specs=pl.BlockSpec((1, T, G), lambda b: (b, 0, 0)),
        scratch_shapes=[pltpu.VMEM((T + 4, C), jnp.float32),
                        pltpu.VMEM((T + 2, C), jnp.float32)],
        compiler_params=pltpu.CompilerParams(
            dimension_semantics=("parallel",)),
    )(im1, p["w1"], p["b1"], p["w2"], p["b2"],
      p["wc1"], p["bc1"], p["wc2"], p["bc2"], p["wi0"], p["bi0"])


# ---------------------------------------------------------------------------
# Kernel 2: fused multi-layer GRU (batch_first, h0 = 0) + FC head.
# xp0 is the hoisted layer-0 input projection, time-major (T, B, 3H).
# ---------------------------------------------------------------------------
def _gru_fc_kernel(xp0_ref, wh_ref, bh_ref, wi_ref, bi_ref,
                   fw1_ref, fb1_ref, fw2_ref, fb2_ref,
                   out_ref, xpa_ref, xpb_ref):
    T, B, G = xp0_ref.shape
    H = G // 3
    NL = wh_ref.shape[0]
    ping = (xpa_ref, xpb_ref)

    def run_layer(src_ref, dst_ref, wh, bh, wi_next, bi_next):
        def step(t, h):
            g = src_ref[t]                                   # (B, 3H)
            hh = jnp.dot(h, wh, preferred_element_type=jnp.float32) + bh
            r = _sigmoid(g[:, 0:H] + hh[:, 0:H])
            z = _sigmoid(g[:, H:2 * H] + hh[:, H:2 * H])
            n = jnp.tanh(g[:, 2 * H:3 * H] + r * hh[:, 2 * H:3 * H])
            h_new = (1.0 - z) * n + z * h
            if dst_ref is not None:
                # next layer's input projection, off its recurrent path
                dst_ref[t] = (jnp.dot(h_new, wi_next,
                                      preferred_element_type=jnp.float32)
                              + bi_next)
            return h_new

        return lax.fori_loop(0, T, step, jnp.zeros((B, H), jnp.float32),
                             unroll=True)

    h = jnp.zeros((B, H), jnp.float32)
    for l in range(NL):                                      # static layer loop
        src = xp0_ref if l == 0 else ping[(l + 1) % 2]
        last = (l == NL - 1)
        dst = None if last else ping[l % 2]
        wi_next = None if last else wi_ref[l + 1]
        bi_next = None if last else bi_ref[l + 1]
        h = run_layer(src, dst, wh_ref[l], bh_ref[l], wi_next, bi_next)

    # FC head: Tanh -> Linear(H,32) -> folded BN -> ReLU -> Linear(32, classes)
    hfc = jnp.tanh(h)
    y = jnp.maximum(
        jnp.dot(hfc, fw1_ref[...], preferred_element_type=jnp.float32)
        + fb1_ref[...], 0.0)
    out_ref[...] = (jnp.dot(y, fw2_ref[...], preferred_element_type=jnp.float32)
                    + fb2_ref[...])


def gru_fc_forward(xp0, gp, fp):
    T, B, G = xp0.shape
    num_classes = fp["w2"].shape[-1]
    return pl.pallas_call(
        _gru_fc_kernel,
        out_shape=jax.ShapeDtypeStruct((B, num_classes), jnp.float32),
        scratch_shapes=[pltpu.VMEM((T, B, G), jnp.float32),
                        pltpu.VMEM((T, B, G), jnp.float32)],
    )(xp0, gp["wh"], gp["bh"], gp["wi"], gp["bi"],
      fp["w1"], fp["b1"], fp["w2"], fp["b2"])


# ---------------------------------------------------------------------------
# Full forward.  Host-side glue: channel permute + pad + conv1 im2col (tiny),
# and one 6 KB transpose between the two kernels.
# ---------------------------------------------------------------------------
def cnngru_forward(x, kp):
    B, C_in, L = x.shape
    T = L // 2
    stride = C_in // 2
    # put branch i's two channels (i, i+stride) next to each other so the
    # block-diagonal packed conv1 weight matches.
    perm = []
    for i in range(3):
        perm.extend([i, i + stride])
    xcl = jnp.transpose(x, (0, 2, 1))[:, :, jnp.asarray(perm)]     # (B, L, 6)
    xpad = jnp.pad(xcl, ((0, 0), (2, 2), (0, 0)))                  # (B, L+4, 6)
    win = jnp.concatenate([xpad[:, k:k + L, :] for k in range(5)],
                          axis=-1)                                 # (B, L, 30)
    # even output times first, odd second -> maxpool is max of the two halves
    im1 = jnp.concatenate([win[:, 0::2, :], win[:, 1::2, :]], axis=1)
    im1 = im1.astype(jnp.bfloat16)                                 # (B, 2T, 30)

    g0 = cnn_forward(im1, kp["cnn"])                               # (B, T, 3H)
    xp0 = jnp.transpose(g0, (1, 0, 2))                             # (T, B, 3H)
    return gru_fc_forward(xp0, kp["gru"], kp["fc"])


# ---------------------------------------------------------------------------
# Parameters: raw (PyTorch-like, f32, eval BN) + packing into kernel layout.
# ---------------------------------------------------------------------------
def init_params(key, *, input_size, num_classes, gru_out_size, num_layers):
    cnn_feature = CNN_FEAT
    comb_feature = cnn_feature * (input_size // 2)
    keys = iter(jax.random.split(key, 512))

    def nrm(shape, scale):
        return jax.random.normal(next(keys), shape, jnp.float32) * scale

    def bn(c):
        return dict(
            gamma=jax.random.uniform(next(keys), (c,), jnp.float32, 0.5, 1.5),
            beta=nrm((c,), 0.1),
            mean=nrm((c,), 0.1),
            var=jax.random.uniform(next(keys), (c,), jnp.float32, 0.5, 1.5))

    def branch():
        return dict(
            w1=nrm((5, 2, cnn_feature), (2 * 5) ** -0.5),
            b1=nrm((cnn_feature,), 0.05), bn1=bn(cnn_feature),
            w2=nrm((3, cnn_feature, cnn_feature), (cnn_feature * 3) ** -0.5),
            b2=nrm((cnn_feature,), 0.05), bn2=bn(cnn_feature))

    branches = [branch() for _ in range(3)]
    comb = dict(
        w1=nrm((5, comb_feature, comb_feature), (comb_feature * 5) ** -0.5),
        b1=nrm((comb_feature,), 0.05), bn1=bn(comb_feature),
        w2=nrm((3, comb_feature, comb_feature), (comb_feature * 3) ** -0.5),
        b2=nrm((comb_feature,), 0.05), bn2=bn(comb_feature))

    H = gru_out_size
    gru = []
    for layer in range(num_layers):
        F = comb_feature if layer == 0 else H
        sc = H ** -0.5
        gru.append(dict(
            wir=nrm((F, H), sc), wiz=nrm((F, H), sc), win=nrm((F, H), sc),
            whr=nrm((H, H), sc), whz=nrm((H, H), sc), whn=nrm((H, H), sc),
            bir=nrm((H,), sc), biz=nrm((H,), sc), bin=nrm((H,), sc),
            bhr=nrm((H,), sc), bhz=nrm((H,), sc), bhn=nrm((H,), sc)))

    fc = dict(w1=nrm((H, 32), H ** -0.5), b1=nrm((32,), 0.05), bn=bn(32),
              w2=nrm((32, num_classes), 32 ** -0.5),
              b2=nrm((num_classes,), 0.05))
    return dict(branch=branches, comb=comb, gru=gru, fc=fc)


def pack_params(raw):
    f32, bf16 = jnp.float32, jnp.bfloat16
    Cb = CNN_FEAT
    Ctot = 3 * Cb

    def bn_scale_shift(bn):
        s = bn["gamma"] / jnp.sqrt(bn["var"] + _EPS)
        t = bn["beta"] - bn["mean"] * s
        return s, t

    def fold(w, b, bn):
        s, t = bn_scale_shift(bn)
        return w * s[None, None, :], b * s + t

    # block-diagonal packed branch convs (BN folded)
    w1bd = jnp.zeros((5, 6, Ctot), f32)
    b1bd = jnp.zeros((Ctot,), f32)
    w2bd = jnp.zeros((3, Ctot, Ctot), f32)
    b2bd = jnp.zeros((Ctot,), f32)
    for i, bp in enumerate(raw["branch"]):
        w1f, b1f = fold(bp["w1"], bp["b1"], bp["bn1"])
        w2f, b2f = fold(bp["w2"], bp["b2"], bp["bn2"])
        w1bd = w1bd.at[:, 2 * i:2 * i + 2, Cb * i:Cb * (i + 1)].set(w1f)
        b1bd = b1bd.at[Cb * i:Cb * (i + 1)].set(b1f)
        w2bd = w2bd.at[:, Cb * i:Cb * (i + 1), Cb * i:Cb * (i + 1)].set(w2f)
        b2bd = b2bd.at[Cb * i:Cb * (i + 1)].set(b2f)
    wc1, bc1 = fold(raw["comb"]["w1"], raw["comb"]["b1"], raw["comb"]["bn1"])
    wc2, bc2 = fold(raw["comb"]["w2"], raw["comb"]["b2"], raw["comb"]["bn2"])

    g0 = raw["gru"][0]
    wi0 = jnp.concatenate([g0["wir"], g0["wiz"], g0["win"]], axis=1)
    bi0 = jnp.concatenate([g0["bir"], g0["biz"], g0["bin"]], axis=0)

    cnn = dict(
        w1=w1bd.reshape(5 * 6, Ctot).astype(bf16), b1=b1bd.reshape(1, Ctot),
        w2=w2bd.astype(bf16), b2=b2bd.reshape(1, Ctot),
        wc1=wc1.astype(bf16), bc1=bc1.reshape(1, Ctot),
        wc2=wc2.astype(bf16), bc2=bc2.reshape(1, Ctot),
        wi0=wi0, bi0=bi0.reshape(1, -1))

    H = raw["gru"][0]["whr"].shape[0]
    wh_all = jnp.stack([jnp.concatenate([l["whr"], l["whz"], l["whn"]], 1)
                        for l in raw["gru"]])
    bh_all = jnp.stack([jnp.concatenate([l["bhr"], l["bhz"], l["bhn"]], 0)
                        .reshape(1, 3 * H) for l in raw["gru"]])
    wi_list = [jnp.zeros((H, 3 * H), f32)]       # layer-0 proj lives in the CNN
    bi_list = [jnp.zeros((1, 3 * H), f32)]
    for l in raw["gru"][1:]:
        wi_list.append(jnp.concatenate([l["wir"], l["wiz"], l["win"]], 1))
        bi_list.append(jnp.concatenate([l["bir"], l["biz"], l["bin"]], 0)
                       .reshape(1, 3 * H))
    gru = dict(wh=wh_all, bh=bh_all,
               wi=jnp.stack(wi_list), bi=jnp.stack(bi_list))

    fp = raw["fc"]
    s, t = bn_scale_shift(fp["bn"])
    fc = dict(w1=fp["w1"] * s[None, :], b1=(fp["b1"] * s + t).reshape(1, -1),
              w2=fp["w2"], b2=fp["b2"].reshape(1, -1))
    return dict(cnn=cnn, gru=gru, fc=fc)


# ---------------------------------------------------------------------------
# Pure-JAX f32 reference (same math, no Pallas) for validation.
# ---------------------------------------------------------------------------
def reference_forward(x, raw):
    hi = lax.Precision.HIGHEST
    mm = functools.partial(jnp.matmul, precision=hi)

    def bn(v, p):
        s = p["gamma"] / jnp.sqrt(p["var"] + _EPS)
        t = p["beta"] - p["mean"] * s
        return v * s + t

    def conv1d(v, w, b, pad):
        K = w.shape[0]
        Lx = v.shape[1]
        vp = jnp.pad(v, ((0, 0), (pad, pad), (0, 0)))
        acc = jnp.zeros((v.shape[0], Lx, w.shape[-1]), jnp.float32) + b
        for k in range(K):
            acc = acc + jnp.einsum("blc,cd->bld", vp[:, k:k + Lx, :], w[k],
                                   precision=hi)
        return acc

    stride = x.shape[1] // 2
    outs = []
    for i in range(3):
        p = raw["branch"][i]
        xb = jnp.transpose(x[:, i::stride, :], (0, 2, 1))
        c = bn(conv1d(xb, p["w1"], p["b1"], 2), p["bn1"])
        Bv, Lc, Cc = c.shape
        c = jnp.max(c.reshape(Bv, Lc // 2, 2, Cc), axis=2)
        c = jnp.maximum(c, 0.0)
        c = bn(conv1d(c, p["w2"], p["b2"], 1), p["bn2"])
        outs.append(jnp.maximum(c, 0.0))
    comb = jnp.concatenate(outs, axis=-1)
    p = raw["comb"]
    c = jnp.maximum(bn(conv1d(comb, p["w1"], p["b1"], 2), p["bn1"]), 0.0)
    c = jnp.maximum(bn(conv1d(c, p["w2"], p["b2"], 1), p["bn2"]), 0.0)

    out = c
    for lp in raw["gru"]:
        Bv, T, _ = out.shape
        H = lp["whr"].shape[0]
        h = jnp.zeros((Bv, H), jnp.float32)
        hs = []
        for t in range(T):
            xt = out[:, t, :]
            r = _sigmoid(mm(xt, lp["wir"]) + lp["bir"]
                         + mm(h, lp["whr"]) + lp["bhr"])
            z = _sigmoid(mm(xt, lp["wiz"]) + lp["biz"]
                         + mm(h, lp["whz"]) + lp["bhz"])
            n = jnp.tanh(mm(xt, lp["win"]) + lp["bin"]
                         + r * (mm(h, lp["whn"]) + lp["bhn"]))
            h = (1.0 - z) * n + z * h
            hs.append(h)
        out = jnp.stack(hs, axis=1)
    h_last = jnp.tanh(out[:, -1, :])

    fp = raw["fc"]
    s = fp["bn"]["gamma"] / jnp.sqrt(fp["bn"]["var"] + _EPS)
    t = fp["bn"]["beta"] - fp["bn"]["mean"] * s
    y = jnp.maximum((mm(h_last, fp["w1"]) + fp["b1"]) * s + t, 0.0)
    return mm(y, fp["w2"]) + fp["b2"]


if __name__ == "__main__":
    key = jax.random.PRNGKey(0)
    k_x, k_p = jax.random.split(key)

    # input_size must be 6 so the 3 strided 2-channel slices match
    # comb_feature = 64 * (input_size // 2) = 192.
    B, input_size, L = 2, 6, 16
    num_classes, gru_out_size, num_layers = 5, 32, 2

    x = jax.random.normal(k_x, (B, input_size, L), jnp.float32)
    raw = init_params(k_p, input_size=input_size, num_classes=num_classes,
                      gru_out_size=gru_out_size, num_layers=num_layers)
    packed = pack_params(raw)

    out = jax.jit(cnngru_forward)(x, packed)
    out = jax.block_until_ready(out)
    assert out.shape == (B, num_classes)

    ref = reference_forward(x, raw)
    err = float(jnp.linalg.norm(out - ref) /
                (jnp.linalg.norm(ref) + 1e-6))
    if not jnp.all(jnp.isfinite(out)) or err > 0.08:
        raise AssertionError(
            f"Pallas output does not match reference (rel err {err}):\n"
            f"{out}\nvs\n{ref}")

    print("KERNEL_OK")
</pallas_src>

<mosaic_0001>
module attributes {stable_mosaic.version = 11 : i64} {
  func.func @_gru_fc_kernel(%arg0: memref<8x2x96xf32, #tpu.memory_space<vmem>>, %arg1: memref<2x32x96xf32, #tpu.memory_space<vmem>>, %arg2: memref<2x1x96xf32, #tpu.memory_space<vmem>>, %arg3: memref<2x32x96xf32, #tpu.memory_space<vmem>>, %arg4: memref<2x1x96xf32, #tpu.memory_space<vmem>>, %arg5: memref<32x32xf32, #tpu.memory_space<vmem>>, %arg6: memref<1x32xf32, #tpu.memory_space<vmem>>, %arg7: memref<32x5xf32, #tpu.memory_space<vmem>>, %arg8: memref<1x5xf32, #tpu.memory_space<vmem>>, %arg9: memref<2x5xf32, #tpu.memory_space<vmem>>, %arg10: memref<8x2x96xf32, #tpu.memory_space<vmem>>, %arg11: memref<8x2x96xf32, #tpu.memory_space<vmem>>) attributes {dimension_semantics = [], scalar_prefetch = 0 : i64, scratch_operands = 2 : i64, tpu.core_type = #tpu.core_type<tc>} {
    %c1 = arith.constant 1 : index
    %c0 = arith.constant 0 : index
    %c0_0 = arith.constant 0 : index
    %0 = vector.load %arg3[%c1, %c0, %c0_0] : memref<2x32x96xf32, #tpu.memory_space<vmem>>, vector<1x32x96xf32>
    %1 = vector.shape_cast %0 : vector<1x32x96xf32> to vector<32x96xf32>
    %c1_1 = arith.constant 1 : index
    %c0_2 = arith.constant 0 : index
    %c0_3 = arith.constant 0 : index
    %2 = vector.load %arg4[%c1_1, %c0_2, %c0_3] : memref<2x1x96xf32, #tpu.memory_space<vmem>>, vector<1x1x96xf32>
    %3 = vector.shape_cast %2 : vector<1x1x96xf32> to vector<1x96xf32>
    %c0_4 = arith.constant 0 : index
    %c0_5 = arith.constant 0 : index
    %c0_6 = arith.constant 0 : index
    %4 = vector.load %arg1[%c0_4, %c0_5, %c0_6] : memref<2x32x96xf32, #tpu.memory_space<vmem>>, vector<1x32x96xf32>
    %5 = vector.shape_cast %4 : vector<1x32x96xf32> to vector<32x96xf32>
    %c0_7 = arith.constant 0 : index
    %c0_8 = arith.constant 0 : index
    %c0_9 = arith.constant 0 : index
    %6 = vector.load %arg2[%c0_7, %c0_8, %c0_9] : memref<2x1x96xf32, #tpu.memory_space<vmem>>, vector<1x1x96xf32>
    %7 = vector.shape_cast %6 : vector<1x1x96xf32> to vector<1x96xf32>
    %cst = arith.constant 0.000000e+00 : f32
    %8 = vector.broadcast %cst : f32 to vector<2x32xf32>
    %c0_i32 = arith.constant 0 : i32
    %9 = arith.index_cast %c0_i32 : i32 to index
    %c0_10 = arith.constant 0 : index
    %c0_11 = arith.constant 0 : index
    %10 = vector.load %arg0[%9, %c0_10, %c0_11] : memref<8x2x96xf32, #tpu.memory_space<vmem>>, vector<1x2x96xf32>
    %11 = vector.shape_cast %10 : vector<1x2x96xf32> to vector<2x96xf32>
    %cst_12 = arith.constant dense<0.000000e+00> : vector<2x96xf32>
    %12 = tpu.matmul %8, %5, %cst_12 {dimension_numbers = #tpu.dot_dimension_numbers<[1], [0], [0], [1], [0, 0, 1, 1], [], []>} : vector<2x32xf32>, vector<32x96xf32>, vector<2x96xf32> -> vector<2x96xf32>
    %13 = vector.broadcast %7 : vector<1x96xf32> to vector<2x96xf32>
    %14 = arith.addf %12, %13 : vector<2x96xf32>
    %15 = vector.extract_strided_slice %11 {offsets = [0, 0], sizes = [2, 32], strides = [1, 1]} : vector<2x96xf32> to vector<2x32xf32>
    %16 = vector.extract_strided_slice %14 {offsets = [0, 0], sizes = [2, 32], strides = [1, 1]} : vector<2x96xf32> to vector<2x32xf32>
    %17 = arith.addf %15, %16 : vector<2x32xf32>
    %cst_13 = arith.constant 0.000000e+00 : f32
    %18 = vector.broadcast %cst_13 : f32 to vector<2x32xf32>
    %19 = arith.subf %18, %17 : vector<2x32xf32>
    %20 = math.exp %19 : vector<2x32xf32>
    %cst_14 = arith.constant 1.000000e+00 : f32
    %21 = vector.broadcast %cst_14 : f32 to vector<2x32xf32>
    %22 = arith.addf %21, %20 : vector<2x32xf32>
    %cst_15 = arith.constant 1.000000e+00 : f32
    %23 = vector.broadcast %cst_15 : f32 to vector<2x32xf32>
    %24 = arith.divf %23, %22 : vector<2x32xf32>
    %25 = vector.extract_strided_slice %11 {offsets = [0, 32], sizes = [2, 32], strides = [1, 1]} : vector<2x96xf32> to vector<2x32xf32>
    %26 = vector.extract_strided_slice %14 {offsets = [0, 32], sizes = [2, 32], strides = [1, 1]} : vector<2x96xf32> to vector<2x32xf32>
    %27 = arith.addf %25, %26 : vector<2x32xf32>
    %cst_16 = arith.constant 0.000000e+00 : f32
    %28 = vector.broadcast %cst_16 : f32 to vector<2x32xf32>
    %29 = arith.subf %28, %27 : vector<2x32xf32>
    %30 = math.exp %29 : vector<2x32xf32>
    %cst_17 = arith.constant 1.000000e+00 : f32
    %31 = vector.broadcast %cst_17 : f32 to vector<2x32xf32>
    %32 = arith.addf %31, %30 : vector<2x32xf32>
    %cst_18 = arith.constant 1.000000e+00 : f32
    %33 = vector.broadcast %cst_18 : f32 to vector<2x32xf32>
    %34 = arith.divf %33, %32 : vector<2x32xf32>
    %35 = vector.extract_strided_slice %11 {offsets = [0, 64], sizes = [2, 32], strides = [1, 1]} : vector<2x96xf32> to vector<2x32xf32>
    %36 = vector.extract_strided_slice %14 {offsets = [0, 64], sizes = [2, 32], strides = [1, 1]} : vector<2x96xf32> to vector<2x32xf32>
    %37 = arith.mulf %24, %36 : vector<2x32xf32>
    %38 = arith.addf %35, %37 : vector<2x32xf32>
    %39 = math.tanh %38 : vector<2x32xf32>
    %cst_19 = arith.constant 1.000000e+00 : f32
    %40 = vector.broadcast %cst_19 : f32 to vector<2x32xf32>
    %41 = arith.subf %40, %34 : vector<2x32xf32>
    %42 = arith.mulf %41, %39 : vector<2x32xf32>
    %43 = arith.mulf %34, %8 : vector<2x32xf32>
    %44 = arith.addf %42, %43 : vector<2x32xf32>
    %cst_20 = arith.constant dense<0.000000e+00> : vector<2x96xf32>
    %45 = tpu.matmul %44, %1, %cst_20 {dimension_numbers = #tpu.dot_dimension_numbers<[1], [0], [0], [1], [0, 0, 1, 1], [], []>} : vector<2x32xf32>, vector<32x96xf32>, vector<2x96xf32> -> vector<2x96xf32>
    %46 = vector.broadcast %3 : vector<1x96xf32> to vector<2x96xf32>
    %47 = arith.addf %45, %46 : vector<2x96xf32>
    %48 = arith.index_cast %c0_i32 : i32 to index
    %c0_21 = arith.constant 0 : index
    %c0_22 = arith.constant 0 : index
    %49 = vector.load %arg10[%48, %c0_21, %c0_22] : memref<8x2x96xf32, #tpu.memory_space<vmem>>, vector<1x2x96xf32>
    %50 = vector.shape_cast %49 : vector<1x2x96xf32> to vector<2x96xf32>
    %51 = vector.shape_cast %47 : vector<2x96xf32> to vector<1x2x96xf32>
    tpu.vector_store %arg10[%48, %c0_21, %c0_22], %51 {strides = array<i32>} : memref<8x2x96xf32, #tpu.memory_space<vmem>>, vector<1x2x96xf32>,
    %c1_i32 = arith.constant 1 : i32
    %52 = arith.index_cast %c1_i32 : i32 to index
    %c0_23 = arith.constant 0 : index
    %c0_24 = arith.constant 0 : index
    %53 = vector.load %arg0[%52, %c0_23, %c0_24] : memref<8x2x96xf32, #tpu.memory_space<vmem>>, vector<1x2x96xf32>
    %54 = vector.shape_cast %53 : vector<1x2x96xf32> to vector<2x96xf32>
    %cst_25 = arith.constant dense<0.000000e+00> : vector<2x96xf32>
    %55 = tpu.matmul %44, %5, %cst_25 {dimension_numbers = #tpu.dot_dimension_numbers<[1], [0], [0], [1], [0, 0, 1, 1], [], []>} : vector<2x32xf32>, vector<32x96xf32>, vector<2x96xf32> -> vector<2x96xf32>
    %56 = vector.broadcast %7 : vector<1x96xf32> to vector<2x96xf32>
    %57 = arith.addf %55, %56 : vector<2x96xf32>
    %58 = vector.extract_strided_slice %54 {offsets = [0, 0], sizes = [2, 32], strides = [1, 1]} : vector<2x96xf32> to vector<2x32xf32>
    %59 = vector.extract_strided_slice %57 {offsets = [0, 0], sizes = [2, 32], strides = [1, 1]} : vector<2x96xf32> to vector<2x32xf32>
    %60 = arith.addf %58, %59 : vector<2x32xf32>
    %cst_26 = arith.constant 0.000000e+00 : f32
    %61 = vector.broadcast %cst_26 : f32 to vector<2x32xf32>
    %62 = arith.subf %61, %60 : vector<2x32xf32>
    %63 = math.exp %62 : vector<2x32xf32>
    %cst_27 = arith.constant 1.000000e+00 : f32
    %64 = vector.broadcast %cst_27 : f32 to vector<2x32xf32>
    %65 = arith.addf %64, %63 : vector<2x32xf32>
    %cst_28 = arith.constant 1.000000e+00 : f32
    %66 = vector.broadcast %cst_28 : f32 to vector<2x32xf32>
    %67 = arith.divf %66, %65 : vector<2x32xf32>
    %68 = vector.extract_strided_slice %54 {offsets = [0, 32], sizes = [2, 32], strides = [1, 1]} : vector<2x96xf32> to vector<2x32xf32>
    %69 = vector.extract_strided_slice %57 {offsets = [0, 32], sizes = [2, 32], strides = [1, 1]} : vector<2x96xf32> to vector<2x32xf32>
    %70 = arith.addf %68, %69 : vector<2x32xf32>
    %cst_29 = arith.constant 0.000000e+00 : f32
    %71 = vector.broadcast %cst_29 : f32 to vector<2x32xf32>
    %72 = arith.subf %71, %70 : vector<2x32xf32>
    %73 = math.exp %72 : vector<2x32xf32>
    %cst_30 = arith.constant 1.000000e+00 : f32
    %74 = vector.broadcast %cst_30 : f32 to vector<2x32xf32>
    %75 = arith.addf %74, %73 : vector<2x32xf32>
    %cst_31 = arith.constant 1.000000e+00 : f32
    %76 = vector.broadcast %cst_31 : f32 to vector<2x32xf32>
    %77 = arith.divf %76, %75 : vector<2x32xf32>
    %78 = vector.extract_strided_slice %54 {offsets = [0, 64], sizes = [2, 32], strides = [1, 1]} : vector<2x96xf32> to vector<2x32xf32>
    %79 = vector.extract_strided_slice %57 {offsets = [0, 64], sizes = [2, 32], strides = [1, 1]} : vector<2x96xf32> to vector<2x32xf32>
    %80 = arith.mulf %67, %79 : vector<2x32xf32>
    %81 = arith.addf %78, %80 : vector<2x32xf32>
    %82 = math.tanh %81 : vector<2x32xf32>
    %cst_32 = arith.constant 1.000000e+00 : f32
    %83 = vector.broadcast %cst_32 : f32 to vector<2x32xf32>
    %84 = arith.subf %83, %77 : vector<2x32xf32>
    %85 = arith.mulf %84, %82 : vector<2x32xf32>
    %86 = arith.mulf %77, %44 : vector<2x32xf32>
    %87 = arith.addf %85, %86 : vector<2x32xf32>
    %cst_33 = arith.constant dense<0.000000e+00> : vector<2x96xf32>
    %88 = tpu.matmul %87, %1, %cst_33 {dimension_numbers = #tpu.dot_dimension_numbers<[1], [0], [0], [1], [0, 0, 1, 1], [], []>} : vector<2x32xf32>, vector<32x96xf32>, vector<2x96xf32> -> vector<2x96xf32>
    %89 = vector.broadcast %3 : vector<1x96xf32> to vector<2x96xf32>
    %90 = arith.addf %88, %89 : vector<2x96xf32>
    %91 = arith.index_cast %c1_i32 : i32 to index
    %c0_34 = arith.constant 0 : index
    %c0_35 = arith.constant 0 : index
    %92 = vector.load %arg10[%91, %c0_34, %c0_35] : memref<8x2x96xf32, #tpu.memory_space<vmem>>, vector<1x2x96xf32>
    %93 = vector.shape_cast %92 : vector<1x2x96xf32> to vector<2x96xf32>
    %94 = vector.shape_cast %90 : vector<2x96xf32> to vector<1x2x96xf32>
    tpu.vector_store %arg10[%91, %c0_34, %c0_35], %94 {strides = array<i32>} : memref<8x2x96xf32, #tpu.memory_space<vmem>>, vector<1x2x96xf32>,
    %c2_i32 = arith.constant 2 : i32
    %95 = arith.index_cast %c2_i32 : i32 to index
    %c0_36 = arith.constant 0 : index
    %c0_37 = arith.constant 0 : index
    %96 = vector.load %arg0[%95, %c0_36, %c0_37] : memref<8x2x96xf32, #tpu.memory_space<vmem>>, vector<1x2x96xf32>
    %97 = vector.shape_cast %96 : vector<1x2x96xf32> to vector<2x96xf32>
    %cst_38 = arith.constant dense<0.000000e+00> : vector<2x96xf32>
    %98 = tpu.matmul %87, %5, %cst_38 {dimension_numbers = #tpu.dot_dimension_numbers<[1], [0], [0], [1], [0, 0, 1, 1], [], []>} : vector<2x32xf32>, vector<32x96xf32>, vector<2x96xf32> -> vector<2x96xf32>
    %99 = vector.broadcast %7 : vector<1x96xf32> to vector<2x96xf32>
    %100 = arith.addf %98, %99 : vector<2x96xf32>
    %101 = vector.extract_strided_slice %97 {offsets = [0, 0], sizes = [2, 32], strides = [1, 1]} : vector<2x96xf32> to vector<2x32xf32>
    %102 = vector.extract_strided_slice %100 {offsets = [0, 0], sizes = [2, 32], strides = [1, 1]} : vector<2x96xf32> to vector<2x32xf32>
    %103 = arith.addf %101, %102 : vector<2x32xf32>
    %cst_39 = arith.constant 0.000000e+00 : f32
    %104 = vector.broadcast %cst_39 : f32 to vector<2x32xf32>
    %105 = arith.subf %104, %103 : vector<2x32xf32>
    %106 = math.exp %105 : vector<2x32xf32>
    %cst_40 = arith.constant 1.000000e+00 : f32
    %107 = vector.broadcast %cst_40 : f32 to vector<2x32xf32>
    %108 = arith.addf %107, %106 : vector<2x32xf32>
    %cst_41 = arith.constant 1.000000e+00 : f32
    %109 = vector.broadcast %cst_41 : f32 to vector<2x32xf32>
    %110 = arith.divf %109, %108 : vector<2x32xf32>
    %111 = vector.extract_strided_slice %97 {offsets = [0, 32], sizes = [2, 32], strides = [1, 1]} : vector<2x96xf32> to vector<2x32xf32>
    %112 = vector.extract_strided_slice %100 {offsets = [0, 32], sizes = [2, 32], strides = [1, 1]} : vector<2x96xf32> to vector<2x32xf32>
    %113 = arith.addf %111, %112 : vector<2x32xf32>
    %cst_42 = arith.constant 0.000000e+00 : f32
    %114 = vector.broadcast %cst_42 : f32 to vector<2x32xf32>
    %115 = arith.subf %114, %113 : vector<2x32xf32>
    %116 = math.exp %115 : vector<2x32xf32>
    %cst_43 = arith.constant 1.000000e+00 : f32
    %117 = vector.broadcast %cst_43 : f32 to vector<2x32xf32>
    %118 = arith.addf %117, %116 : vector<2x32xf32>
    %cst_44 = arith.constant 1.000000e+00 : f32
    %119 = vector.broadcast %cst_44 : f32 to vector<2x32xf32>
    %120 = arith.divf %119, %118 : vector<2x32xf32>
    %121 = vector.extract_strided_slice %97 {offsets = [0, 64], sizes = [2, 32], strides = [1, 1]} : vector<2x96xf32> to vector<2x32xf32>
    %122 = vector.extract_strided_slice %100 {offsets = [0, 64], sizes = [2, 32], strides = [1, 1]} : vector<2x96xf32> to vector<2x32xf32>
    %123 = arith.mulf %110, %122 : vector<2x32xf32>
    %124 = arith.addf %121, %123 : vector<2x32xf32>
    %125 = math.tanh %124 : vector<2x32xf32>
    %cst_45 = arith.constant 1.000000e+00 : f32
    %126 = vector.broadcast %cst_45 : f32 to vector<2x32xf32>
    %127 = arith.subf %126, %120 : vector<2x32xf32>
    %128 = arith.mulf %127, %125 : vector<2x32xf32>
    %129 = arith.mulf %120, %87 : vector<2x32xf32>
    %130 = arith.addf %128, %129 : vector<2x32xf32>
    %cst_46 = arith.constant dense<0.000000e+00> : vector<2x96xf32>
    %131 = tpu.matmul %130, %1, %cst_46 {dimension_numbers = #tpu.dot_dimension_numbers<[1], [0], [0], [1], [0, 0, 1, 1], [], []>} : vector<2x32xf32>, vector<32x96xf32>, vector<2x96xf32> -> vector<2x96xf32>
    %132 = vector.broadcast %3 : vector<1x96xf32> to vector<2x96xf32>
    %133 = arith.addf %131, %132 : vector<2x96xf32>
    %134 = arith.index_cast %c2_i32 : i32 to index
    %c0_47 = arith.constant 0 : index
    %c0_48 = arith.constant 0 : index
    %135 = vector.load %arg10[%134, %c0_47, %c0_48] : memref<8x2x96xf32, #tpu.memory_space<vmem>>, vector<1x2x96xf32>
    %136 = vector.shape_cast %135 : vector<1x2x96xf32> to vector<2x96xf32>
    %137 = vector.shape_cast %133 : vector<2x96xf32> to vector<1x2x96xf32>
    tpu.vector_store %arg10[%134, %c0_47, %c0_48], %137 {strides = array<i32>} : memref<8x2x96xf32, #tpu.memory_space<vmem>>, vector<1x2x96xf32>,
    %c3_i32 = arith.constant 3 : i32
    %138 = arith.index_cast %c3_i32 : i32 to index
    %c0_49 = arith.constant 0 : index
    %c0_50 = arith.constant 0 : index
    %139 = vector.load %arg0[%138, %c0_49, %c0_50] : memref<8x2x96xf32, #tpu.memory_space<vmem>>, vector<1x2x96xf32>
    %140 = vector.shape_cast %139 : vector<1x2x96xf32> to vector<2x96xf32>
    %cst_51 = arith.constant dense<0.000000e+00> : vector<2x96xf32>
    %141 = tpu.matmul %130, %5, %cst_51 {dimension_numbers = #tpu.dot_dimension_numbers<[1], [0], [0], [1], [0, 0, 1, 1], [], []>} : vector<2x32xf32>, vector<32x96xf32>, vector<2x96xf32> -> vector<2x96xf32>
    %142 = vector.broadcast %7 : vector<1x96xf32> to vector<2x96xf32>
    %143 = arith.addf %141, %142 : vector<2x96xf32>
    %144 = vector.extract_strided_slice %140 {offsets = [0, 0], sizes = [2, 32], strides = [1, 1]} : vector<2x96xf32> to vector<2x32xf32>
    %145 = vector.extract_strided_slice %143 {offsets = [0, 0], sizes = [2, 32], strides = [1, 1]} : vector<2x96xf32> to vector<2x32xf32>
    %146 = arith.addf %144, %145 : vector<2x32xf32>
    %cst_52 = arith.constant 0.000000e+00 : f32
    %147 = vector.broadcast %cst_52 : f32 to vector<2x32xf32>
    %148 = arith.subf %147, %146 : vector<2x32xf32>
    %149 = math.exp %148 : vector<2x32xf32>
    %cst_53 = arith.constant 1.000000e+00 : f32
    %150 = vector.broadcast %cst_53 : f32 to vector<2x32xf32>
    %151 = arith.addf %150, %149 : vector<2x32xf32>
    %cst_54 = arith.constant 1.000000e+00 : f32
    %152 = vector.broadcast %cst_54 : f32 to vector<2x32xf32>
    %153 = arith.divf %152, %151 : vector<2x32xf32>
    %154 = vector.extract_strided_slice %140 {offsets = [0, 32], sizes = [2, 32], strides = [1, 1]} : vector<2x96xf32> to vector<2x32xf32>
    %155 = vector.extract_strided_slice %143 {offsets = [0, 32], sizes = [2, 32], strides = [1, 1]} : vector<2x96xf32> to vector<2x32xf32>
    %156 = arith.addf %154, %155 : vector<2x32xf32>
    %cst_55 = arith.constant 0.000000e+00 : f32
    %157 = vector.broadcast %cst_55 : f32 to vector<2x32xf32>
    %158 = arith.subf %157, %156 : vector<2x32xf32>
    %159 = math.exp %158 : vector<2x32xf32>
    %cst_56 = arith.constant 1.000000e+00 : f32
    %160 = vector.broadcast %cst_56 : f32 to vector<2x32xf32>
    %161 = arith.addf %160, %159 : vector<2x32xf32>
    %cst_57 = arith.constant 1.000000e+00 : f32
    %162 = vector.broadcast %cst_57 : f32 to vector<2x32xf32>
    %163 = arith.divf %162, %161 : vector<2x32xf32>
    %164 = vector.extract_strided_slice %140 {offsets = [0, 64], sizes = [2, 32], strides = [1, 1]} : vector<2x96xf32> to vector<2x32xf32>
    %165 = vector.extract_strided_slice %143 {offsets = [0, 64], sizes = [2, 32], strides = [1, 1]} : vector<2x96xf32> to vector<2x32xf32>
    %166 = arith.mulf %153, %165 : vector<2x32xf32>
    %167 = arith.addf %164, %166 : vector<2x32xf32>
    %168 = math.tanh %167 : vector<2x32xf32>
    %cst_58 = arith.constant 1.000000e+00 : f32
    %169 = vector.broadcast %cst_58 : f32 to vector<2x32xf32>
    %170 = arith.subf %169, %163 : vector<2x32xf32>
    %171 = arith.mulf %170, %168 : vector<2x32xf32>
    %172 = arith.mulf %163, %130 : vector<2x32xf32>
    %173 = arith.addf %171, %172 : vector<2x32xf32>
    %cst_59 = arith.constant dense<0.000000e+00> : vector<2x96xf32>
    %174 = tpu.matmul %173, %1, %cst_59 {dimension_numbers = #tpu.dot_dimension_numbers<[1], [0], [0], [1], [0, 0, 1, 1], [], []>} : vector<2x32xf32>, vector<32x96xf32>, vector<2x96xf32> -> vector<2x96xf32>
    %175 = vector.broadcast %3 : vector<1x96xf32> to vector<2x96xf32>
    %176 = arith.addf %174, %175 : vector<2x96xf32>
    %177 = arith.index_cast %c3_i32 : i32 to index
    %c0_60 = arith.constant 0 : index
    %c0_61 = arith.constant 0 : index
    %178 = vector.load %arg10[%177, %c0_60, %c0_61] : memref<8x2x96xf32, #tpu.memory_space<vmem>>, vector<1x2x96xf32>
    %179 = vector.shape_cast %178 : vector<1x2x96xf32> to vector<2x96xf32>
    %180 = vector.shape_cast %176 : vector<2x96xf32> to vector<1x2x96xf32>
    tpu.vector_store %arg10[%177, %c0_60, %c0_61], %180 {strides = array<i32>} : memref<8x2x96xf32, #tpu.memory_space<vmem>>, vector<1x2x96xf32>,
    %c4_i32 = arith.constant 4 : i32
    %181 = arith.index_cast %c4_i32 : i32 to index
    %c0_62 = arith.constant 0 : index
    %c0_63 = arith.constant 0 : index
    %182 = vector.load %arg0[%181, %c0_62, %c0_63] : memref<8x2x96xf32, #tpu.memory_space<vmem>>, vector<1x2x96xf32>
    %183 = vector.shape_cast %182 : vector<1x2x96xf32> to vector<2x96xf32>
    %cst_64 = arith.constant dense<0.000000e+00> : vector<2x96xf32>
    %184 = tpu.matmul %173, %5, %cst_64 {dimension_numbers = #tpu.dot_dimension_numbers<[1], [0], [0], [1], [0, 0, 1, 1], [], []>} : vector<2x32xf32>, vector<32x96xf32>, vector<2x96xf32> -> vector<2x96xf32>
    %185 = vector.broadcast %7 : vector<1x96xf32> to vector<2x96xf32>
    %186 = arith.addf %184, %185 : vector<2x96xf32>
    %187 = vector.extract_strided_slice %183 {offsets = [0, 0], sizes = [2, 32], strides = [1, 1]} : vector<2x96xf32> to vector<2x32xf32>
    %188 = vector.extract_strided_slice %186 {offsets = [0, 0], sizes = [2, 32], strides = [1, 1]} : vector<2x96xf32> to vector<2x32xf32>
    %189 = arith.addf %187, %188 : vector<2x32xf32>
    %cst_65 = arith.constant 0.000000e+00 : f32
    %190 = vector.broadcast %cst_65 : f32 to vector<2x32xf32>
    %191 = arith.subf %190, %189 : vector<2x32xf32>
    %192 = math.exp %191 : vector<2x32xf32>
    %cst_66 = arith.constant 1.000000e+00 : f32
    %193 = vector.broadcast %cst_66 : f32 to vector<2x32xf32>
    %194 = arith.addf %193, %192 : vector<2x32xf32>
    %cst_67 = arith.constant 1.000000e+00 : f32
    %195 = vector.broadcast %cst_67 : f32 to vector<2x32xf32>
    %196 = arith.divf %195, %194 : vector<2x32xf32>
    %197 = vector.extract_strided_slice %183 {offsets = [0, 32], sizes = [2, 32], strides = [1, 1]} : vector<2x96xf32> to vector<2x32xf32>
    %198 = vector.extract_strided_slice %186 {offsets = [0, 32], sizes = [2, 32], strides = [1, 1]} : vector<2x96xf32> to vector<2x32xf32>
    %199 = arith.addf %197, %198 : vector<2x32xf32>
    %cst_68 = arith.constant 0.000000e+00 : f32
    %200 = vector.broadcast %cst_68 : f32 to vector<2x32xf32>
    %201 = arith.subf %200, %199 : vector<2x32xf32>
    %202 = math.exp %201 : vector<2x32xf32>
    %cst_69 = arith.constant 1.000000e+00 : f32
    %203 = vector.broadcast %cst_69 : f32 to vector<2x32xf32>
    %204 = arith.addf %203, %202 : vector<2x32xf32>
    %cst_70 = arith.constant 1.000000e+00 : f32
    %205 = vector.broadcast %cst_70 : f32 to vector<2x32xf32>
    %206 = arith.divf %205, %204 : vector<2x32xf32>
    %207 = vector.extract_strided_slice %183 {offsets = [0, 64], sizes = [2, 32], strides = [1, 1]} : vector<2x96xf32> to vector<2x32xf32>
    %208 = vector.extract_strided_slice %186 {offsets = [0, 64], sizes = [2, 32], strides = [1, 1]} : vector<2x96xf32> to vector<2x32xf32>
    %209 = arith.mulf %196, %208 : vector<2x32xf32>
    %210 = arith.addf %207, %209 : vector<2x32xf32>
    %211 = math.tanh %210 : vector<2x32xf32>
    %cst_71 = arith.constant 1.000000e+00 : f32
    %212 = vector.broadcast %cst_71 : f32 to vector<2x32xf32>
    %213 = arith.subf %212, %206 : vector<2x32xf32>
    %214 = arith.mulf %213, %211 : vector<2x32xf32>
    %215 = arith.mulf %206, %173 : vector<2x32xf32>
    %216 = arith.addf %214, %215 : vector<2x32xf32>
    %cst_72 = arith.constant dense<0.000000e+00> : vector<2x96xf32>
    %217 = tpu.matmul %216, %1, %cst_72 {dimension_numbers = #tpu.dot_dimension_numbers<[1], [0], [0], [1], [0, 0, 1, 1], [], []>} : vector<2x32xf32>, vector<32x96xf32>, vector<2x96xf32> -> vector<2x96xf32>
    %218 = vector.broadcast %3 : vector<1x96xf32> to vector<2x96xf32>
    %219 = arith.addf %217, %218 : vector<2x96xf32>
    %220 = arith.index_cast %c4_i32 : i32 to index
    %c0_73 = arith.constant 0 : index
    %c0_74 = arith.constant 0 : index
    %221 = vector.load %arg10[%220, %c0_73, %c0_74] : memref<8x2x96xf32, #tpu.memory_space<vmem>>, vector<1x2x96xf32>
    %222 = vector.shape_cast %221 : vector<1x2x96xf32> to vector<2x96xf32>
    %223 = vector.shape_cast %219 : vector<2x96xf32> to vector<1x2x96xf32>
    tpu.vector_store %arg10[%220, %c0_73, %c0_74], %223 {strides = array<i32>} : memref<8x2x96xf32, #tpu.memory_space<vmem>>, vector<1x2x96xf32>,
    %c5_i32 = arith.constant 5 : i32
    %224 = arith.index_cast %c5_i32 : i32 to index
    %c0_75 = arith.constant 0 : index
    %c0_76 = arith.constant 0 : index
    %225 = vector.load %arg0[%224, %c0_75, %c0_76] : memref<8x2x96xf32, #tpu.memory_space<vmem>>, vector<1x2x96xf32>
    %226 = vector.shape_cast %225 : vector<1x2x96xf32> to vector<2x96xf32>
    %cst_77 = arith.constant dense<0.000000e+00> : vector<2x96xf32>
    %227 = tpu.matmul %216, %5, %cst_77 {dimension_numbers = #tpu.dot_dimension_numbers<[1], [0], [0], [1], [0, 0, 1, 1], [], []>} : vector<2x32xf32>, vector<32x96xf32>, vector<2x96xf32> -> vector<2x96xf32>
    %228 = vector.broadcast %7 : vector<1x96xf32> to vector<2x96xf32>
    %229 = arith.addf %227, %228 : vector<2x96xf32>
    %230 = vector.extract_strided_slice %226 {offsets = [0, 0], sizes = [2, 32], strides = [1, 1]} : vector<2x96xf32> to vector<2x32xf32>
    %231 = vector.extract_strided_slice %229 {offsets = [0, 0], sizes = [2, 32], strides = [1, 1]} : vector<2x96xf32> to vector<2x32xf32>
    %232 = arith.addf %230, %231 : vector<2x32xf32>
    %cst_78 = arith.constant 0.000000e+00 : f32
    %233 = vector.broadcast %cst_78 : f32 to vector<2x32xf32>
    %234 = arith.subf %233, %232 : vector<2x32xf32>
    %235 = math.exp %234 : vector<2x32xf32>
    %cst_79 = arith.constant 1.000000e+00 : f32
    %236 = vector.broadcast %cst_79 : f32 to vector<2x32xf32>
    %237 = arith.addf %236, %235 : vector<2x32xf32>
    %cst_80 = arith.constant 1.000000e+00 : f32
    %238 = vector.broadcast %cst_80 : f32 to vector<2x32xf32>
    %239 = arith.divf %238, %237 : vector<2x32xf32>
    %240 = vector.extract_strided_slice %226 {offsets = [0, 32], sizes = [2, 32], strides = [1, 1]} : vector<2x96xf32> to vector<2x32xf32>
    %241 = vector.extract_strided_slice %229 {offsets = [0, 32], sizes = [2, 32], strides = [1, 1]} : vector<2x96xf32> to vector<2x32xf32>
    %242 = arith.addf %240, %241 : vector<2x32xf32>
    %cst_81 = arith.constant 0.000000e+00 : f32
    %243 = vector.broadcast %cst_81 : f32 to vector<2x32xf32>
    %244 = arith.subf %243, %242 : vector<2x32xf32>
    %245 = math.exp %244 : vector<2x32xf32>
    %cst_82 = arith.constant 1.000000e+00 : f32
    %246 = vector.broadcast %cst_82 : f32 to vector<2x32xf32>
    %247 = arith.addf %246, %245 : vector<2x32xf32>
    %cst_83 = arith.constant 1.000000e+00 : f32
    %248 = vector.broadcast %cst_83 : f32 to vector<2x32xf32>
    %249 = arith.divf %248, %247 : vector<2x32xf32>
    %250 = vector.extract_strided_slice %226 {offsets = [0, 64], sizes = [2, 32], strides = [1, 1]} : vector<2x96xf32> to vector<2x32xf32>
    %251 = vector.extract_strided_slice %229 {offsets = [0, 64], sizes = [2, 32], strides = [1, 1]} : vector<2x96xf32> to vector<2x32xf32>
    %252 = arith.mulf %239, %251 : vector<2x32xf32>
    %253 = arith.addf %250, %252 : vector<2x32xf32>
    %254 = math.tanh %253 : vector<2x32xf32>
    %cst_84 = arith.constant 1.000000e+00 : f32
    %255 = vector.broadcast %cst_84 : f32 to vector<2x32xf32>
    %256 = arith.subf %255, %249 : vector<2x32xf32>
    %257 = arith.mulf %256, %254 : vector<2x32xf32>
    %258 = arith.mulf %249, %216 : vector<2x32xf32>
    %259 = arith.addf %257, %258 : vector<2x32xf32>
    %cst_85 = arith.constant dense<0.000000e+00> : vector<2x96xf32>
    %260 = tpu.matmul %259, %1, %cst_85 {dimension_numbers = #tpu.dot_dimension_numbers<[1], [0], [0], [1], [0, 0, 1, 1], [], []>} : vector<2x32xf32>, vector<32x96xf32>, vector<2x96xf32> -> vector<2x96xf32>
    %261 = vector.broadcast %3 : vector<1x96xf32> to vector<2x96xf32>
    %262 = arith.addf %260, %261 : vector<2x96xf32>
    %263 = arith.index_cast %c5_i32 : i32 to index
    %c0_86 = arith.constant 0 : index
    %c0_87 = arith.constant 0 : index
    %264 = vector.load %arg10[%263, %c0_86, %c0_87] : memref<8x2x96xf32, #tpu.memory_space<vmem>>, vector<1x2x96xf32>
    %265 = vector.shape_cast %264 : vector<1x2x96xf32> to vector<2x96xf32>
    %266 = vector.shape_cast %262 : vector<2x96xf32> to vector<1x2x96xf32>
    tpu.vector_store %arg10[%263, %c0_86, %c0_87], %266 {strides = array<i32>} : memref<8x2x96xf32, #tpu.memory_space<vmem>>, vector<1x2x96xf32>,
    %c6_i32 = arith.constant 6 : i32
    %267 = arith.index_cast %c6_i32 : i32 to index
    %c0_88 = arith.constant 0 : index
    %c0_89 = arith.constant 0 : index
    %268 = vector.load %arg0[%267, %c0_88, %c0_89] : memref<8x2x96xf32, #tpu.memory_space<vmem>>, vector<1x2x96xf32>
    %269 = vector.shape_cast %268 : vector<1x2x96xf32> to vector<2x96xf32>
    %cst_90 = arith.constant dense<0.000000e+00> : vector<2x96xf32>
    %270 = tpu.matmul %259, %5, %cst_90 {dimension_numbers = #tpu.dot_dimension_numbers<[1], [0], [0], [1], [0, 0, 1, 1], [], []>} : vector<2x32xf32>, vector<32x96xf32>, vector<2x96xf32> -> vector<2x96xf32>
    %271 = vector.broadcast %7 : vector<1x96xf32> to vector<2x96xf32>
    %272 = arith.addf %270, %271 : vector<2x96xf32>
    %273 = vector.extract_strided_slice %269 {offsets = [0, 0], sizes = [2, 32], strides = [1, 1]} : vector<2x96xf32> to vector<2x32xf32>
    %274 = vector.extract_strided_slice %272 {offsets = [0, 0], sizes = [2, 32], strides = [1, 1]} : vector<2x96xf32> to vector<2x32xf32>
    %275 = arith.addf %273, %274 : vector<2x32xf32>
    %cst_91 = arith.constant 0.000000e+00 : f32
    %276 = vector.broadcast %cst_91 : f32 to vector<2x32xf32>
    %277 = arith.subf %276, %275 : vector<2x32xf32>
    %278 = math.exp %277 : vector<2x32xf32>
    %cst_92 = arith.constant 1.000000e+00 : f32
    %279 = vector.broadcast %cst_92 : f32 to vector<2x32xf32>
    %280 = arith.addf %279, %278 : vector<2x32xf32>
    %cst_93 = arith.constant 1.000000e+00 : f32
    %281 = vector.broadcast %cst_93 : f32 to vector<2x32xf32>
    %282 = arith.divf %281, %280 : vector<2x32xf32>
    %283 = vector.extract_strided_slice %269 {offsets = [0, 32], sizes = [2, 32], strides = [1, 1]} : vector<2x96xf32> to vector<2x32xf32>
    %284 = vector.extract_strided_slice %272 {offsets = [0, 32], sizes = [2, 32], strides = [1, 1]} : vector<2x96xf32> to vector<2x32xf32>
    %285 = arith.addf %283, %284 : vector<2x32xf32>
    %cst_94 = arith.constant 0.000000e+00 : f32
    %286 = vector.broadcast %cst_94 : f32 to vector<2x32xf32>
    %287 = arith.subf %286, %285 : vector<2x32xf32>
    %288 = math.exp %287 : vector<2x32xf32>
    %cst_95 = arith.constant 1.000000e+00 : f32
    %289 = vector.broadcast %cst_95 : f32 to vector<2x32xf32>
    %290 = arith.addf %289, %288 : vector<2x32xf32>
    %cst_96 = arith.constant 1.000000e+00 : f32
    %291 = vector.broadcast %cst_96 : f32 to vector<2x32xf32>
    %292 = arith.divf %291, %290 : vector<2x32xf32>
    %293 = vector.extract_strided_slice %269 {offsets = [0, 64], sizes = [2, 32], strides = [1, 1]} : vector<2x96xf32> to vector<2x32xf32>
    %294 = vector.extract_strided_slice %272 {offsets = [0, 64], sizes = [2, 32], strides = [1, 1]} : vector<2x96xf32> to vector<2x32xf32>
    %295 = arith.mulf %282, %294 : vector<2x32xf32>
    %296 = arith.addf %293, %295 : vector<2x32xf32>
    %297 = math.tanh %296 : vector<2x32xf32>
    %cst_97 = arith.constant 1.000000e+00 : f32
    %298 = vector.broadcast %cst_97 : f32 to vector<2x32xf32>
    %299 = arith.subf %298, %292 : vector<2x32xf32>
    %300 = arith.mulf %299, %297 : vector<2x32xf32>
    %301 = arith.mulf %292, %259 : vector<2x32xf32>
    %302 = arith.addf %300, %301 : vector<2x32xf32>
    %cst_98 = arith.constant dense<0.000000e+00> : vector<2x96xf32>
    %303 = tpu.matmul %302, %1, %cst_98 {dimension_numbers = #tpu.dot_dimension_numbers<[1], [0], [0], [1], [0, 0, 1, 1], [], []>} : vector<2x32xf32>, vector<32x96xf32>, vector<2x96xf32> -> vector<2x96xf32>
    %304 = vector.broadcast %3 : vector<1x96xf32> to vector<2x96xf32>
    %305 = arith.addf %303, %304 : vector<2x96xf32>
    %306 = arith.index_cast %c6_i32 : i32 to index
    %c0_99 = arith.constant 0 : index
    %c0_100 = arith.constant 0 : index
    %307 = vector.load %arg10[%306, %c0_99, %c0_100] : memref<8x2x96xf32, #tpu.memory_space<vmem>>, vector<1x2x96xf32>
    %308 = vector.shape_cast %307 : vector<1x2x96xf32> to vector<2x96xf32>
    %309 = vector.shape_cast %305 : vector<2x96xf32> to vector<1x2x96xf32>
    tpu.vector_store %arg10[%306, %c0_99, %c0_100], %309 {strides = array<i32>} : memref<8x2x96xf32, #tpu.memory_space<vmem>>, vector<1x2x96xf32>,
    %c7_i32 = arith.constant 7 : i32
    %310 = arith.index_cast %c7_i32 : i32 to index
    %c0_101 = arith.constant 0 : index
    %c0_102 = arith.constant 0 : index
    %311 = vector.load %arg0[%310, %c0_101, %c0_102] : memref<8x2x96xf32, #tpu.memory_space<vmem>>, vector<1x2x96xf32>
    %312 = vector.shape_cast %311 : vector<1x2x96xf32> to vector<2x96xf32>
    %cst_103 = arith.constant dense<0.000000e+00> : vector<2x96xf32>
    %313 = tpu.matmul %302, %5, %cst_103 {dimension_numbers = #tpu.dot_dimension_numbers<[1], [0], [0], [1], [0, 0, 1, 1], [], []>} : vector<2x32xf32>, vector<32x96xf32>, vector<2x96xf32> -> vector<2x96xf32>
    %314 = vector.broadcast %7 : vector<1x96xf32> to vector<2x96xf32>
    %315 = arith.addf %313, %314 : vector<2x96xf32>
    %316 = vector.extract_strided_slice %312 {offsets = [0, 0], sizes = [2, 32], strides = [1, 1]} : vector<2x96xf32> to vector<2x32xf32>
    %317 = vector.extract_strided_slice %315 {offsets = [0, 0], sizes = [2, 32], strides = [1, 1]} : vector<2x96xf32> to vector<2x32xf32>
    %318 = arith.addf %316, %317 : vector<2x32xf32>
    %cst_104 = arith.constant 0.000000e+00 : f32
    %319 = vector.broadcast %cst_104 : f32 to vector<2x32xf32>
    %320 = arith.subf %319, %318 : vector<2x32xf32>
    %321 = math.exp %320 : vector<2x32xf32>
    %cst_105 = arith.constant 1.000000e+00 : f32
    %322 = vector.broadcast %cst_105 : f32 to vector<2x32xf32>
    %323 = arith.addf %322, %321 : vector<2x32xf32>
    %cst_106 = arith.constant 1.000000e+00 : f32
    %324 = vector.broadcast %cst_106 : f32 to vector<2x32xf32>
    %325 = arith.divf %324, %323 : vector<2x32xf32>
    %326 = vector.extract_strided_slice %312 {offsets = [0, 32], sizes = [2, 32], strides = [1, 1]} : vector<2x96xf32> to vector<2x32xf32>
    %327 = vector.extract_strided_slice %315 {offsets = [0, 32], sizes = [2, 32], strides = [1, 1]} : vector<2x96xf32> to vector<2x32xf32>
    %328 = arith.addf %326, %327 : vector<2x32xf32>
    %cst_107 = arith.constant 0.000000e+00 : f32
    %329 = vector.broadcast %cst_107 : f32 to vector<2x32xf32>
    %330 = arith.subf %329, %328 : vector<2x32xf32>
    %331 = math.exp %330 : vector<2x32xf32>
    %cst_108 = arith.constant 1.000000e+00 : f32
    %332 = vector.broadcast %cst_108 : f32 to vector<2x32xf32>
    %333 = arith.addf %332, %331 : vector<2x32xf32>
    %cst_109 = arith.constant 1.000000e+00 : f32
    %334 = vector.broadcast %cst_109 : f32 to vector<2x32xf32>
    %335 = arith.divf %334, %333 : vector<2x32xf32>
    %336 = vector.extract_strided_slice %312 {offsets = [0, 64], sizes = [2, 32], strides = [1, 1]} : vector<2x96xf32> to vector<2x32xf32>
    %337 = vector.extract_strided_slice %315 {offsets = [0, 64], sizes = [2, 32], strides = [1, 1]} : vector<2x96xf32> to vector<2x32xf32>
    %338 = arith.mulf %325, %337 : vector<2x32xf32>
    %339 = arith.addf %336, %338 : vector<2x32xf32>
    %340 = math.tanh %339 : vector<2x32xf32>
    %cst_110 = arith.constant 1.000000e+00 : f32
    %341 = vector.broadcast %cst_110 : f32 to vector<2x32xf32>
    %342 = arith.subf %341, %335 : vector<2x32xf32>
    %343 = arith.mulf %342, %340 : vector<2x32xf32>
    %344 = arith.mulf %335, %302 : vector<2x32xf32>
    %345 = arith.addf %343, %344 : vector<2x32xf32>
    %cst_111 = arith.constant dense<0.000000e+00> : vector<2x96xf32>
    %346 = tpu.matmul %345, %1, %cst_111 {dimension_numbers = #tpu.dot_dimension_numbers<[1], [0], [0], [1], [0, 0, 1, 1], [], []>} : vector<2x32xf32>, vector<32x96xf32>, vector<2x96xf32> -> vector<2x96xf32>
    %347 = vector.broadcast %3 : vector<1x96xf32> to vector<2x96xf32>
    %348 = arith.addf %346, %347 : vector<2x96xf32>
    %349 = arith.index_cast %c7_i32 : i32 to index
    %c0_112 = arith.constant 0 : index
    %c0_113 = arith.constant 0 : index
    %350 = vector.load %arg10[%349, %c0_112, %c0_113] : memref<8x2x96xf32, #tpu.memory_space<vmem>>, vector<1x2x96xf32>
    %351 = vector.shape_cast %350 : vector<1x2x96xf32> to vector<2x96xf32>
    %352 = vector.shape_cast %348 : vector<2x96xf32> to vector<1x2x96xf32>
    tpu.vector_store %arg10[%349, %c0_112, %c0_113], %352 {strides = array<i32>} : memref<8x2x96xf32, #tpu.memory_space<vmem>>, vector<1x2x96xf32>,
    %c8_i32 = arith.constant 8 : i32
    %c1_114 = arith.constant 1 : index
    %c0_115 = arith.constant 0 : index
    %c0_116 = arith.constant 0 : index
    %353 = vector.load %arg1[%c1_114, %c0_115, %c0_116] : memref<2x32x96xf32, #tpu.memory_space<vmem>>, vector<1x32x96xf32>
    %354 = vector.shape_cast %353 : vector<1x32x96xf32> to vector<32x96xf32>
    %c1_117 = arith.constant 1 : index
    %c0_118 = arith.constant 0 : index
    %c0_119 = arith.constant 0 : index
    %355 = vector.load %arg2[%c1_117, %c0_118, %c0_119] : memref<2x1x96xf32, #tpu.memory_space<vmem>>, vector<1x1x96xf32>
    %356 = vector.shape_cast %355 : vector<1x1x96xf32> to vector<1x96xf32>
    %cst_120 = arith.constant 0.000000e+00 : f32
    %357 = vector.broadcast %cst_120 : f32 to vector<2x32xf32>
    %c0_i32_121 = arith.constant 0 : i32
    %358 = arith.index_cast %c0_i32_121 : i32 to index
    %c0_122 = arith.constant 0 : index
    %c0_123 = arith.constant 0 : index
    %359 = vector.load %arg10[%358, %c0_122, %c0_123] : memref<8x2x96xf32, #tpu.memory_space<vmem>>, vector<1x2x96xf32>
    %360 = vector.shape_cast %359 : vector<1x2x96xf32> to vector<2x96xf32>
    %cst_124 = arith.constant dense<0.000000e+00> : vector<2x96xf32>
    %361 = tpu.matmul %357, %354, %cst_124 {dimension_numbers = #tpu.dot_dimension_numbers<[1], [0], [0], [1], [0, 0, 1, 1], [], []>} : vector<2x32xf32>, vector<32x96xf32>, vector<2x96xf32> -> vector<2x96xf32>
    %362 = vector.broadcast %356 : vector<1x96xf32> to vector<2x96xf32>
    %363 = arith.addf %361, %362 : vector<2x96xf32>
    %364 = vector.extract_strided_slice %360 {offsets = [0, 0], sizes = [2, 32], strides = [1, 1]} : vector<2x96xf32> to vector<2x32xf32>
    %365 = vector.extract_strided_slice %363 {offsets = [0, 0], sizes = [2, 32], strides = [1, 1]} : vector<2x96xf32> to vector<2x32xf32>
    %366 = arith.addf %364, %365 : vector<2x32xf32>
    %cst_125 = arith.constant 0.000000e+00 : f32
    %367 = vector.broadcast %cst_125 : f32 to vector<2x32xf32>
    %368 = arith.subf %367, %366 : vector<2x32xf32>
    %369 = math.exp %368 : vector<2x32xf32>
    %cst_126 = arith.constant 1.000000e+00 : f32
    %370 = vector.broadcast %cst_126 : f32 to vector<2x32xf32>
    %371 = arith.addf %370, %369 : vector<2x32xf32>
    %cst_127 = arith.constant 1.000000e+00 : f32
    %372 = vector.broadcast %cst_127 : f32 to vector<2x32xf32>
    %373 = arith.divf %372, %371 : vector<2x32xf32>
    %374 = vector.extract_strided_slice %360 {offsets = [0, 32], sizes = [2, 32], strides = [1, 1]} : vector<2x96xf32> to vector<2x32xf32>
    %375 = vector.extract_strided_slice %363 {offsets = [0, 32], sizes = [2, 32], strides = [1, 1]} : vector<2x96xf32> to vector<2x32xf32>
    %376 = arith.addf %374, %375 : vector<2x32xf32>
    %cst_128 = arith.constant 0.000000e+00 : f32
    %377 = vector.broadcast %cst_128 : f32 to vector<2x32xf32>
    %378 = arith.subf %377, %376 : vector<2x32xf32>
    %379 = math.exp %378 : vector<2x32xf32>
    %cst_129 = arith.constant 1.000000e+00 : f32
    %380 = vector.broadcast %cst_129 : f32 to vector<2x32xf32>
    %381 = arith.addf %380, %379 : vector<2x32xf32>
    %cst_130 = arith.constant 1.000000e+00 : f32
    %382 = vector.broadcast %cst_130 : f32 to vector<2x32xf32>
    %383 = arith.divf %382, %381 : vector<2x32xf32>
    %384 = vector.extract_strided_slice %360 {offsets = [0, 64], sizes = [2, 32], strides = [1, 1]} : vector<2x96xf32> to vector<2x32xf32>
    %385 = vector.extract_strided_slice %363 {offsets = [0, 64], sizes = [2, 32], strides = [1, 1]} : vector<2x96xf32> to vector<2x32xf32>
    %386 = arith.mulf %373, %385 : vector<2x32xf32>
    %387 = arith.addf %384, %386 : vector<2x32xf32>
    %388 = math.tanh %387 : vector<2x32xf32>
    %cst_131 = arith.constant 1.000000e+00 : f32
    %389 = vector.broadcast %cst_131 : f32 to vector<2x32xf32>
    %390 = arith.subf %389, %383 : vector<2x32xf32>
    %391 = arith.mulf %390, %388 : vector<2x32xf32>
    %392 = arith.mulf %383, %357 : vector<2x32xf32>
    %393 = arith.addf %391, %392 : vector<2x32xf32>
    %c1_i32_132 = arith.constant 1 : i32
    %394 = arith.index_cast %c1_i32_132 : i32 to index
    %c0_133 = arith.constant 0 : index
    %c0_134 = arith.constant 0 : index
    %395 = vector.load %arg10[%394, %c0_133, %c0_134] : memref<8x2x96xf32, #tpu.memory_space<vmem>>, vector<1x2x96xf32>
    %396 = vector.shape_cast %395 : vector<1x2x96xf32> to vector<2x96xf32>
    %cst_135 = arith.constant dense<0.000000e+00> : vector<2x96xf32>
    %397 = tpu.matmul %393, %354, %cst_135 {dimension_numbers = #tpu.dot_dimension_numbers<[1], [0], [0], [1], [0, 0, 1, 1], [], []>} : vector<2x32xf32>, vector<32x96xf32>, vector<2x96xf32> -> vector<2x96xf32>
    %398 = vector.broadcast %356 : vector<1x96xf32> to vector<2x96xf32>
    %399 = arith.addf %397, %398 : vector<2x96xf32>
    %400 = vector.extract_strided_slice %396 {offsets = [0, 0], sizes = [2, 32], strides = [1, 1]} : vector<2x96xf32> to vector<2x32xf32>
    %401 = vector.extract_strided_slice %399 {offsets = [0, 0], sizes = [2, 32], strides = [1, 1]} : vector<2x96xf32> to vector<2x32xf32>
    %402 = arith.addf %400, %401 : vector<2x32xf32>
    %cst_136 = arith.constant 0.000000e+00 : f32
    %403 = vector.broadcast %cst_136 : f32 to vector<2x32xf32>
    %404 = arith.subf %403, %402 : vector<2x32xf32>
    %405 = math.exp %404 : vector<2x32xf32>
    %cst_137 = arith.constant 1.000000e+00 : f32
    %406 = vector.broadcast %cst_137 : f32 to vector<2x32xf32>
    %407 = arith.addf %406, %405 : vector<2x32xf32>
    %cst_138 = arith.constant 1.000000e+00 : f32
    %408 = vector.broadcast %cst_138 : f32 to vector<2x32xf32>
    %409 = arith.divf %408, %407 : vector<2x32xf32>
    %410 = vector.extract_strided_slice %396 {offsets = [0, 32], sizes = [2, 32], strides = [1, 1]} : vector<2x96xf32> to vector<2x32xf32>
    %411 = vector.extract_strided_slice %399 {offsets = [0, 32], sizes = [2, 32], strides = [1, 1]} : vector<2x96xf32> to vector<2x32xf32>
    %412 = arith.addf %410, %411 : vector<2x32xf32>
    %cst_139 = arith.constant 0.000000e+00 : f32
    %413 = vector.broadcast %cst_139 : f32 to vector<2x32xf32>
    %414 = arith.subf %413, %412 : vector<2x32xf32>
    %415 = math.exp %414 : vector<2x32xf32>
    %cst_140 = arith.constant 1.000000e+00 : f32
    %416 = vector.broadcast %cst_140 : f32 to vector<2x32xf32>
    %417 = arith.addf %416, %415 : vector<2x32xf32>
    %cst_141 = arith.constant 1.000000e+00 : f32
    %418 = vector.broadcast %cst_141 : f32 to vector<2x32xf32>
    %419 = arith.divf %418, %417 : vector<2x32xf32>
    %420 = vector.extract_strided_slice %396 {offsets = [0, 64], sizes = [2, 32], strides = [1, 1]} : vector<2x96xf32> to vector<2x32xf32>
    %421 = vector.extract_strided_slice %399 {offsets = [0, 64], sizes = [2, 32], strides = [1, 1]} : vector<2x96xf32> to vector<2x32xf32>
    %422 = arith.mulf %409, %421 : vector<2x32xf32>
    %423 = arith.addf %420, %422 : vector<2x32xf32>
    %424 = math.tanh %423 : vector<2x32xf32>
    %cst_142 = arith.constant 1.000000e+00 : f32
    %425 = vector.broadcast %cst_142 : f32 to vector<2x32xf32>
    %426 = arith.subf %425, %419 : vector<2x32xf32>
    %427 = arith.mulf %426, %424 : vector<2x32xf32>
    %428 = arith.mulf %419, %393 : vector<2x32xf32>
    %429 = arith.addf %427, %428 : vector<2x32xf32>
    %c2_i32_143 = arith.constant 2 : i32
    %430 = arith.index_cast %c2_i32_143 : i32 to index
    %c0_144 = arith.constant 0 : index
    %c0_145 = arith.constant 0 : index
    %431 = vector.load %arg10[%430, %c0_144, %c0_145] : memref<8x2x96xf32, #tpu.memory_space<vmem>>, vector<1x2x96xf32>
    %432 = vector.shape_cast %431 : vector<1x2x96xf32> to vector<2x96xf32>
    %cst_146 = arith.constant dense<0.000000e+00> : vector<2x96xf32>
    %433 = tpu.matmul %429, %354, %cst_146 {dimension_numbers = #tpu.dot_dimension_numbers<[1], [0], [0], [1], [0, 0, 1, 1], [], []>} : vector<2x32xf32>, vector<32x96xf32>, vector<2x96xf32> -> vector<2x96xf32>
    %434 = vector.broadcast %356 : vector<1x96xf32> to vector<2x96xf32>
    %435 = arith.addf %433, %434 : vector<2x96xf32>
    %436 = vector.extract_strided_slice %432 {offsets = [0, 0], sizes = [2, 32], strides = [1, 1]} : vector<2x96xf32> to vector<2x32xf32>
    %437 = vector.extract_strided_slice %435 {offsets = [0, 0], sizes = [2, 32], strides = [1, 1]} : vector<2x96xf32> to vector<2x32xf32>
    %438 = arith.addf %436, %437 : vector<2x32xf32>
    %cst_147 = arith.constant 0.000000e+00 : f32
    %439 = vector.broadcast %cst_147 : f32 to vector<2x32xf32>
    %440 = arith.subf %439, %438 : vector<2x32xf32>
    %441 = math.exp %440 : vector<2x32xf32>
    %cst_148 = arith.constant 1.000000e+00 : f32
    %442 = vector.broadcast %cst_148 : f32 to vector<2x32xf32>
    %443 = arith.addf %442, %441 : vector<2x32xf32>
    %cst_149 = arith.constant 1.000000e+00 : f32
    %444 = vector.broadcast %cst_149 : f32 to vector<2x32xf32>
    %445 = arith.divf %444, %443 : vector<2x32xf32>
    %446 = vector.extract_strided_slice %432 {offsets = [0, 32], sizes = [2, 32], strides = [1, 1]} : vector<2x96xf32> to vector<2x32xf32>
    %447 = vector.extract_strided_slice %435 {offsets = [0, 32], sizes = [2, 32], strides = [1, 1]} : vector<2x96xf32> to vector<2x32xf32>
    %448 = arith.addf %446, %447 : vector<2x32xf32>
    %cst_150 = arith.constant 0.000000e+00 : f32
    %449 = vector.broadcast %cst_150 : f32 to vector<2x32xf32>
    %450 = arith.subf %449, %448 : vector<2x32xf32>
    %451 = math.exp %450 : vector<2x32xf32>
    %cst_151 = arith.constant 1.000000e+00 : f32
    %452 = vector.broadcast %cst_151 : f32 to vector<2x32xf32>
    %453 = arith.addf %452, %451 : vector<2x32xf32>
    %cst_152 = arith.constant 1.000000e+00 : f32
    %454 = vector.broadcast %cst_152 : f32 to vector<2x32xf32>
    %455 = arith.divf %454, %453 : vector<2x32xf32>
    %456 = vector.extract_strided_slice %432 {offsets = [0, 64], sizes = [2, 32], strides = [1, 1]} : vector<2x96xf32> to vector<2x32xf32>
    %457 = vector.extract_strided_slice %435 {offsets = [0, 64], sizes = [2, 32], strides = [1, 1]} : vector<2x96xf32> to vector<2x32xf32>
    %458 = arith.mulf %445, %457 : vector<2x32xf32>
    %459 = arith.addf %456, %458 : vector<2x32xf32>
    %460 = math.tanh %459 : vector<2x32xf32>
    %cst_153 = arith.constant 1.000000e+00 : f32
    %461 = vector.broadcast %cst_153 : f32 to vector<2x32xf32>
    %462 = arith.subf %461, %455 : vector<2x32xf32>
    %463 = arith.mulf %462, %460 : vector<2x32xf32>
    %464 = arith.mulf %455, %429 : vector<2x32xf32>
    %465 = arith.addf %463, %464 : vector<2x32xf32>
    %c3_i32_154 = arith.constant 3 : i32
    %466 = arith.index_cast %c3_i32_154 : i32 to index
    %c0_155 = arith.constant 0 : index
    %c0_156 = arith.constant 0 : index
    %467 = vector.load %arg10[%466, %c0_155, %c0_156] : memref<8x2x96xf32, #tpu.memory_space<vmem>>, vector<1x2x96xf32>
    %468 = vector.shape_cast %467 : vector<1x2x96xf32> to vector<2x96xf32>
    %cst_157 = arith.constant dense<0.000000e+00> : vector<2x96xf32>
    %469 = tpu.matmul %465, %354, %cst_157 {dimension_numbers = #tpu.dot_dimension_numbers<[1], [0], [0], [1], [0, 0, 1, 1], [], []>} : vector<2x32xf32>, vector<32x96xf32>, vector<2x96xf32> -> vector<2x96xf32>
    %470 = vector.broadcast %356 : vector<1x96xf32> to vector<2x96xf32>
    %471 = arith.addf %469, %470 : vector<2x96xf32>
    %472 = vector.extract_strided_slice %468 {offsets = [0, 0], sizes = [2, 32], strides = [1, 1]} : vector<2x96xf32> to vector<2x32xf32>
    %473 = vector.extract_strided_slice %471 {offsets = [0, 0], sizes = [2, 32], strides = [1, 1]} : vector<2x96xf32> to vector<2x32xf32>
    %474 = arith.addf %472, %473 : vector<2x32xf32>
    %cst_158 = arith.constant 0.000000e+00 : f32
    %475 = vector.broadcast %cst_158 : f32 to vector<2x32xf32>
    %476 = arith.subf %475, %474 : vector<2x32xf32>
    %477 = math.exp %476 : vector<2x32xf32>
    %cst_159 = arith.constant 1.000000e+00 : f32
    %478 = vector.broadcast %cst_159 : f32 to vector<2x32xf32>
    %479 = arith.addf %478, %477 : vector<2x32xf32>
    %cst_160 = arith.constant 1.000000e+00 : f32
    %480 = vector.broadcast %cst_160 : f32 to vector<2x32xf32>
    %481 = arith.divf %480, %479 : vector<2x32xf32>
    %482 = vector.extract_strided_slice %468 {offsets = [0, 32], sizes = [2, 32], strides = [1, 1]} : vector<2x96xf32> to vector<2x32xf32>
    %483 = vector.extract_strided_slice %471 {offsets = [0, 32], sizes = [2, 32], strides = [1, 1]} : vector<2x96xf32> to vector<2x32xf32>
    %484 = arith.addf %482, %483 : vector<2x32xf32>
    %cst_161 = arith.constant 0.000000e+00 : f32
    %485 = vector.broadcast %cst_161 : f32 to vector<2x32xf32>
    %486 = arith.subf %485, %484 : vector<2x32xf32>
    %487 = math.exp %486 : vector<2x32xf32>
    %cst_162 = arith.constant 1.000000e+00 : f32
    %488 = vector.broadcast %cst_162 : f32 to vector<2x32xf32>
    %489 = arith.addf %488, %487 : vector<2x32xf32>
    %cst_163 = arith.constant 1.000000e+00 : f32
    %490 = vector.broadcast %cst_163 : f32 to vector<2x32xf32>
    %491 = arith.divf %490, %489 : vector<2x32xf32>
    %492 = vector.extract_strided_slice %468 {offsets = [0, 64], sizes = [2, 32], strides = [1, 1]} : vector<2x96xf32> to vector<2x32xf32>
    %493 = vector.extract_strided_slice %471 {offsets = [0, 64], sizes = [2, 32], strides = [1, 1]} : vector<2x96xf32> to vector<2x32xf32>
    %494 = arith.mulf %481, %493 : vector<2x32xf32>
    %495 = arith.addf %492, %494 : vector<2x32xf32>
    %496 = math.tanh %495 : vector<2x32xf32>
    %cst_164 = arith.constant 1.000000e+00 : f32
    %497 = vector.broadcast %cst_164 : f32 to vector<2x32xf32>
    %498 = arith.subf %497, %491 : vector<2x32xf32>
    %499 = arith.mulf %498, %496 : vector<2x32xf32>
    %500 = arith.mulf %491, %465 : vector<2x32xf32>
    %501 = arith.addf %499, %500 : vector<2x32xf32>
    %c4_i32_165 = arith.constant 4 : i32
    %502 = arith.index_cast %c4_i32_165 : i32 to index
    %c0_166 = arith.constant 0 : index
    %c0_167 = arith.constant 0 : index
    %503 = vector.load %arg10[%502, %c0_166, %c0_167] : memref<8x2x96xf32, #tpu.memory_space<vmem>>, vector<1x2x96xf32>
    %504 = vector.shape_cast %503 : vector<1x2x96xf32> to vector<2x96xf32>
    %cst_168 = arith.constant dense<0.000000e+00> : vector<2x96xf32>
    %505 = tpu.matmul %501, %354, %cst_168 {dimension_numbers = #tpu.dot_dimension_numbers<[1], [0], [0], [1], [0, 0, 1, 1], [], []>} : vector<2x32xf32>, vector<32x96xf32>, vector<2x96xf32> -> vector<2x96xf32>
    %506 = vector.broadcast %356 : vector<1x96xf32> to vector<2x96xf32>
    %507 = arith.addf %505, %506 : vector<2x96xf32>
    %508 = vector.extract_strided_slice %504 {offsets = [0, 0], sizes = [2, 32], strides = [1, 1]} : vector<2x96xf32> to vector<2x32xf32>
    %509 = vector.extract_strided_slice %507 {offsets = [0, 0], sizes = [2, 32], strides = [1, 1]} : vector<2x96xf32> to vector<2x32xf32>
    %510 = arith.addf %508, %509 : vector<2x32xf32>
    %cst_169 = arith.constant 0.000000e+00 : f32
    %511 = vector.broadcast %cst_169 : f32 to vector<2x32xf32>
    %512 = arith.subf %511, %510 : vector<2x32xf32>
    %513 = math.exp %512 : vector<2x32xf32>
    %cst_170 = arith.constant 1.000000e+00 : f32
    %514 = vector.broadcast %cst_170 : f32 to vector<2x32xf32>
    %515 = arith.addf %514, %513 : vector<2x32xf32>
    %cst_171 = arith.constant 1.000000e+00 : f32
    %516 = vector.broadcast %cst_171 : f32 to vector<2x32xf32>
    %517 = arith.divf %516, %515 : vector<2x32xf32>
    %518 = vector.extract_strided_slice %504 {offsets = [0, 32], sizes = [2, 32], strides = [1, 1]} : vector<2x96xf32> to vector<2x32xf32>
    %519 = vector.extract_strided_slice %507 {offsets = [0, 32], sizes = [2, 32], strides = [1, 1]} : vector<2x96xf32> to vector<2x32xf32>
    %520 = arith.addf %518, %519 : vector<2x32xf32>
    %cst_172 = arith.constant 0.000000e+00 : f32
    %521 = vector.broadcast %cst_172 : f32 to vector<2x32xf32>
    %522 = arith.subf %521, %520 : vector<2x32xf32>
    %523 = math.exp %522 : vector<2x32xf32>
    %cst_173 = arith.constant 1.000000e+00 : f32
    %524 = vector.broadcast %cst_173 : f32 to vector<2x32xf32>
    %525 = arith.addf %524, %523 : vector<2x32xf32>
    %cst_174 = arith.constant 1.000000e+00 : f32
    %526 = vector.broadcast %cst_174 : f32 to vector<2x32xf32>
    %527 = arith.divf %526, %525 : vector<2x32xf32>
    %528 = vector.extract_strided_slice %504 {offsets = [0, 64], sizes = [2, 32], strides = [1, 1]} : vector<2x96xf32> to vector<2x32xf32>
    %529 = vector.extract_strided_slice %507 {offsets = [0, 64], sizes = [2, 32], strides = [1, 1]} : vector<2x96xf32> to vector<2x32xf32>
    %530 = arith.mulf %517, %529 : vector<2x32xf32>
    %531 = arith.addf %528, %530 : vector<2x32xf32>
    %532 = math.tanh %531 : vector<2x32xf32>
    %cst_175 = arith.constant 1.000000e+00 : f32
    %533 = vector.broadcast %cst_175 : f32 to vector<2x32xf32>
    %534 = arith.subf %533, %527 : vector<2x32xf32>
    %535 = arith.mulf %534, %532 : vector<2x32xf32>
    %536 = arith.mulf %527, %501 : vector<2x32xf32>
    %537 = arith.addf %535, %536 : vector<2x32xf32>
    %c5_i32_176 = arith.constant 5 : i32
    %538 = arith.index_cast %c5_i32_176 : i32 to index
    %c0_177 = arith.constant 0 : index
    %c0_178 = arith.constant 0 : index
    %539 = vector.load %arg10[%538, %c0_177, %c0_178] : memref<8x2x96xf32, #tpu.memory_space<vmem>>, vector<1x2x96xf32>
    %540 = vector.shape_cast %539 : vector<1x2x96xf32> to vector<2x96xf32>
    %cst_179 = arith.constant dense<0.000000e+00> : vector<2x96xf32>
    %541 = tpu.matmul %537, %354, %cst_179 {dimension_numbers = #tpu.dot_dimension_numbers<[1], [0], [0], [1], [0, 0, 1, 1], [], []>} : vector<2x32xf32>, vector<32x96xf32>, vector<2x96xf32> -> vector<2x96xf32>
    %542 = vector.broadcast %356 : vector<1x96xf32> to vector<2x96xf32>
    %543 = arith.addf %541, %542 : vector<2x96xf32>
    %544 = vector.extract_strided_slice %540 {offsets = [0, 0], sizes = [2, 32], strides = [1, 1]} : vector<2x96xf32> to vector<2x32xf32>
    %545 = vector.extract_strided_slice %543 {offsets = [0, 0], sizes = [2, 32], strides = [1, 1]} : vector<2x96xf32> to vector<2x32xf32>
    %546 = arith.addf %544, %545 : vector<2x32xf32>
    %cst_180 = arith.constant 0.000000e+00 : f32
    %547 = vector.broadcast %cst_180 : f32 to vector<2x32xf32>
    %548 = arith.subf %547, %546 : vector<2x32xf32>
    %549 = math.exp %548 : vector<2x32xf32>
    %cst_181 = arith.constant 1.000000e+00 : f32
    %550 = vector.broadcast %cst_181 : f32 to vector<2x32xf32>
    %551 = arith.addf %550, %549 : vector<2x32xf32>
    %cst_182 = arith.constant 1.000000e+00 : f32
    %552 = vector.broadcast %cst_182 : f32 to vector<2x32xf32>
    %553 = arith.divf %552, %551 : vector<2x32xf32>
    %554 = vector.extract_strided_slice %540 {offsets = [0, 32], sizes = [2, 32], strides = [1, 1]} : vector<2x96xf32> to vector<2x32xf32>
    %555 = vector.extract_strided_slice %543 {offsets = [0, 32], sizes = [2, 32], strides = [1, 1]} : vector<2x96xf32> to vector<2x32xf32>
    %556 = arith.addf %554, %555 : vector<2x32xf32>
    %cst_183 = arith.constant 0.000000e+00 : f32
    %557 = vector.broadcast %cst_183 : f32 to vector<2x32xf32>
    %558 = arith.subf %557, %556 : vector<2x32xf32>
    %559 = math.exp %558 : vector<2x32xf32>
    %cst_184 = arith.constant 1.000000e+00 : f32
    %560 = vector.broadcast %cst_184 : f32 to vector<2x32xf32>
    %561 = arith.addf %560, %559 : vector<2x32xf32>
    %cst_185 = arith.constant 1.000000e+00 : f32
    %562 = vector.broadcast %cst_185 : f32 to vector<2x32xf32>
    %563 = arith.divf %562, %561 : vector<2x32xf32>
    %564 = vector.extract_strided_slice %540 {offsets = [0, 64], sizes = [2, 32], strides = [1, 1]} : vector<2x96xf32> to vector<2x32xf32>
    %565 = vector.extract_strided_slice %543 {offsets = [0, 64], sizes = [2, 32], strides = [1, 1]} : vector<2x96xf32> to vector<2x32xf32>
    %566 = arith.mulf %553, %565 : vector<2x32xf32>
    %567 = arith.addf %564, %566 : vector<2x32xf32>
    %568 = math.tanh %567 : vector<2x32xf32>
    %cst_186 = arith.constant 1.000000e+00 : f32
    %569 = vector.broadcast %cst_186 : f32 to vector<2x32xf32>
    %570 = arith.subf %569, %563 : vector<2x32xf32>
    %571 = arith.mulf %570, %568 : vector<2x32xf32>
    %572 = arith.mulf %563, %537 : vector<2x32xf32>
    %573 = arith.addf %571, %572 : vector<2x32xf32>
    %c6_i32_187 = arith.constant 6 : i32
    %574 = arith.index_cast %c6_i32_187 : i32 to index
    %c0_188 = arith.constant 0 : index
    %c0_189 = arith.constant 0 : index
    %575 = vector.load %arg10[%574, %c0_188, %c0_189] : memref<8x2x96xf32, #tpu.memory_space<vmem>>, vector<1x2x96xf32>
    %576 = vector.shape_cast %575 : vector<1x2x96xf32> to vector<2x96xf32>
    %cst_190 = arith.constant dense<0.000000e+00> : vector<2x96xf32>
    %577 = tpu.matmul %573, %354, %cst_190 {dimension_numbers = #tpu.dot_dimension_numbers<[1], [0], [0], [1], [0, 0, 1, 1], [], []>} : vector<2x32xf32>, vector<32x96xf32>, vector<2x96xf32> -> vector<2x96xf32>
    %578 = vector.broadcast %356 : vector<1x96xf32> to vector<2x96xf32>
    %579 = arith.addf %577, %578 : vector<2x96xf32>
    %580 = vector.extract_strided_slice %576 {offsets = [0, 0], sizes = [2, 32], strides = [1, 1]} : vector<2x96xf32> to vector<2x32xf32>
    %581 = vector.extract_strided_slice %579 {offsets = [0, 0], sizes = [2, 32], strides = [1, 1]} : vector<2x96xf32> to vector<2x32xf32>
    %582 = arith.addf %580, %581 : vector<2x32xf32>
    %cst_191 = arith.constant 0.000000e+00 : f32
    %583 = vector.broadcast %cst_191 : f32 to vector<2x32xf32>
    %584 = arith.subf %583, %582 : vector<2x32xf32>
    %585 = math.exp %584 : vector<2x32xf32>
    %cst_192 = arith.constant 1.000000e+00 : f32
    %586 = vector.broadcast %cst_192 : f32 to vector<2x32xf32>
    %587 = arith.addf %586, %585 : vector<2x32xf32>
    %cst_193 = arith.constant 1.000000e+00 : f32
    %588 = vector.broadcast %cst_193 : f32 to vector<2x32xf32>
    %589 = arith.divf %588, %587 : vector<2x32xf32>
    %590 = vector.extract_strided_slice %576 {offsets = [0, 32], sizes = [2, 32], strides = [1, 1]} : vector<2x96xf32> to vector<2x32xf32>
    %591 = vector.extract_strided_slice %579 {offsets = [0, 32], sizes = [2, 32], strides = [1, 1]} : vector<2x96xf32> to vector<2x32xf32>
    %592 = arith.addf %590, %591 : vector<2x32xf32>
    %cst_194 = arith.constant 0.000000e+00 : f32
    %593 = vector.broadcast %cst_194 : f32 to vector<2x32xf32>
    %594 = arith.subf %593, %592 : vector<2x32xf32>
    %595 = math.exp %594 : vector<2x32xf32>
    %cst_195 = arith.constant 1.000000e+00 : f32
    %596 = vector.broadcast %cst_195 : f32 to vector<2x32xf32>
    %597 = arith.addf %596, %595 : vector<2x32xf32>
    %cst_196 = arith.constant 1.000000e+00 : f32
    %598 = vector.broadcast %cst_196 : f32 to vector<2x32xf32>
    %599 = arith.divf %598, %597 : vector<2x32xf32>
    %600 = vector.extract_strided_slice %576 {offsets = [0, 64], sizes = [2, 32], strides = [1, 1]} : vector<2x96xf32> to vector<2x32xf32>
    %601 = vector.extract_strided_slice %579 {offsets = [0, 64], sizes = [2, 32], strides = [1, 1]} : vector<2x96xf32> to vector<2x32xf32>
    %602 = arith.mulf %589, %601 : vector<2x32xf32>
    %603 = arith.addf %600, %602 : vector<2x32xf32>
    %604 = math.tanh %603 : vector<2x32xf32>
    %cst_197 = arith.constant 1.000000e+00 : f32
    %605 = vector.broadcast %cst_197 : f32 to vector<2x32xf32>
    %606 = arith.subf %605, %599 : vector<2x32xf32>
    %607 = arith.mulf %606, %604 : vector<2x32xf32>
    %608 = arith.mulf %599, %573 : vector<2x32xf32>
    %609 = arith.addf %607, %608 : vector<2x32xf32>
    %c7_i32_198 = arith.constant 7 : i32
    %610 = arith.index_cast %c7_i32_198 : i32 to index
    %c0_199 = arith.constant 0 : index
    %c0_200 = arith.constant 0 : index
    %611 = vector.load %arg10[%610, %c0_199, %c0_200] : memref<8x2x96xf32, #tpu.memory_space<vmem>>, vector<1x2x96xf32>
    %612 = vector.shape_cast %611 : vector<1x2x96xf32> to vector<2x96xf32>
    %cst_201 = arith.constant dense<0.000000e+00> : vector<2x96xf32>
    %613 = tpu.matmul %609, %354, %cst_201 {dimension_numbers = #tpu.dot_dimension_numbers<[1], [0], [0], [1], [0, 0, 1, 1], [], []>} : vector<2x32xf32>, vector<32x96xf32>, vector<2x96xf32> -> vector<2x96xf32>
    %614 = vector.broadcast %356 : vector<1x96xf32> to vector<2x96xf32>
    %615 = arith.addf %613, %614 : vector<2x96xf32>
    %616 = vector.extract_strided_slice %612 {offsets = [0, 0], sizes = [2, 32], strides = [1, 1]} : vector<2x96xf32> to vector<2x32xf32>
    %617 = vector.extract_strided_slice %615 {offsets = [0, 0], sizes = [2, 32], strides = [1, 1]} : vector<2x96xf32> to vector<2x32xf32>
    %618 = arith.addf %616, %617 : vector<2x32xf32>
    %cst_202 = arith.constant 0.000000e+00 : f32
    %619 = vector.broadcast %cst_202 : f32 to vector<2x32xf32>
    %620 = arith.subf %619, %618 : vector<2x32xf32>
    %621 = math.exp %620 : vector<2x32xf32>
    %cst_203 = arith.constant 1.000000e+00 : f32
    %622 = vector.broadcast %cst_203 : f32 to vector<2x32xf32>
    %623 = arith.addf %622, %621 : vector<2x32xf32>
    %cst_204 = arith.constant 1.000000e+00 : f32
    %624 = vector.broadcast %cst_204 : f32 to vector<2x32xf32>
    %625 = arith.divf %624, %623 : vector<2x32xf32>
    %626 = vector.extract_strided_slice %612 {offsets = [0, 32], sizes = [2, 32], strides = [1, 1]} : vector<2x96xf32> to vector<2x32xf32>
    %627 = vector.extract_strided_slice %615 {offsets = [0, 32], sizes = [2, 32], strides = [1, 1]} : vector<2x96xf32> to vector<2x32xf32>
    %628 = arith.addf %626, %627 : vector<2x32xf32>
    %cst_205 = arith.constant 0.000000e+00 : f32
    %629 = vector.broadcast %cst_205 : f32 to vector<2x32xf32>
    %630 = arith.subf %629, %628 : vector<2x32xf32>
    %631 = math.exp %630 : vector<2x32xf32>
    %cst_206 = arith.constant 1.000000e+00 : f32
    %632 = vector.broadcast %cst_206 : f32 to vector<2x32xf32>
    %633 = arith.addf %632, %631 : vector<2x32xf32>
    %cst_207 = arith.constant 1.000000e+00 : f32
    %634 = vector.broadcast %cst_207 : f32 to vector<2x32xf32>
    %635 = arith.divf %634, %633 : vector<2x32xf32>
    %636 = vector.extract_strided_slice %612 {offsets = [0, 64], sizes = [2, 32], strides = [1, 1]} : vector<2x96xf32> to vector<2x32xf32>
    %637 = vector.extract_strided_slice %615 {offsets = [0, 64], sizes = [2, 32], strides = [1, 1]} : vector<2x96xf32> to vector<2x32xf32>
    %638 = arith.mulf %625, %637 : vector<2x32xf32>
    %639 = arith.addf %636, %638 : vector<2x32xf32>
    %640 = math.tanh %639 : vector<2x32xf32>
    %cst_208 = arith.constant 1.000000e+00 : f32
    %641 = vector.broadcast %cst_208 : f32 to vector<2x32xf32>
    %642 = arith.subf %641, %635 : vector<2x32xf32>
    %643 = arith.mulf %642, %640 : vector<2x32xf32>
    %644 = arith.mulf %635, %609 : vector<2x32xf32>
    %645 = arith.addf %643, %644 : vector<2x32xf32>
    %c8_i32_209 = arith.constant 8 : i32
    %646 = math.tanh %645 : vector<2x32xf32>
    %c0_210 = arith.constant 0 : index
    %c0_211 = arith.constant 0 : index
    %647 = vector.load %arg5[%c0_210, %c0_211] : memref<32x32xf32, #tpu.memory_space<vmem>>, vector<32x32xf32>
    %cst_212 = arith.constant dense<0.000000e+00> : vector<2x32xf32>
    %648 = tpu.matmul %646, %647, %cst_212 {dimension_numbers = #tpu.dot_dimension_numbers<[1], [0], [0], [1], [0, 0, 1, 1], [], []>} : vector<2x32xf32>, vector<32x32xf32>, vector<2x32xf32> -> vector<2x32xf32>
    %c0_213 = arith.constant 0 : index
    %c0_214 = arith.constant 0 : index
    %649 = vector.load %arg6[%c0_213, %c0_214] : memref<1x32xf32, #tpu.memory_space<vmem>>, vector<1x32xf32>
    %650 = vector.broadcast %649 : vector<1x32xf32> to vector<2x32xf32>
    %651 = arith.addf %648, %650 : vector<2x32xf32>
    %cst_215 = arith.constant 0.000000e+00 : f32
    %652 = vector.broadcast %cst_215 : f32 to vector<2x32xf32>
    %653 = arith.maximumf %651, %652 : vector<2x32xf32>
    %c0_216 = arith.constant 0 : index
    %c0_217 = arith.constant 0 : index
    %654 = vector.load %arg7[%c0_216, %c0_217] : memref<32x5xf32, #tpu.memory_space<vmem>>, vector<32x5xf32>
    %cst_218 = arith.constant dense<0.000000e+00> : vector<2x5xf32>
    %655 = tpu.matmul %653, %654, %cst_218 {dimension_numbers = #tpu.dot_dimension_numbers<[1], [0], [0], [1], [0, 0, 1, 1], [], []>} : vector<2x32xf32>, vector<32x5xf32>, vector<2x5xf32> -> vector<2x5xf32>
    %c0_219 = arith.constant 0 : index
    %c0_220 = arith.constant 0 : index
    %656 = vector.load %arg8[%c0_219, %c0_220] : memref<1x5xf32, #tpu.memory_space<vmem>>, vector<1x5xf32>
    %657 = vector.broadcast %656 : vector<1x5xf32> to vector<2x5xf32>
    %658 = arith.addf %655, %657 : vector<2x5xf32>
    %c0_221 = arith.constant 0 : index
    %c0_222 = arith.constant 0 : index
    %659 = vector.load %arg9[%c0_221, %c0_222] : memref<2x5xf32, #tpu.memory_space<vmem>>, vector<2x5xf32>
    tpu.vector_store %arg9[%c0_221, %c0_222], %658 {strides = array<i32>} : memref<2x5xf32, #tpu.memory_space<vmem>>, vector<2x5xf32>,
    return
  }
}

module attributes {stable_mosaic.version = 11 : i64} {
  func.func @_cnn_kernel(%arg0: i32, %arg1: memref<1x16x30xbf16, #tpu.memory_space<vmem>>, %arg2: memref<30x192xbf16, #tpu.memory_space<vmem>>, %arg3: memref<1x192xf32, #tpu.memory_space<vmem>>, %arg4: memref<3x192x192xbf16, #tpu.memory_space<vmem>>, %arg5: memref<1x192xf32, #tpu.memory_space<vmem>>, %arg6: memref<5x192x192xbf16, #tpu.memory_space<vmem>>, %arg7: memref<1x192xf32, #tpu.memory_space<vmem>>, %arg8: memref<3x192x192xbf16, #tpu.memory_space<vmem>>, %arg9: memref<1x192xf32, #tpu.memory_space<vmem>>, %arg10: memref<192x96xf32, #tpu.memory_space<vmem>>, %arg11: memref<1x96xf32, #tpu.memory_space<vmem>>, %arg12: memref<1x8x96xf32, #tpu.memory_space<vmem>>, %arg13: memref<12x192xf32, #tpu.memory_space<vmem>>, %arg14: memref<10x192xf32, #tpu.memory_space<vmem>>) attributes {dimension_semantics = [#tpu.dimension_semantics<parallel>], iteration_bounds = array<i64: 2>, scalar_prefetch = 0 : i64, scratch_operands = 2 : i64, tpu.core_type = #tpu.core_type<tc>, window_params = [{transform_indices = @transform_0, window_bounds = array<i64: 1, 16, 30>}, {pipeline_mode = #tpu.pipeline_mode<synchronous>, transform_indices = @transform_1, window_bounds = array<i64: 30, 192>}, {pipeline_mode = #tpu.pipeline_mode<synchronous>, transform_indices = @transform_2, window_bounds = array<i64: 1, 192>}, {pipeline_mode = #tpu.pipeline_mode<synchronous>, transform_indices = @transform_3, window_bounds = array<i64: 3, 192, 192>}, {pipeline_mode = #tpu.pipeline_mode<synchronous>, transform_indices = @transform_4, window_bounds = array<i64: 1, 192>}, {pipeline_mode = #tpu.pipeline_mode<synchronous>, transform_indices = @transform_5, window_bounds = array<i64: 5, 192, 192>}, {pipeline_mode = #tpu.pipeline_mode<synchronous>, transform_indices = @transform_6, window_bounds = array<i64: 1, 192>}, {pipeline_mode = #tpu.pipeline_mode<synchronous>, transform_indices = @transform_7, window_bounds = array<i64: 3, 192, 192>}, {pipeline_mode = #tpu.pipeline_mode<synchronous>, transform_indices = @transform_8, window_bounds = array<i64: 1, 192>}, {pipeline_mode = #tpu.pipeline_mode<synchronous>, transform_indices = @transform_9, window_bounds = array<i64: 192, 96>}, {pipeline_mode = #tpu.pipeline_mode<synchronous>, transform_indices = @transform_10, window_bounds = array<i64: 1, 96>}, {transform_indices = @transform_11, window_bounds = array<i64: 1, 8, 96>}]} {
    %c0 = arith.constant 0 : index
    %c0_0 = arith.constant 0 : index
    %c0_1 = arith.constant 0 : index
    %0 = vector.load %arg1[%c0, %c0_0, %c0_1] : memref<1x16x30xbf16, #tpu.memory_space<vmem>>, vector<1x16x30xbf16>
    %1 = vector.shape_cast %0 : vector<1x16x30xbf16> to vector<16x30xbf16>
    %c0_2 = arith.constant 0 : index
    %c0_3 = arith.constant 0 : index
    %2 = vector.load %arg2[%c0_2, %c0_3] : memref<30x192xbf16, #tpu.memory_space<vmem>>, vector<30x192xbf16>
    %cst = arith.constant dense<0.000000e+00> : vector<16x192xf32>
    %3 = tpu.matmul %1, %2, %cst {dimension_numbers = #tpu.dot_dimension_numbers<[1], [0], [0], [1], [0, 0, 1, 1], [], []>} : vector<16x30xbf16>, vector<30x192xbf16>, vector<16x192xf32> -> vector<16x192xf32>
    %c0_4 = arith.constant 0 : index
    %c0_5 = arith.constant 0 : index
    %4 = vector.load %arg3[%c0_4, %c0_5] : memref<1x192xf32, #tpu.memory_space<vmem>>, vector<1x192xf32>
    %5 = vector.broadcast %4 : vector<1x192xf32> to vector<16x192xf32>
    %6 = arith.addf %3, %5 : vector<16x192xf32>
    %7 = vector.extract_strided_slice %6 {offsets = [0, 0], sizes = [8, 192], strides = [1, 1]} : vector<16x192xf32> to vector<8x192xf32>
    %8 = vector.extract_strided_slice %6 {offsets = [8, 0], sizes = [8, 192], strides = [1, 1]} : vector<16x192xf32> to vector<8x192xf32>
    %9 = arith.maximumf %7, %8 : vector<8x192xf32>
    %cst_6 = arith.constant 0.000000e+00 : f32
    %10 = vector.broadcast %cst_6 : f32 to vector<8x192xf32>
    %11 = arith.maximumf %9, %10 : vector<8x192xf32>
    %cst_7 = arith.constant 0.000000e+00 : f32
    %12 = vector.broadcast %cst_7 : f32 to vector<1x192xf32>
    %c0_8 = arith.constant 0 : index
    %c0_9 = arith.constant 0 : index
    %13 = vector.load %arg14[%c0_8, %c0_9] : memref<10x192xf32, #tpu.memory_space<vmem>>, vector<1x192xf32>
    tpu.vector_store %arg14[%c0_8, %c0_9], %12 {strides = array<i32>} : memref<10x192xf32, #tpu.memory_space<vmem>>, vector<1x192xf32>,
    %c9 = arith.constant 9 : index
    %c0_10 = arith.constant 0 : index
    %14 = vector.load %arg14[%c9, %c0_10] : memref<10x192xf32, #tpu.memory_space<vmem>>, vector<1x192xf32>
    tpu.vector_store %arg14[%c9, %c0_10], %12 {strides = array<i32>} : memref<10x192xf32, #tpu.memory_space<vmem>>, vector<1x192xf32>,
    %c1 = arith.constant 1 : index
    %c0_11 = arith.constant 0 : index
    %15 = vector.load %arg14[%c1, %c0_11] : memref<10x192xf32, #tpu.memory_space<vmem>>, vector<8x192xf32>
    tpu.vector_store %arg14[%c1, %c0_11], %11 {strides = array<i32>} : memref<10x192xf32, #tpu.memory_space<vmem>>, vector<8x192xf32>,
    %c0_12 = arith.constant 0 : index
    %c0_13 = arith.constant 0 : index
    %16 = vector.load %arg5[%c0_12, %c0_13] : memref<1x192xf32, #tpu.memory_space<vmem>>, vector<1x192xf32>
    %c0_14 = arith.constant 0 : index
    %c0_15 = arith.constant 0 : index
    %17 = vector.load %arg14[%c0_14, %c0_15] : memref<10x192xf32, #tpu.memory_space<vmem>>, vector<8x192xf32>
    %18 = arith.truncf %17 : vector<8x192xf32> to vector<8x192xbf16>
    %c0_16 = arith.constant 0 : index
    %c0_17 = arith.constant 0 : index
    %c0_18 = arith.constant 0 : index
    %19 = vector.load %arg4[%c0_16, %c0_17, %c0_18] : memref<3x192x192xbf16, #tpu.memory_space<vmem>>, vector<1x192x192xbf16>
    %20 = vector.shape_cast %19 : vector<1x192x192xbf16> to vector<192x192xbf16>
    %cst_19 = arith.constant dense<0.000000e+00> : vector<8x192xf32>
    %21 = tpu.matmul %18, %20, %cst_19 {dimension_numbers = #tpu.dot_dimension_numbers<[1], [0], [0], [1], [0, 0, 1, 1], [], []>} : vector<8x192xbf16>, vector<192x192xbf16>, vector<8x192xf32> -> vector<8x192xf32>
    %22 = vector.broadcast %16 : vector<1x192xf32> to vector<8x192xf32>
    %23 = arith.addf %22, %21 : vector<8x192xf32>
    %c1_20 = arith.constant 1 : index
    %c0_21 = arith.constant 0 : index
    %24 = vector.load %arg14[%c1_20, %c0_21] : memref<10x192xf32, #tpu.memory_space<vmem>>, vector<8x192xf32>
    %25 = arith.truncf %24 : vector<8x192xf32> to vector<8x192xbf16>
    %c1_22 = arith.constant 1 : index
    %c0_23 = arith.constant 0 : index
    %c0_24 = arith.constant 0 : index
    %26 = vector.load %arg4[%c1_22, %c0_23, %c0_24] : memref<3x192x192xbf16, #tpu.memory_space<vmem>>, vector<1x192x192xbf16>
    %27 = vector.shape_cast %26 : vector<1x192x192xbf16> to vector<192x192xbf16>
    %cst_25 = arith.constant dense<0.000000e+00> : vector<8x192xf32>
    %28 = tpu.matmul %25, %27, %cst_25 {dimension_numbers = #tpu.dot_dimension_numbers<[1], [0], [0], [1], [0, 0, 1, 1], [], []>} : vector<8x192xbf16>, vector<192x192xbf16>, vector<8x192xf32> -> vector<8x192xf32>
    %29 = arith.addf %23, %28 : vector<8x192xf32>
    %c2 = arith.constant 2 : index
    %c0_26 = arith.constant 0 : index
    %30 = vector.load %arg14[%c2, %c0_26] : memref<10x192xf32, #tpu.memory_space<vmem>>, vector<8x192xf32>
    %31 = arith.truncf %30 : vector<8x192xf32> to vector<8x192xbf16>
    %c2_27 = arith.constant 2 : index
    %c0_28 = arith.constant 0 : index
    %c0_29 = arith.constant 0 : index
    %32 = vector.load %arg4[%c2_27, %c0_28, %c0_29] : memref<3x192x192xbf16, #tpu.memory_space<vmem>>, vector<1x192x192xbf16>
    %33 = vector.shape_cast %32 : vector<1x192x192xbf16> to vector<192x192xbf16>
    %cst_30 = arith.constant dense<0.000000e+00> : vector<8x192xf32>
    %34 = tpu.matmul %31, %33, %cst_30 {dimension_numbers = #tpu.dot_dimension_numbers<[1], [0], [0], [1], [0, 0, 1, 1], [], []>} : vector<8x192xbf16>, vector<192x192xbf16>, vector<8x192xf32> -> vector<8x192xf32>
    %35 = arith.addf %29, %34 : vector<8x192xf32>
    %cst_31 = arith.constant 0.000000e+00 : f32
    %36 = vector.broadcast %cst_31 : f32 to vector<8x192xf32>
    %37 = arith.maximumf %35, %36 : vector<8x192xf32>
    %cst_32 = arith.constant 0.000000e+00 : f32
    %38 = vector.broadcast %cst_32 : f32 to vector<2x192xf32>
    %c0_33 = arith.constant 0 : index
    %c0_34 = arith.constant 0 : index
    %39 = vector.load %arg13[%c0_33, %c0_34] : memref<12x192xf32, #tpu.memory_space<vmem>>, vector<2x192xf32>
    tpu.vector_store %arg13[%c0_33, %c0_34], %38 {strides = array<i32>} : memref<12x192xf32, #tpu.memory_space<vmem>>, vector<2x192xf32>,
    %cst_35 = arith.constant 0.000000e+00 : f32
    %40 = vector.broadcast %cst_35 : f32 to vector<2x192xf32>
    %c10 = arith.constant 10 : index
    %c0_36 = arith.constant 0 : index
    %41 = vector.load %arg13[%c10, %c0_36] : memref<12x192xf32, #tpu.memory_space<vmem>>, vector<2x192xf32>
    tpu.vector_store %arg13[%c10, %c0_36], %40 {strides = array<i32>} : memref<12x192xf32, #tpu.memory_space<vmem>>, vector<2x192xf32>,
    %c2_37 = arith.constant 2 : index
    %c0_38 = arith.constant 0 : index
    %42 = vector.load %arg13[%c2_37, %c0_38] : memref<12x192xf32, #tpu.memory_space<vmem>>, vector<8x192xf32>
    tpu.vector_store %arg13[%c2_37, %c0_38], %37 {strides = array<i32>} : memref<12x192xf32, #tpu.memory_space<vmem>>, vector<8x192xf32>,
    %c0_39 = arith.constant 0 : index
    %c0_40 = arith.constant 0 : index
    %43 = vector.load %arg7[%c0_39, %c0_40] : memref<1x192xf32, #tpu.memory_space<vmem>>, vector<1x192xf32>
    %c0_41 = arith.constant 0 : index
    %c0_42 = arith.constant 0 : index
    %44 = vector.load %arg13[%c0_41, %c0_42] : memref<12x192xf32, #tpu.memory_space<vmem>>, vector<8x192xf32>
    %45 = arith.truncf %44 : vector<8x192xf32> to vector<8x192xbf16>
    %c0_43 = arith.constant 0 : index
    %c0_44 = arith.constant 0 : index
    %c0_45 = arith.constant 0 : index
    %46 = vector.load %arg6[%c0_43, %c0_44, %c0_45] : memref<5x192x192xbf16, #tpu.memory_space<vmem>>, vector<1x192x192xbf16>
    %47 = vector.shape_cast %46 : vector<1x192x192xbf16> to vector<192x192xbf16>
    %cst_46 = arith.constant dense<0.000000e+00> : vector<8x192xf32>
    %48 = tpu.matmul %45, %47, %cst_46 {dimension_numbers = #tpu.dot_dimension_numbers<[1], [0], [0], [1], [0, 0, 1, 1], [], []>} : vector<8x192xbf16>, vector<192x192xbf16>, vector<8x192xf32> -> vector<8x192xf32>
    %49 = vector.broadcast %43 : vector<1x192xf32> to vector<8x192xf32>
    %50 = arith.addf %49, %48 : vector<8x192xf32>
    %c1_47 = arith.constant 1 : index
    %c0_48 = arith.constant 0 : index
    %51 = vector.load %arg13[%c1_47, %c0_48] : memref<12x192xf32, #tpu.memory_space<vmem>>, vector<8x192xf32>
    %52 = arith.truncf %51 : vector<8x192xf32> to vector<8x192xbf16>
    %c1_49 = arith.constant 1 : index
    %c0_50 = arith.constant 0 : index
    %c0_51 = arith.constant 0 : index
    %53 = vector.load %arg6[%c1_49, %c0_50, %c0_51] : memref<5x192x192xbf16, #tpu.memory_space<vmem>>, vector<1x192x192xbf16>
    %54 = vector.shape_cast %53 : vector<1x192x192xbf16> to vector<192x192xbf16>
    %cst_52 = arith.constant dense<0.000000e+00> : vector<8x192xf32>
    %55 = tpu.matmul %52, %54, %cst_52 {dimension_numbers = #tpu.dot_dimension_numbers<[1], [0], [0], [1], [0, 0, 1, 1], [], []>} : vector<8x192xbf16>, vector<192x192xbf16>, vector<8x192xf32> -> vector<8x192xf32>
    %56 = arith.addf %50, %55 : vector<8x192xf32>
    %c2_53 = arith.constant 2 : index
    %c0_54 = arith.constant 0 : index
    %57 = vector.load %arg13[%c2_53, %c0_54] : memref<12x192xf32, #tpu.memory_space<vmem>>, vector<8x192xf32>
    %58 = arith.truncf %57 : vector<8x192xf32> to vector<8x192xbf16>
    %c2_55 = arith.constant 2 : index
    %c0_56 = arith.constant 0 : index
    %c0_57 = arith.constant 0 : index
    %59 = vector.load %arg6[%c2_55, %c0_56, %c0_57] : memref<5x192x192xbf16, #tpu.memory_space<vmem>>, vector<1x192x192xbf16>
    %60 = vector.shape_cast %59 : vector<1x192x192xbf16> to vector<192x192xbf16>
    %cst_58 = arith.constant dense<0.000000e+00> : vector<8x192xf32>
    %61 = tpu.matmul %58, %60, %cst_58 {dimension_numbers = #tpu.dot_dimension_numbers<[1], [0], [0], [1], [0, 0, 1, 1], [], []>} : vector<8x192xbf16>, vector<192x192xbf16>, vector<8x192xf32> -> vector<8x192xf32>
    %62 = arith.addf %56, %61 : vector<8x192xf32>
    %c3 = arith.constant 3 : index
    %c0_59 = arith.constant 0 : index
    %63 = vector.load %arg13[%c3, %c0_59] : memref<12x192xf32, #tpu.memory_space<vmem>>, vector<8x192xf32>
    %64 = arith.truncf %63 : vector<8x192xf32> to vector<8x192xbf16>
    %c3_60 = arith.constant 3 : index
    %c0_61 = arith.constant 0 : index
    %c0_62 = arith.constant 0 : index
    %65 = vector.load %arg6[%c3_60, %c0_61, %c0_62] : memref<5x192x192xbf16, #tpu.memory_space<vmem>>, vector<1x192x192xbf16>
    %66 = vector.shape_cast %65 : vector<1x192x192xbf16> to vector<192x192xbf16>
    %cst_63 = arith.constant dense<0.000000e+00> : vector<8x192xf32>
    %67 = tpu.matmul %64, %66, %cst_63 {dimension_numbers = #tpu.dot_dimension_numbers<[1], [0], [0], [1], [0, 0, 1, 1], [], []>} : vector<8x192xbf16>, vector<192x192xbf16>, vector<8x192xf32> -> vector<8x192xf32>
    %68 = arith.addf %62, %67 : vector<8x192xf32>
    %c4 = arith.constant 4 : index
    %c0_64 = arith.constant 0 : index
    %69 = vector.load %arg13[%c4, %c0_64] : memref<12x192xf32, #tpu.memory_space<vmem>>, vector<8x192xf32>
    %70 = arith.truncf %69 : vector<8x192xf32> to vector<8x192xbf16>
    %c4_65 = arith.constant 4 : index
    %c0_66 = arith.constant 0 : index
    %c0_67 = arith.constant 0 : index
    %71 = vector.load %arg6[%c4_65, %c0_66, %c0_67] : memref<5x192x192xbf16, #tpu.memory_space<vmem>>, vector<1x192x192xbf16>
    %72 = vector.shape_cast %71 : vector<1x192x192xbf16> to vector<192x192xbf16>
    %cst_68 = arith.constant dense<0.000000e+00> : vector<8x192xf32>
    %73 = tpu.matmul %70, %72, %cst_68 {dimension_numbers = #tpu.dot_dimension_numbers<[1], [0], [0], [1], [0, 0, 1, 1], [], []>} : vector<8x192xbf16>, vector<192x192xbf16>, vector<8x192xf32> -> vector<8x192xf32>
    %74 = arith.addf %68, %73 : vector<8x192xf32>
    %cst_69 = arith.constant 0.000000e+00 : f32
    %75 = vector.broadcast %cst_69 : f32 to vector<8x192xf32>
    %76 = arith.maximumf %74, %75 : vector<8x192xf32>
    %c1_70 = arith.constant 1 : index
    %c0_71 = arith.constant 0 : index
    %77 = vector.load %arg14[%c1_70, %c0_71] : memref<10x192xf32, #tpu.memory_space<vmem>>, vector<8x192xf32>
    tpu.vector_store %arg14[%c1_70, %c0_71], %76 {strides = array<i32>} : memref<10x192xf32, #tpu.memory_space<vmem>>, vector<8x192xf32>,
    %c0_72 = arith.constant 0 : index
    %c0_73 = arith.constant 0 : index
    %78 = vector.load %arg9[%c0_72, %c0_73] : memref<1x192xf32, #tpu.memory_space<vmem>>, vector<1x192xf32>
    %c0_74 = arith.constant 0 : index
    %c0_75 = arith.constant 0 : index
    %79 = vector.load %arg14[%c0_74, %c0_75] : memref<10x192xf32, #tpu.memory_space<vmem>>, vector<8x192xf32>
    %80 = arith.truncf %79 : vector<8x192xf32> to vector<8x192xbf16>
    %c0_76 = arith.constant 0 : index
    %c0_77 = arith.constant 0 : index
    %c0_78 = arith.constant 0 : index
    %81 = vector.load %arg8[%c0_76, %c0_77, %c0_78] : memref<3x192x192xbf16, #tpu.memory_space<vmem>>, vector<1x192x192xbf16>
    %82 = vector.shape_cast %81 : vector<1x192x192xbf16> to vector<192x192xbf16>
    %cst_79 = arith.constant dense<0.000000e+00> : vector<8x192xf32>
    %83 = tpu.matmul %80, %82, %cst_79 {dimension_numbers = #tpu.dot_dimension_numbers<[1], [0], [0], [1], [0, 0, 1, 1], [], []>} : vector<8x192xbf16>, vector<192x192xbf16>, vector<8x192xf32> -> vector<8x192xf32>
    %84 = vector.broadcast %78 : vector<1x192xf32> to vector<8x192xf32>
    %85 = arith.addf %84, %83 : vector<8x192xf32>
    %c1_80 = arith.constant 1 : index
    %c0_81 = arith.constant 0 : index
    %86 = vector.load %arg14[%c1_80, %c0_81] : memref<10x192xf32, #tpu.memory_space<vmem>>, vector<8x192xf32>
    %87 = arith.truncf %86 : vector<8x192xf32> to vector<8x192xbf16>
    %c1_82 = arith.constant 1 : index
    %c0_83 = arith.constant 0 : index
    %c0_84 = arith.constant 0 : index
    %88 = vector.load %arg8[%c1_82, %c0_83, %c0_84] : memref<3x192x192xbf16, #tpu.memory_space<vmem>>, vector<1x192x192xbf16>
    %89 = vector.shape_cast %88 : vector<1x192x192xbf16> to vector<192x192xbf16>
    %cst_85 = arith.constant dense<0.000000e+00> : vector<8x192xf32>
    %90 = tpu.matmul %87, %89, %cst_85 {dimension_numbers = #tpu.dot_dimension_numbers<[1], [0], [0], [1], [0, 0, 1, 1], [], []>} : vector<8x192xbf16>, vector<192x192xbf16>, vector<8x192xf32> -> vector<8x192xf32>
    %91 = arith.addf %85, %90 : vector<8x192xf32>
    %c2_86 = arith.constant 2 : index
    %c0_87 = arith.constant 0 : index
    %92 = vector.load %arg14[%c2_86, %c0_87] : memref<10x192xf32, #tpu.memory_space<vmem>>, vector<8x192xf32>
    %93 = arith.truncf %92 : vector<8x192xf32> to vector<8x192xbf16>
    %c2_88 = arith.constant 2 : index
    %c0_89 = arith.constant 0 : index
    %c0_90 = arith.constant 0 : index
    %94 = vector.load %arg8[%c2_88, %c0_89, %c0_90] : memref<3x192x192xbf16, #tpu.memory_space<vmem>>, vector<1x192x192xbf16>
    %95 = vector.shape_cast %94 : vector<1x192x192xbf16> to vector<192x192xbf16>
    %cst_91 = arith.constant dense<0.000000e+00> : vector<8x192xf32>
    %96 = tpu.matmul %93, %95, %cst_91 {dimension_numbers = #tpu.dot_dimension_numbers<[1], [0], [0], [1], [0, 0, 1, 1], [], []>} : vector<8x192xbf16>, vector<192x192xbf16>, vector<8x192xf32> -> vector<8x192xf32>
    %97 = arith.addf %91, %96 : vector<8x192xf32>
    %cst_92 = arith.constant 0.000000e+00 : f32
    %98 = vector.broadcast %cst_92 : f32 to vector<8x192xf32>
    %99 = arith.maximumf %97, %98 : vector<8x192xf32>
    %c0_93 = arith.constant 0 : index
    %c0_94 = arith.constant 0 : index
    %100 = vector.load %arg10[%c0_93, %c0_94] : memref<192x96xf32, #tpu.memory_space<vmem>>, vector<192x96xf32>
    %cst_95 = arith.constant dense<0.000000e+00> : vector<8x96xf32>
    %101 = tpu.matmul %99, %100, %cst_95 {dimension_numbers = #tpu.dot_dimension_numbers<[1], [0], [0], [1], [0, 0, 1, 1], [], []>} : vector<8x192xf32>, vector<192x96xf32>, vector<8x96xf32> -> vector<8x96xf32>
    %c0_96 = arith.constant 0 : index
    %c0_97 = arith.constant 0 : index
    %102 = vector.load %arg11[%c0_96, %c0_97] : memref<1x96xf32, #tpu.memory_space<vmem>>, vector<1x96xf32>
    %103 = vector.broadcast %102 : vector<1x96xf32> to vector<8x96xf32>
    %104 = arith.addf %101, %103 : vector<8x96xf32>
    %c0_98 = arith.constant 0 : index
    %c0_99 = arith.constant 0 : index
    %c0_100 = arith.constant 0 : index
    %105 = vector.load %arg12[%c0_98, %c0_99, %c0_100] : memref<1x8x96xf32, #tpu.memory_space<vmem>>, vector<1x8x96xf32>
    %106 = vector.shape_cast %105 : vector<1x8x96xf32> to vector<8x96xf32>
    %107 = vector.shape_cast %104 : vector<8x96xf32> to vector<1x8x96xf32>
    tpu.vector_store %arg12[%c0_98, %c0_99, %c0_100], %107 {strides = array<i32>} : memref<1x8x96xf32, #tpu.memory_space<vmem>>, vector<1x8x96xf32>,
    return
  }
  func.func @transform_0(%arg0: i32) -> (i32, i32, i32) {
    %c0_i32 = arith.constant 0 : i32
    %c0_i32_0 = arith.constant 0 : i32
    %c0_i32_1 = arith.constant 0 : i32
    return %arg0, %c0_i32, %c0_i32_0 : i32, i32, i32
  }
  func.func @transform_1(%arg0: i32) -> (i32, i32) {
    %c0_i32 = arith.constant 0 : i32
    %c0_i32_0 = arith.constant 0 : i32
    %c0_i32_1 = arith.constant 0 : i32
    return %c0_i32, %c0_i32_0 : i32, i32
  }
  func.func @transform_2(%arg0: i32) -> (i32, i32) {
    %c0_i32 = arith.constant 0 : i32
    %c0_i32_0 = arith.constant 0 : i32
    %c0_i32_1 = arith.constant 0 : i32
    return %c0_i32, %c0_i32_0 : i32, i32
  }
  func.func @transform_3(%arg0: i32) -> (i32, i32, i32) {
    %c0_i32 = arith.constant 0 : i32
    %c0_i32_0 = arith.constant 0 : i32
    %c0_i32_1 = arith.constant 0 : i32
    %c0_i32_2 = arith.constant 0 : i32
    return %c0_i32, %c0_i32_0, %c0_i32_1 : i32, i32, i32
  }
  func.func @transform_4(%arg0: i32) -> (i32, i32) {
    %c0_i32 = arith.constant 0 : i32
    %c0_i32_0 = arith.constant 0 : i32
    %c0_i32_1 = arith.constant 0 : i32
    return %c0_i32, %c0_i32_0 : i32, i32
  }
  func.func @transform_5(%arg0: i32) -> (i32, i32, i32) {
    %c0_i32 = arith.constant 0 : i32
    %c0_i32_0 = arith.constant 0 : i32
    %c0_i32_1 = arith.constant 0 : i32
    %c0_i32_2 = arith.constant 0 : i32
    return %c0_i32, %c0_i32_0, %c0_i32_1 : i32, i32, i32
  }
  func.func @transform_6(%arg0: i32) -> (i32, i32) {
    %c0_i32 = arith.constant 0 : i32
    %c0_i32_0 = arith.constant 0 : i32
    %c0_i32_1 = arith.constant 0 : i32
    return %c0_i32, %c0_i32_0 : i32, i32
  }
  func.func @transform_7(%arg0: i32) -> (i32, i32, i32) {
    %c0_i32 = arith.constant 0 : i32
    %c0_i32_0 = arith.constant 0 : i32
    %c0_i32_1 = arith.constant 0 : i32
    %c0_i32_2 = arith.constant 0 : i32
    return %c0_i32, %c0_i32_0, %c0_i32_1 : i32, i32, i32
  }
  func.func @transform_8(%arg0: i32) -> (i32, i32) {
    %c0_i32 = arith.constant 0 : i32
    %c0_i32_0 = arith.constant 0 : i32
    %c0_i32_1 = arith.constant 0 : i32
    return %c0_i32, %c0_i32_0 : i32, i32
  }
  func.func @transform_9(%arg0: i32) -> (i32, i32) {
    %c0_i32 = arith.constant 0 : i32
    %c0_i32_0 = arith.constant 0 : i32
    %c0_i32_1 = arith.constant 0 : i32
    return %c0_i32, %c0_i32_0 : i32, i32
  }
  func.func @transform_10(%arg0: i32) -> (i32, i32) {
    %c0_i32 = arith.constant 0 : i32
    %c0_i32_0 = arith.constant 0 : i32
    %c0_i32_1 = arith.constant 0 : i32
    return %c0_i32, %c0_i32_0 : i32, i32
  }
  func.func @transform_11(%arg0: i32) -> (i32, i32, i32) {
    %c0_i32 = arith.constant 0 : i32
    %c0_i32_0 = arith.constant 0 : i32
    %c0_i32_1 = arith.constant 0 : i32
    return %arg0, %c0_i32, %c0_i32_0 : i32, i32, i32
  }
}

</mosaic_0001>

<llo_original>
// kernel: cnngru_forward.3
$region0: #{cnngru_forward.3}
  #allocation0 [shape = 'u32[]', space=smem, size = 0x4, offset = 0x4, fixed_abs, tag = 'smem constant byte address 0x4 - core index']
  #allocation1 [shape = 'u32[72,128]{1,0:T(1,128)}', space=vmem, size = 0x9000, scoped, tag = 'internal scratch']
  #allocation2 [shape = 'f32[8,2,96]{2,1,0:T(2,128)}', space=vmem, size = 0x2000, scoped, tag = 'scratch operand']
  #allocation3 [shape = 'f32[8,2,96]{2,1,0:T(2,128)}', space=vmem, size = 0x2000, scoped, tag = 'scratch operand']
  %s0 = inlined_call_operand.vmem [shape: f32[8,2,96], index: 0, kind: input, shape index: {}]
  %s1 = inlined_call_operand.vmem [shape: f32[2,32,96], index: 1, kind: input, shape index: {}]
  %s2 = inlined_call_operand.vmem [shape: f32[2,1,96], index: 2, kind: input, shape index: {}]
  %s3 = inlined_call_operand.vmem [shape: f32[2,32,96], index: 3, kind: input, shape index: {}]
  %s4 = inlined_call_operand.vmem [shape: f32[2,1,96], index: 4, kind: input, shape index: {}]
  %s5 = inlined_call_operand.vmem [shape: f32[32,32], index: 5, kind: input, shape index: {}]
  %s6 = inlined_call_operand.vmem [shape: f32[1,32], index: 6, kind: input, shape index: {}]
  %s7 = inlined_call_operand.vmem [shape: f32[32,5], index: 7, kind: input, shape index: {}]
  %s8 = inlined_call_operand.vmem [shape: f32[1,5], index: 8, kind: input, shape index: {}]
  %s9 = inlined_call_operand.hbm [shape: f32[2,5], index: 9, kind: output, shape index: {}]
  %s10 = sld [smem:[#allocation0]]
  $region46: #{cnngru_forward.3} parent=0
    _
  %s12 = ssub.s32 1, %s10
  %s13 = scalar_select 0, %s12, %s10
  $region1: #{cnngru_forward.3} parent=0
    #allocation4 [shape = 'u8[1024]{0}', space=vmem, size = 0x400, scoped, tag = 'output window, operand 0, single buffered']
    #allocation5 [shape = 's32[1]{0}', space=sflag, size = 0x4, scoped, tag = 'scoped memory for cnngru_forward.3']
    %14 = vsyncpa [#allocation5], 0
    // Predicated region
    $region2: #{cnngru_forward.3} parent=1 // pred_check
      _
    $region3: #{cnngru_forward.3} parent=1 // pred_check_branch
      %16 = sbr.rel (0) target = $region5
    $region4: #{cnngru_forward.3} parent=1 // pred_region
      _
    $region5: #{cnngru_forward.3} parent=1 // pred_fallthru
      _
    // Predicated region
    $region6: #{cnngru_forward.3} parent=1 // pred_check
      _
    $region7: #{cnngru_forward.3} parent=1 // pred_check_branch
      %18 = sbr.rel (0) target = $region9
    $region8: #{cnngru_forward.3} parent=1 // pred_region
      _
    $region9: #{cnngru_forward.3} parent=1 // pred_fallthru
      _
    // Predicated region
    $region10: #{cnngru_forward.3} parent=1 // pred_check
      _
    $region11: #{cnngru_forward.3} parent=1 // pred_check_branch
      %20 = sbr.rel (0) target = $region13
    $region12: #{cnngru_forward.3} parent=1 // pred_region
      _
    $region13: #{cnngru_forward.3} parent=1 // pred_fallthru
      _
    // Predicated region
    $region14: #{cnngru_forward.3} parent=1 // pred_check
      _
    $region15: #{cnngru_forward.3} parent=1 // pred_check_branch
      %22 = sbr.rel (0) target = $region17
    $region16: #{cnngru_forward.3} parent=1 // pred_region
      _
    $region17: #{cnngru_forward.3} parent=1 // pred_fallthru
      _
    // Predicated region
    $region18: #{cnngru_forward.3} parent=1 // pred_check
      _
    $region19: #{cnngru_forward.3} parent=1 // pred_check_branch
      %24 = sbr.rel (0) target = $region21
    $region20: #{cnngru_forward.3} parent=1 // pred_region
      _
    $region21: #{cnngru_forward.3} parent=1 // pred_fallthru
      _
    // Predicated region
    $region22: #{cnngru_forward.3} parent=1 // pred_check
      _
    $region23: #{cnngru_forward.3} parent=1 // pred_check_branch
      %26 = sbr.rel (0) target = $region25
    $region24: #{cnngru_forward.3} parent=1 // pred_region
      _
    $region25: #{cnngru_forward.3} parent=1 // pred_fallthru
      _
    // Predicated region
    $region26: #{cnngru_forward.3} parent=1 // pred_check
      _
    $region27: #{cnngru_forward.3} parent=1 // pred_check_branch
      %28 = sbr.rel (0) target = $region29
    $region28: #{cnngru_forward.3} parent=1 // pred_region
      _
    $region29: #{cnngru_forward.3} parent=1 // pred_fallthru
      _
    // Predicated region
    $region30: #{cnngru_forward.3} parent=1 // pred_check
      _
    $region31: #{cnngru_forward.3} parent=1 // pred_check_branch
      %30 = sbr.rel (0) target = $region33
    $region32: #{cnngru_forward.3} parent=1 // pred_region
      _
    $region33: #{cnngru_forward.3} parent=1 // pred_fallthru
      _
    // Predicated region
    $region34: #{cnngru_forward.3} parent=1 // pred_check
      _
    $region35: #{cnngru_forward.3} parent=1 // pred_check_branch
      %32 = sbr.rel (0) target = $region37
    $region36: #{cnngru_forward.3} parent=1 // pred_region
      _
    $region37: #{cnngru_forward.3} parent=1 // pred_fallthru
      _
    %s33 = scalar_lea.vmem %s3, 32
    %v34 = vld [vmem:[%s33] sm:$0xff]
    %v35 = vld [vmem:[%s33 + $0x8] sm:$0xff]
    %v36 = vld [vmem:[%s33 + $0x10] sm:$0xff]
    %v37 = vld [vmem:[%s33 + $0x18] sm:$0xff]
    %s38 = scalar_lea.vmem %s4, 1
    %v39 = vld [vmem:[%s38] sm:$0x1]
    %v40 = vld [vmem:[%s1] sm:$0xff]
    %v41 = vld [vmem:[%s1 + $0x8] sm:$0xff]
    %v42 = vld [vmem:[%s1 + $0x10] sm:$0xff]
    %v43 = vld [vmem:[%s1 + $0x18] sm:$0xff]
    %v44 = vld [vmem:[%s2] sm:$0x1]
    %v45 = vld [vmem:[%s0] sm:$0x3]
    %v47 = vperm.slane %v44, 0
    %vm49 = vcmask 261120
    %v51 = vsel %vm49, 0.0, 0
    %53 = vmatpush.msra.mxu0 0.0
    %54 = vmatpush.msra.mxu0 0.0
    %55 = vmatpush.msra.mxu0 0.0
    %56 = vmatpush.msra.mxu0 0.0
    %57 = vmatpush.msra.mxu0 0.0
    %58 = vmatpush.msra.mxu0 0.0
    %59 = vmatpush.msra.mxu0 0.0
    %60 = vmatpush.msra.mxu0 0.0
    %61 = vmatpush.msra.mxu0 0.0
    %62 = vmatpush.msra.mxu0 0.0
    %63 = vmatpush.msra.mxu0 0.0
    %64 = vmatpush.msra.mxu0 0.0
    %65 = vmatpush.msra.mxu0 %v43
    %66 = vmatpush.msra.mxu0 %v42
    %67 = vmatpush.msra.mxu0 %v41
    %68 = vmatpush.msra.mxu0 %v40
    %69 = vmatmul.f32.gmra.mxu0 %v51
    %v70 = vpop.f32.mrf.mxu0
    %v71 = vadd.f32 %v47, %v70
    %72 = vdwg.mxu0
    %v73 = vadd.f32 %v45, %v71
    %v74 = vsub.f32 0.0, %v73
    %v75 = vmul.f32 %v74, 1.442695
    %v76 = vpow.pop %v75
    %v77 = vadd.f32 %v76, 1.0
    %v78 = vrcp.pop %v77
    %v79 = vmul.f32 %v77, %v78
    %v80 = vsub.f32 1.0, %v79
    %v81 = vmul.f32 %v78, %v80
    %v82 = vadd.f32 %v78, %v81
    %vm83 = vweird.f32 %v77
    %vm84 = vweird.f32 %v78
    %vm85 = vmor %vm83, %vm84
    %v86 = vsel %vm85, %v78, %v82
    %v87 = vand.u32 2147483647, %v77
    %vm88 = vcmp.eq.f32.partialorder %v87, 8.507059e+37
    %v89 = vand.u32 %v77, 2147483648
    %v90 = vor.u32 1.1754944e-38, %v89
    %v91 = vsel %vm88, %v90, %v86
    %v92 = vmul.f32 1.0, %v91
    %94 = vrot.lane.b32.xlu0 %v71, 64
    %v95 = vpop.permute.xlu0 %94
    %v97 = vmul.f32 %v92, %v95
    %99 = vrot.lane.b32.xlu0 %v97, 64
    %v100 = vpop.permute.xlu0 %99
    %v102 = vadd.f32 %v45, %v100
    %v103 = vtanh.pop %v102
    %v104 = vsub.f32 1.0, %v92
    %106 = vrot.lane.b32.xlu0 %v103, 96
    %v107 = vpop.permute.xlu0 %106
    %v109 = vmul.f32 %v104, %v107
    %v110 = vmul.f32 %v92, 0.0
    %v111 = vadd.f32 %v109, %v110
    %v113 = vperm.slane %v39, 0
    %116 = vrot.lane.b32.xlu0 %v111, 96
    %v117 = vpop.permute.xlu0 %116
    %v118 = vsel %vm49, %v117, 0
    %120 = vmatpush.msra.mxu0 0.0
    %121 = vmatpush.msra.mxu0 0.0
    %122 = vmatpush.msra.mxu0 0.0
    %123 = vmatpush.msra.mxu0 0.0
    %124 = vmatpush.msra.mxu0 0.0
    %125 = vmatpush.msra.mxu0 0.0
    %126 = vmatpush.msra.mxu0 0.0
    %127 = vmatpush.msra.mxu0 0.0
    %128 = vmatpush.msra.mxu0 0.0
    %129 = vmatpush.msra.mxu0 0.0
    %130 = vmatpush.msra.mxu0 0.0
    %131 = vmatpush.msra.mxu0 0.0
    %132 = vmatpush.msra.mxu0 %v37
    %133 = vmatpush.msra.mxu0 %v36
    %134 = vmatpush.msra.mxu0 %v35
    %135 = vmatpush.msra.mxu0 %v34
    %136 = vmatmul.f32.gmra.mxu0 %v118
    %v137 = vpop.f32.mrf.mxu0
    %v138 = vadd.f32 %v113, %v137
    %139 = vdwg.mxu0
    %vm140 = vcmask 779264
    %141 = vst.msk [vmem:[#allocation2] sm:$0x3] %vm140, %v138
    %s142 = scalar_lea.vmem %s0, 2
    %v143 = vld [vmem:[%s142] sm:$0x3]
    %144 = vmatpush.msra.mxu0 0.0
    %145 = vmatpush.msra.mxu0 0.0
    %146 = vmatpush.msra.mxu0 0.0
    %147 = vmatpush.msra.mxu0 0.0
    %148 = vmatpush.msra.mxu0 0.0
    %149 = vmatpush.msra.mxu0 0.0
    %150 = vmatpush.msra.mxu0 0.0
    %151 = vmatpush.msra.mxu0 0.0
    %152 = vmatpush.msra.mxu0 0.0
    %153 = vmatpush.msra.mxu0 0.0
    %154 = vmatpush.msra.mxu0 0.0
    %155 = vmatpush.msra.mxu0 0.0
    %156 = vmatpush.msra.mxu0 %v43
    %157 = vmatpush.msra.mxu0 %v42
    %158 = vmatpush.msra.mxu0 %v41
    %159 = vmatpush.msra.mxu0 %v40
    %160 = vmatmul.f32.gmra.mxu0 %v118
    %v161 = vpop.f32.mrf.mxu0
    %v162 = vadd.f32 %v47, %v161
    %163 = vdwg.mxu0
    %v164 = vadd.f32 %v143, %v162
    %v165 = vsub.f32 0.0, %v164
    %v166 = vmul.f32 %v165, 1.442695
    %v167 = vpow.pop %v166
    %v168 = vadd.f32 %v167, 1.0
    %v169 = vrcp.pop %v168
    %v170 = vmul.f32 %v168, %v169
    %v171 = vsub.f32 1.0, %v170
    %v172 = vmul.f32 %v169, %v171
    %v173 = vadd.f32 %v169, %v172
    %vm174 = vweird.f32 %v168
    %vm175 = vweird.f32 %v169
    %vm176 = vmor %vm174, %vm175
    %v177 = vsel %vm176, %v169, %v173
    %v178 = vand.u32 2147483647, %v168
    %vm179 = vcmp.eq.f32.partialorder %v178, 8.507059e+37
    %v180 = vand.u32 %v168, 2147483648
    %v181 = vor.u32 1.1754944e-38, %v180
    %v182 = vsel %vm179, %v181, %v177
    %v183 = vmul.f32 1.0, %v182
    %185 = vrot.lane.b32.xlu0 %v162, 64
    %v186 = vpop.permute.xlu0 %185
    %v188 = vmul.f32 %v183, %v186
    %190 = vrot.lane.b32.xlu0 %v188, 64
    %v191 = vpop.permute.xlu0 %190
    %v193 = vadd.f32 %v143, %v191
    %v194 = vtanh.pop %v193
    %v195 = vsub.f32 1.0, %v183
    %197 = vrot.lane.b32.xlu0 %v194, 96
    %v198 = vpop.permute.xlu0 %197
    %v200 = vmul.f32 %v195, %v198
    %v201 = vmul.f32 %v183, %v111
    %v202 = vadd.f32 %v200, %v201
    %204 = vrot.lane.b32.xlu0 %v202, 96
    %v205 = vpop.permute.xlu0 %204
    %v206 = vsel %vm49, %v205, 0
    %208 = vmatpush.msra.mxu0 0.0
    %209 = vmatpush.msra.mxu0 0.0
    %210 = vmatpush.msra.mxu0 0.0
    %211 = vmatpush.msra.mxu0 0.0
    %212 = vmatpush.msra.mxu0 0.0
    %213 = vmatpush.msra.mxu0 0.0
    %214 = vmatpush.msra.mxu0 0.0
    %215 = vmatpush.msra.mxu0 0.0
    %216 = vmatpush.msra.mxu0 0.0
    %217 = vmatpush.msra.mxu0 0.0
    %218 = vmatpush.msra.mxu0 0.0
    %219 = vmatpush.msra.mxu0 0.0
    %220 = vmatpush.msra.mxu0 %v37
    %221 = vmatpush.msra.mxu0 %v36
    %222 = vmatpush.msra.mxu0 %v35
    %223 = vmatpush.msra.mxu0 %v34
    %224 = vmatmul.f32.gmra.mxu0 %v206
    %v225 = vpop.f32.mrf.mxu0
    %v226 = vadd.f32 %v113, %v225
    %227 = vdwg.mxu0
    %s228 = scalar_lea.vmem [#allocation2], 2
    %229 = vst.msk [vmem:[%s228] sm:$0x3] %vm140, %v226
    %s230 = scalar_lea.vmem %s0, 4
    %v231 = vld [vmem:[%s230] sm:$0x3]
    %232 = vmatpush.msra.mxu0 0.0
    %233 = vmatpush.msra.mxu0 0.0
    %234 = vmatpush.msra.mxu0 0.0
    %235 = vmatpush.msra.mxu0 0.0
    %236 = vmatpush.msra.mxu0 0.0
    %237 = vmatpush.msra.mxu0 0.0
    %238 = vmatpush.msra.mxu0 0.0
    %239 = vmatpush.msra.mxu0 0.0
    %240 = vmatpush.msra.mxu0 0.0
    %241 = vmatpush.msra.mxu0 0.0
    %242 = vmatpush.msra.mxu0 0.0
    %243 = vmatpush.msra.mxu0 0.0
    %244 = vmatpush.msra.mxu0 %v43
    %245 = vmatpush.msra.mxu0 %v42
    %246 = vmatpush.msra.mxu0 %v41
    %247 = vmatpush.msra.mxu0 %v40
    %248 = vmatmul.f32.gmra.mxu0 %v206
    %v249 = vpop.f32.mrf.mxu0
    %v250 = vadd.f32 %v47, %v249
    %251 = vdwg.mxu0
    %v252 = vadd.f32 %v231, %v250
    %v253 = vsub.f32 0.0, %v252
    %v254 = vmul.f32 %v253, 1.442695
    %v255 = vpow.pop %v254
    %v256 = vadd.f32 %v255, 1.0
    %v257 = vrcp.pop %v256
    %v258 = vmul.f32 %v256, %v257
    %v259 = vsub.f32 1.0, %v258
    %v260 = vmul.f32 %v257, %v259
    %v261 = vadd.f32 %v257, %v260
    %vm262 = vweird.f32 %v256
    %vm263 = vweird.f32 %v257
    %vm264 = vmor %vm262, %vm263
    %v265 = vsel %vm264, %v257, %v261
    %v266 = vand.u32 2147483647, %v256
    %vm267 = vcmp.eq.f32.partialorder %v266, 8.507059e+37
    %v268 = vand.u32 %v256, 2147483648
    %v269 = vor.u32 1.1754944e-38, %v268
    %v270 = vsel %vm267, %v269, %v265
    %v271 = vmul.f32 1.0, %v270
    %273 = vrot.lane.b32.xlu0 %v250, 64
    %v274 = vpop.permute.xlu0 %273
    %v276 = vmul.f32 %v271, %v274
    %278 = vrot.lane.b32.xlu0 %v276, 64
    %v279 = vpop.permute.xlu0 %278
    %v281 = vadd.f32 %v231, %v279
    %v282 = vtanh.pop %v281
    %v283 = vsub.f32 1.0, %v271
    %285 = vrot.lane.b32.xlu0 %v282, 96
    %v286 = vpop.permute.xlu0 %285
    %v288 = vmul.f32 %v283, %v286
    %v289 = vmul.f32 %v271, %v202
    %v290 = vadd.f32 %v288, %v289
    %292 = vrot.lane.b32.xlu0 %v290, 96
    %v293 = vpop.permute.xlu0 %292
    %v294 = vsel %vm49, %v293, 0
    %296 = vmatpush.msra.mxu0 0.0
    %297 = vmatpush.msra.mxu0 0.0
    %298 = vmatpush.msra.mxu0 0.0
    %299 = vmatpush.msra.mxu0 0.0
    %300 = vmatpush.msra.mxu0 0.0
    %301 = vmatpush.msra.mxu0 0.0
    %302 = vmatpush.msra.mxu0 0.0
    %303 = vmatpush.msra.mxu0 0.0
    %304 = vmatpush.msra.mxu0 0.0
    %305 = vmatpush.msra.mxu0 0.0
    %306 = vmatpush.msra.mxu0 0.0
    %307 = vmatpush.msra.mxu0 0.0
    %308 = vmatpush.msra.mxu0 %v37
    %309 = vmatpush.msra.mxu0 %v36
    %310 = vmatpush.msra.mxu0 %v35
    %311 = vmatpush.msra.mxu0 %v34
    %312 = vmatmul.f32.gmra.mxu0 %v294
    %v313 = vpop.f32.mrf.mxu0
    %v314 = vadd.f32 %v113, %v313
    %315 = vdwg.mxu0
    %s316 = scalar_lea.vmem [#allocation2], 4
    %317 = vst.msk [vmem:[%s316] sm:$0x3] %vm140, %v314
    %s318 = scalar_lea.vmem %s0, 6
    %v319 = vld [vmem:[%s318] sm:$0x3]
    %320 = vmatpush.msra.mxu0 0.0
    %321 = vmatpush.msra.mxu0 0.0
    %322 = vmatpush.msra.mxu0 0.0
    %323 = vmatpush.msra.mxu0 0.0
    %324 = vmatpush.msra.mxu0 0.0
    %325 = vmatpush.msra.mxu0 0.0
    %326 = vmatpush.msra.mxu0 0.0
    %327 = vmatpush.msra.mxu0 0.0
    %328 = vmatpush.msra.mxu0 0.0
    %329 = vmatpush.msra.mxu0 0.0
    %330 = vmatpush.msra.mxu0 0.0
    %331 = vmatpush.msra.mxu0 0.0
    %332 = vmatpush.msra.mxu0 %v43
    %333 = vmatpush.msra.mxu0 %v42
    %334 = vmatpush.msra.mxu0 %v41
    %335 = vmatpush.msra.mxu0 %v40
    %336 = vmatmul.f32.gmra.mxu0 %v294
    %v337 = vpop.f32.mrf.mxu0
    %v338 = vadd.f32 %v47, %v337
    %339 = vdwg.mxu0
    %v340 = vadd.f32 %v319, %v338
    %v341 = vsub.f32 0.0, %v340
    %v342 = vmul.f32 %v341, 1.442695
    %v343 = vpow.pop %v342
    %v344 = vadd.f32 %v343, 1.0
    %v345 = vrcp.pop %v344
    %v346 = vmul.f32 %v344, %v345
    %v347 = vsub.f32 1.0, %v346
    %v348 = vmul.f32 %v345, %v347
    %v349 = vadd.f32 %v345, %v348
    %vm350 = vweird.f32 %v344
    %vm351 = vweird.f32 %v345
    %vm352 = vmor %vm350, %vm351
    %v353 = vsel %vm352, %v345, %v349
    %v354 = vand.u32 2147483647, %v344
    %vm355 = vcmp.eq.f32.partialorder %v354, 8.507059e+37
    %v356 = vand.u32 %v344, 2147483648
    %v357 = vor.u32 1.1754944e-38, %v356
    %v358 = vsel %vm355, %v357, %v353
    %v359 = vmul.f32 1.0, %v358
    %361 = vrot.lane.b32.xlu0 %v338, 64
    %v362 = vpop.permute.xlu0 %361
    %v364 = vmul.f32 %v359, %v362
    %366 = vrot.lane.b32.xlu0 %v364, 64
    %v367 = vpop.permute.xlu0 %366
    %v369 = vadd.f32 %v319, %v367
    %v370 = vtanh.pop %v369
    %v371 = vsub.f32 1.0, %v359
    %373 = vrot.lane.b32.xlu0 %v370, 96
    %v374 = vpop.permute.xlu0 %373
    %v376 = vmul.f32 %v371, %v374
    %v377 = vmul.f32 %v359, %v290
    %v378 = vadd.f32 %v376, %v377
    %380 = vrot.lane.b32.xlu0 %v378, 96
    %v381 = vpop.permute.xlu0 %380
    %v382 = vsel %vm49, %v381, 0
    %384 = vmatpush.msra.mxu0 0.0
    %385 = vmatpush.msra.mxu0 0.0
    %386 = vmatpush.msra.mxu0 0.0
    %387 = vmatpush.msra.mxu0 0.0
    %388 = vmatpush.msra.mxu0 0.0
    %389 = vmatpush.msra.mxu0 0.0
    %390 = vmatpush.msra.mxu0 0.0
    %391 = vmatpush.msra.mxu0 0.0
    %392 = vmatpush.msra.mxu0 0.0
    %393 = vmatpush.msra.mxu0 0.0
    %394 = vmatpush.msra.mxu0 0.0
    %395 = vmatpush.msra.mxu0 0.0
    %396 = vmatpush.msra.mxu0 %v37
    %397 = vmatpush.msra.mxu0 %v36
    %398 = vmatpush.msra.mxu0 %v35
    %399 = vmatpush.msra.mxu0 %v34
    %400 = vmatmul.f32.gmra.mxu0 %v382
    %v401 = vpop.f32.mrf.mxu0
    %v402 = vadd.f32 %v113, %v401
    %403 = vdwg.mxu0
    %s404 = scalar_lea.vmem [#allocation2], 6
    %405 = vst.msk [vmem:[%s404] sm:$0x3] %vm140, %v402
    %s406 = scalar_lea.vmem %s0, 8
    %v407 = vld [vmem:[%s406] sm:$0x3]
    %408 = vmatpush.msra.mxu0 0.0
    %409 = vmatpush.msra.mxu0 0.0
    %410 = vmatpush.msra.mxu0 0.0
    %411 = vmatpush.msra.mxu0 0.0
    %412 = vmatpush.msra.mxu0 0.0
    %413 = vmatpush.msra.mxu0 0.0
    %414 = vmatpush.msra.mxu0 0.0
    %415 = vmatpush.msra.mxu0 0.0
    %416 = vmatpush.msra.mxu0 0.0
    %417 = vmatpush.msra.mxu0 0.0
    %418 = vmatpush.msra.mxu0 0.0
    %419 = vmatpush.msra.mxu0 0.0
    %420 = vmatpush.msra.mxu0 %v43
    %421 = vmatpush.msra.mxu0 %v42
    %422 = vmatpush.msra.mxu0 %v41
    %423 = vmatpush.msra.mxu0 %v40
    %424 = vmatmul.f32.gmra.mxu0 %v382
    %v425 = vpop.f32.mrf.mxu0
    %v426 = vadd.f32 %v47, %v425
    %427 = vdwg.mxu0
    %v428 = vadd.f32 %v407, %v426
    %v429 = vsub.f32 0.0, %v428
    %v430 = vmul.f32 %v429, 1.442695
    %v431 = vpow.pop %v430
    %v432 = vadd.f32 %v431, 1.0
    %v433 = vrcp.pop %v432
    %v434 = vmul.f32 %v432, %v433
    %v435 = vsub.f32 1.0, %v434
    %v436 = vmul.f32 %v433, %v435
    %v437 = vadd.f32 %v433, %v436
    %vm438 = vweird.f32 %v432
    %vm439 = vweird.f32 %v433
    %vm440 = vmor %vm438, %vm439
    %v441 = vsel %vm440, %v433, %v437
    %v442 = vand.u32 2147483647, %v432
    %vm443 = vcmp.eq.f32.partialorder %v442, 8.507059e+37
    %v444 = vand.u32 %v432, 2147483648
    %v445 = vor.u32 1.1754944e-38, %v444
    %v446 = vsel %vm443, %v445, %v441
    %v447 = vmul.f32 1.0, %v446
    %449 = vrot.lane.b32.xlu0 %v426, 64
    %v450 = vpop.permute.xlu0 %449
    %v452 = vmul.f32 %v447, %v450
    %454 = vrot.lane.b32.xlu0 %v452, 64
    %v455 = vpop.permute.xlu0 %454
    %v457 = vadd.f32 %v407, %v455
    %v458 = vtanh.pop %v457
    %v459 = vsub.f32 1.0, %v447
    %461 = vrot.lane.b32.xlu0 %v458, 96
    %v462 = vpop.permute.xlu0 %461
    %v464 = vmul.f32 %v459, %v462
    %v465 = vmul.f32 %v447, %v378
    %v466 = vadd.f32 %v464, %v465
    %468 = vrot.lane.b32.xlu0 %v466, 96
    %v469 = vpop.permute.xlu0 %468
    %v470 = vsel %vm49, %v469, 0
    %472 = vmatpush.msra.mxu0 0.0
    %473 = vmatpush.msra.mxu0 0.0
    %474 = vmatpush.msra.mxu0 0.0
    %475 = vmatpush.msra.mxu0 0.0
    %476 = vmatpush.msra.mxu0 0.0
    %477 = vmatpush.msra.mxu0 0.0
    %478 = vmatpush.msra.mxu0 0.0
    %479 = vmatpush.msra.mxu0 0.0
    %480 = vmatpush.msra.mxu0 0.0
    %481 = vmatpush.msra.mxu0 0.0
    %482 = vmatpush.msra.mxu0 0.0
    %483 = vmatpush.msra.mxu0 0.0
    %484 = vmatpush.msra.mxu0 %v37
    %485 = vmatpush.msra.mxu0 %v36
    %486 = vmatpush.msra.mxu0 %v35
    %487 = vmatpush.msra.mxu0 %v34
    %488 = vmatmul.f32.gmra.mxu0 %v470
    %v489 = vpop.f32.mrf.mxu0
    %v490 = vadd.f32 %v113, %v489
    %491 = vdwg.mxu0
    %s492 = scalar_lea.vmem [#allocation2], 8
    %493 = vst.msk [vmem:[%s492] sm:$0x3] %vm140, %v490
    %s494 = scalar_lea.vmem %s0, 10
    %v495 = vld [vmem:[%s494] sm:$0x3]
    %496 = vmatpush.msra.mxu0 0.0
    %497 = vmatpush.msra.mxu0 0.0
    %498 = vmatpush.msra.mxu0 0.0
    %499 = vmatpush.msra.mxu0 0.0
    %500 = vmatpush.msra.mxu0 0.0
    %501 = vmatpush.msra.mxu0 0.0
    %502 = vmatpush.msra.mxu0 0.0
    %503 = vmatpush.msra.mxu0 0.0
    %504 = vmatpush.msra.mxu0 0.0
    %505 = vmatpush.msra.mxu0 0.0
    %506 = vmatpush.msra.mxu0 0.0
    %507 = vmatpush.msra.mxu0 0.0
    %508 = vmatpush.msra.mxu0 %v43
    %509 = vmatpush.msra.mxu0 %v42
    %510 = vmatpush.msra.mxu0 %v41
    %511 = vmatpush.msra.mxu0 %v40
    %512 = vmatmul.f32.gmra.mxu0 %v470
    %v513 = vpop.f32.mrf.mxu0
    %v514 = vadd.f32 %v47, %v513
    %515 = vdwg.mxu0
    %v516 = vadd.f32 %v495, %v514
    %v517 = vsub.f32 0.0, %v516
    %v518 = vmul.f32 %v517, 1.442695
    %v519 = vpow.pop %v518
    %v520 = vadd.f32 %v519, 1.0
    %v521 = vrcp.pop %v520
    %v522 = vmul.f32 %v520, %v521
    %v523 = vsub.f32 1.0, %v522
    %v524 = vmul.f32 %v521, %v523
    %v525 = vadd.f32 %v521, %v524
    %vm526 = vweird.f32 %v520
    %vm527 = vweird.f32 %v521
    %vm528 = vmor %vm526, %vm527
    %v529 = vsel %vm528, %v521, %v525
    %v530 = vand.u32 2147483647, %v520
    %vm531 = vcmp.eq.f32.partialorder %v530, 8.507059e+37
    %v532 = vand.u32 %v520, 2147483648
    %v533 = vor.u32 1.1754944e-38, %v532
    %v534 = vsel %vm531, %v533, %v529
    %v535 = vmul.f32 1.0, %v534
    %537 = vrot.lane.b32.xlu0 %v514, 64
    %v538 = vpop.permute.xlu0 %537
    %v540 = vmul.f32 %v535, %v538
    %542 = vrot.lane.b32.xlu0 %v540, 64
    %v543 = vpop.permute.xlu0 %542
    %v545 = vadd.f32 %v495, %v543
    %v546 = vtanh.pop %v545
    %v547 = vsub.f32 1.0, %v535
    %549 = vrot.lane.b32.xlu0 %v546, 96
    %v550 = vpop.permute.xlu0 %549
    %v552 = vmul.f32 %v547, %v550
    %v553 = vmul.f32 %v535, %v466
    %v554 = vadd.f32 %v552, %v553
    %556 = vrot.lane.b32.xlu0 %v554, 96
    %v557 = vpop.permute.xlu0 %556
    %v558 = vsel %vm49, %v557, 0
    %560 = vmatpush.msra.mxu0 0.0
    %561 = vmatpush.msra.mxu0 0.0
    %562 = vmatpush.msra.mxu0 0.0
    %563 = vmatpush.msra.mxu0 0.0
    %564 = vmatpush.msra.mxu0 0.0
    %565 = vmatpush.msra.mxu0 0.0
    %566 = vmatpush.msra.mxu0 0.0
    %567 = vmatpush.msra.mxu0 0.0
    %568 = vmatpush.msra.mxu0 0.0
    %569 = vmatpush.msra.mxu0 0.0
    %570 = vmatpush.msra.mxu0 0.0
    %571 = vmatpush.msra.mxu0 0.0
    %572 = vmatpush.msra.mxu0 %v37
    %573 = vmatpush.msra.mxu0 %v36
    %574 = vmatpush.msra.mxu0 %v35
    %575 = vmatpush.msra.mxu0 %v34
    %576 = vmatmul.f32.gmra.mxu0 %v558
    %v577 = vpop.f32.mrf.mxu0
    %v578 = vadd.f32 %v113, %v577
    %579 = vdwg.mxu0
    %s580 = scalar_lea.vmem [#allocation2], 10
    %581 = vst.msk [vmem:[%s580] sm:$0x3] %vm140, %v578
    %s582 = scalar_lea.vmem %s0, 12
    %v583 = vld [vmem:[%s582] sm:$0x3]
    %584 = vmatpush.msra.mxu0 0.0
    %585 = vmatpush.msra.mxu0 0.0
    %586 = vmatpush.msra.mxu0 0.0
    %587 = vmatpush.msra.mxu0 0.0
    %588 = vmatpush.msra.mxu0 0.0
    %589 = vmatpush.msra.mxu0 0.0
    %590 = vmatpush.msra.mxu0 0.0
    %591 = vmatpush.msra.mxu0 0.0
    %592 = vmatpush.msra.mxu0 0.0
    %593 = vmatpush.msra.mxu0 0.0
    %594 = vmatpush.msra.mxu0 0.0
    %595 = vmatpush.msra.mxu0 0.0
    %596 = vmatpush.msra.mxu0 %v43
    %597 = vmatpush.msra.mxu0 %v42
    %598 = vmatpush.msra.mxu0 %v41
    %599 = vmatpush.msra.mxu0 %v40
    %600 = vmatmul.f32.gmra.mxu0 %v558
    %v601 = vpop.f32.mrf.mxu0
    %v602 = vadd.f32 %v47, %v601
    %603 = vdwg.mxu0
    %v604 = vadd.f32 %v583, %v602
    %v605 = vsub.f32 0.0, %v604
    %v606 = vmul.f32 %v605, 1.442695
    %v607 = vpow.pop %v606
    %v608 = vadd.f32 %v607, 1.0
    %v609 = vrcp.pop %v608
    %v610 = vmul.f32 %v608, %v609
    %v611 = vsub.f32 1.0, %v610
    %v612 = vmul.f32 %v609, %v611
    %v613 = vadd.f32 %v609, %v612
    %vm614 = vweird.f32 %v608
    %vm615 = vweird.f32 %v609
    %vm616 = vmor %vm614, %vm615
    %v617 = vsel %vm616, %v609, %v613
    %v618 = vand.u32 2147483647, %v608
    %vm619 = vcmp.eq.f32.partialorder %v618, 8.507059e+37
    %v620 = vand.u32 %v608, 2147483648
    %v621 = vor.u32 1.1754944e-38, %v620
    %v622 = vsel %vm619, %v621, %v617
    %v623 = vmul.f32 1.0, %v622
    %625 = vrot.lane.b32.xlu0 %v602, 64
    %v626 = vpop.permute.xlu0 %625
    %v628 = vmul.f32 %v623, %v626
    %630 = vrot.lane.b32.xlu0 %v628, 64
    %v631 = vpop.permute.xlu0 %630
    %v633 = vadd.f32 %v583, %v631
    %v634 = vtanh.pop %v633
    %v635 = vsub.f32 1.0, %v623
    %637 = vrot.lane.b32.xlu0 %v634, 96
    %v638 = vpop.permute.xlu0 %637
    %v640 = vmul.f32 %v635, %v638
    %v641 = vmul.f32 %v623, %v554
    %v642 = vadd.f32 %v640, %v641
    %644 = vrot.lane.b32.xlu0 %v642, 96
    %v645 = vpop.permute.xlu0 %644
    %v646 = vsel %vm49, %v645, 0
    %648 = vmatpush.msra.mxu0 0.0
    %649 = vmatpush.msra.mxu0 0.0
    %650 = vmatpush.msra.mxu0 0.0
    %651 = vmatpush.msra.mxu0 0.0
    %652 = vmatpush.msra.mxu0 0.0
    %653 = vmatpush.msra.mxu0 0.0
    %654 = vmatpush.msra.mxu0 0.0
    %655 = vmatpush.msra.mxu0 0.0
    %656 = vmatpush.msra.mxu0 0.0
    %657 = vmatpush.msra.mxu0 0.0
    %658 = vmatpush.msra.mxu0 0.0
    %659 = vmatpush.msra.mxu0 0.0
    %660 = vmatpush.msra.mxu0 %v37
    %661 = vmatpush.msra.mxu0 %v36
    %662 = vmatpush.msra.mxu0 %v35
    %663 = vmatpush.msra.mxu0 %v34
    %664 = vmatmul.f32.gmra.mxu0 %v646
    %v665 = vpop.f32.mrf.mxu0
    %v666 = vadd.f32 %v113, %v665
    %667 = vdwg.mxu0
    %s668 = scalar_lea.vmem [#allocation2], 12
    %669 = vst.msk [vmem:[%s668] sm:$0x3] %vm140, %v666
    %s670 = scalar_lea.vmem %s0, 14
    %v671 = vld [vmem:[%s670] sm:$0x3]
    %672 = vmatpush.msra.mxu0 0.0
    %673 = vmatpush.msra.mxu0 0.0
    %674 = vmatpush.msra.mxu0 0.0
    %675 = vmatpush.msra.mxu0 0.0
    %676 = vmatpush.msra.mxu0 0.0
    %677 = vmatpush.msra.mxu0 0.0
    %678 = vmatpush.msra.mxu0 0.0
    %679 = vmatpush.msra.mxu0 0.0
    %680 = vmatpush.msra.mxu0 0.0
    %681 = vmatpush.msra.mxu0 0.0
    %682 = vmatpush.msra.mxu0 0.0
    %683 = vmatpush.msra.mxu0 0.0
    %684 = vmatpush.msra.mxu0 %v43
    %685 = vmatpush.msra.mxu0 %v42
    %686 = vmatpush.msra.mxu0 %v41
    %687 = vmatpush.msra.mxu0 %v40
    %688 = vmatmul.f32.gmra.mxu0 %v646
    %v689 = vpop.f32.mrf.mxu0
    %v690 = vadd.f32 %v47, %v689
    %691 = vdwg.mxu0
    %v692 = vadd.f32 %v671, %v690
    %v693 = vsub.f32 0.0, %v692
    %v694 = vmul.f32 %v693, 1.442695
    %v695 = vpow.pop %v694
    %v696 = vadd.f32 %v695, 1.0
    %v697 = vrcp.pop %v696
    %v698 = vmul.f32 %v696, %v697
    %v699 = vsub.f32 1.0, %v698
    %v700 = vmul.f32 %v697, %v699
    %v701 = vadd.f32 %v697, %v700
    %vm702 = vweird.f32 %v696
    %vm703 = vweird.f32 %v697
    %vm704 = vmor %vm702, %vm703
    %v705 = vsel %vm704, %v697, %v701
    %v706 = vand.u32 2147483647, %v696
    %vm707 = vcmp.eq.f32.partialorder %v706, 8.507059e+37
    %v708 = vand.u32 %v696, 2147483648
    %v709 = vor.u32 1.1754944e-38, %v708
    %v710 = vsel %vm707, %v709, %v705
    %v711 = vmul.f32 1.0, %v710
    %713 = vrot.lane.b32.xlu0 %v690, 64
    %v714 = vpop.permute.xlu0 %713
    %v716 = vmul.f32 %v711, %v714
    %718 = vrot.lane.b32.xlu0 %v716, 64
    %v719 = vpop.permute.xlu0 %718
    %v721 = vadd.f32 %v671, %v719
    %v722 = vtanh.pop %v721
    %v723 = vsub.f32 1.0, %v711
    %725 = vrot.lane.b32.xlu0 %v722, 96
    %v726 = vpop.permute.xlu0 %725
    %v728 = vmul.f32 %v723, %v726
    %v729 = vmul.f32 %v711, %v642
    %v730 = vadd.f32 %v728, %v729
    %732 = vrot.lane.b32.xlu0 %v730, 96
    %v733 = vpop.permute.xlu0 %732
    %v734 = vsel %vm49, %v733, 0
    %736 = vmatpush.msra.mxu0 0.0
    %737 = vmatpush.msra.mxu0 0.0
    %738 = vmatpush.msra.mxu0 0.0
    %739 = vmatpush.msra.mxu0 0.0
    %740 = vmatpush.msra.mxu0 0.0
    %741 = vmatpush.msra.mxu0 0.0
    %742 = vmatpush.msra.mxu0 0.0
    %743 = vmatpush.msra.mxu0 0.0
    %744 = vmatpush.msra.mxu0 0.0
    %745 = vmatpush.msra.mxu0 0.0
    %746 = vmatpush.msra.mxu0 0.0
    %747 = vmatpush.msra.mxu0 0.0
    %748 = vmatpush.msra.mxu0 %v37
    %749 = vmatpush.msra.mxu0 %v36
    %750 = vmatpush.msra.mxu0 %v35
    %751 = vmatpush.msra.mxu0 %v34
    %752 = vmatmul.f32.gmra.mxu0 %v734
    %v753 = vpop.f32.mrf.mxu0
    %v754 = vadd.f32 %v113, %v753
    %755 = vdwg.mxu0
    %s756 = scalar_lea.vmem [#allocation2], 14
    %757 = vst.msk [vmem:[%s756] sm:$0x3] %vm140, %v754
    %s758 = scalar_lea.vmem %s1, 32
    %v759 = vld [vmem:[%s758] sm:$0xff]
    %v760 = vld [vmem:[%s758 + $0x8] sm:$0xff]
    %v761 = vld [vmem:[%s758 + $0x10] sm:$0xff]
    %v762 = vld [vmem:[%s758 + $0x18] sm:$0xff]
    %s763 = scalar_lea.vmem %s2, 1
    %v764 = vld [vmem:[%s763] sm:$0x1]
    %v765 = vld [vmem:[#allocation2] sm:$0x3]
    %v767 = vperm.slane %v764, 0
    %769 = vmatpush.msra.mxu0 0.0
    %770 = vmatpush.msra.mxu0 0.0
    %771 = vmatpush.msra.mxu0 0.0
    %772 = vmatpush.msra.mxu0 0.0
    %773 = vmatpush.msra.mxu0 0.0
    %774 = vmatpush.msra.mxu0 0.0
    %775 = vmatpush.msra.mxu0 0.0
    %776 = vmatpush.msra.mxu0 0.0
    %777 = vmatpush.msra.mxu0 0.0
    %778 = vmatpush.msra.mxu0 0.0
    %779 = vmatpush.msra.mxu0 0.0
    %780 = vmatpush.msra.mxu0 0.0
    %781 = vmatpush.msra.mxu0 %v762
    %782 = vmatpush.msra.mxu0 %v761
    %783 = vmatpush.msra.mxu0 %v760
    %784 = vmatpush.msra.mxu0 %v759
    %785 = vmatmul.f32.gmra.mxu0 %v51
    %v786 = vpop.f32.mrf.mxu0
    %v787 = vadd.f32 %v767, %v786
    %788 = vdwg.mxu0
    %v789 = vadd.f32 %v765, %v787
    %v790 = vsub.f32 0.0, %v789
    %v791 = vmul.f32 %v790, 1.442695
    %v792 = vpow.pop %v791
    %v793 = vadd.f32 %v792, 1.0
    %v794 = vrcp.pop %v793
    %v795 = vmul.f32 %v793, %v794
    %v796 = vsub.f32 1.0, %v795
    %v797 = vmul.f32 %v794, %v796
    %v798 = vadd.f32 %v794, %v797
    %vm799 = vweird.f32 %v793
    %vm800 = vweird.f32 %v794
    %vm801 = vmor %vm799, %vm800
    %v802 = vsel %vm801, %v794, %v798
    %v803 = vand.u32 2147483647, %v793
    %vm804 = vcmp.eq.f32.partialorder %v803, 8.507059e+37
    %v805 = vand.u32 %v793, 2147483648
    %v806 = vor.u32 1.1754944e-38, %v805
    %v807 = vsel %vm804, %v806, %v802
    %v808 = vmul.f32 1.0, %v807
    %810 = vrot.lane.b32.xlu0 %v787, 64
    %v811 = vpop.permute.xlu0 %810
    %v813 = vmul.f32 %v808, %v811
    %815 = vrot.lane.b32.xlu0 %v813, 64
    %v816 = vpop.permute.xlu0 %815
    %v818 = vadd.f32 %v765, %v816
    %v819 = vtanh.pop %v818
    %v820 = vsub.f32 1.0, %v808
    %822 = vrot.lane.b32.xlu0 %v819, 96
    %v823 = vpop.permute.xlu0 %822
    %v825 = vmul.f32 %v820, %v823
    %v826 = vmul.f32 %v808, 0.0
    %v827 = vadd.f32 %v825, %v826
    %v828 = vld [vmem:[%s228] sm:$0x3]
    %830 = vrot.lane.b32.xlu0 %v827, 96
    %v831 = vpop.permute.xlu0 %830
    %v832 = vsel %vm49, %v831, 0
    %834 = vmatpush.msra.mxu0 0.0
    %835 = vmatpush.msra.mxu0 0.0
    %836 = vmatpush.msra.mxu0 0.0
    %837 = vmatpush.msra.mxu0 0.0
    %838 = vmatpush.msra.mxu0 0.0
    %839 = vmatpush.msra.mxu0 0.0
    %840 = vmatpush.msra.mxu0 0.0
    %841 = vmatpush.msra.mxu0 0.0
    %842 = vmatpush.msra.mxu0 0.0
    %843 = vmatpush.msra.mxu0 0.0
    %844 = vmatpush.msra.mxu0 0.0
    %845 = vmatpush.msra.mxu0 0.0
    %846 = vmatpush.msra.mxu0 %v762
    %847 = vmatpush.msra.mxu0 %v761
    %848 = vmatpush.msra.mxu0 %v760
    %849 = vmatpush.msra.mxu0 %v759
    %850 = vmatmul.f32.gmra.mxu0 %v832
    %v851 = vpop.f32.mrf.mxu0
    %v852 = vadd.f32 %v767, %v851
    %853 = vdwg.mxu0
    %v854 = vadd.f32 %v828, %v852
    %v855 = vsub.f32 0.0, %v854
    %v856 = vmul.f32 %v855, 1.442695
    %v857 = vpow.pop %v856
    %v858 = vadd.f32 %v857, 1.0
    %v859 = vrcp.pop %v858
    %v860 = vmul.f32 %v858, %v859
    %v861 = vsub.f32 1.0, %v860
    %v862 = vmul.f32 %v859, %v861
    %v863 = vadd.f32 %v859, %v862
    %vm864 = vweird.f32 %v858
    %vm865 = vweird.f32 %v859
    %vm866 = vmor %vm864, %vm865
    %v867 = vsel %vm866, %v859, %v863
    %v868 = vand.u32 2147483647, %v858
    %vm869 = vcmp.eq.f32.partialorder %v868, 8.507059e+37
    %v870 = vand.u32 %v858, 2147483648
    %v871 = vor.u32 1.1754944e-38, %v870
    %v872 = vsel %vm869, %v871, %v867
    %v873 = vmul.f32 1.0, %v872
    %875 = vrot.lane.b32.xlu0 %v852, 64
    %v876 = vpop.permute.xlu0 %875
    %v878 = vmul.f32 %v873, %v876
    %880 = vrot.lane.b32.xlu0 %v878, 64
    %v881 = vpop.permute.xlu0 %880
    %v883 = vadd.f32 %v828, %v881
    %v884 = vtanh.pop %v883
    %v885 = vsub.f32 1.0, %v873
    %887 = vrot.lane.b32.xlu0 %v884, 96
    %v888 = vpop.permute.xlu0 %887
    %v890 = vmul.f32 %v885, %v888
    %v891 = vmul.f32 %v873, %v827
    %v892 = vadd.f32 %v890, %v891
    %v893 = vld [vmem:[%s316] sm:$0x3]
    %895 = vrot.lane.b32.xlu0 %v892, 96
    %v896 = vpop.permute.xlu0 %895
    %v897 = vsel %vm49, %v896, 0
    %899 = vmatpush.msra.mxu0 0.0
    %900 = vmatpush.msra.mxu0 0.0
    %901 = vmatpush.msra.mxu0 0.0
    %902 = vmatpush.msra.mxu0 0.0
    %903 = vmatpush.msra.mxu0 0.0
    %904 = vmatpush.msra.mxu0 0.0
    %905 = vmatpush.msra.mxu0 0.0
    %906 = vmatpush.msra.mxu0 0.0
    %907 = vmatpush.msra.mxu0 0.0
    %908 = vmatpush.msra.mxu0 0.0
    %909 = vmatpush.msra.mxu0 0.0
    %910 = vmatpush.msra.mxu0 0.0
    %911 = vmatpush.msra.mxu0 %v762
    %912 = vmatpush.msra.mxu0 %v761
    %913 = vmatpush.msra.mxu0 %v760
    %914 = vmatpush.msra.mxu0 %v759
    %915 = vmatmul.f32.gmra.mxu0 %v897
    %v916 = vpop.f32.mrf.mxu0
    %v917 = vadd.f32 %v767, %v916
    %918 = vdwg.mxu0
    %v919 = vadd.f32 %v893, %v917
    %v920 = vsub.f32 0.0, %v919
    %v921 = vmul.f32 %v920, 1.442695
    %v922 = vpow.pop %v921
    %v923 = vadd.f32 %v922, 1.0
    %v924 = vrcp.pop %v923
    %v925 = vmul.f32 %v923, %v924
    %v926 = vsub.f32 1.0, %v925
    %v927 = vmul.f32 %v924, %v926
    %v928 = vadd.f32 %v924, %v927
    %vm929 = vweird.f32 %v923
    %vm930 = vweird.f32 %v924
    %vm931 = vmor %vm929, %vm930
    %v932 = vsel %vm931, %v924, %v928
    %v933 = vand.u32 2147483647, %v923
    %vm934 = vcmp.eq.f32.partialorder %v933, 8.507059e+37
    %v935 = vand.u32 %v923, 2147483648
    %v936 = vor.u32 1.1754944e-38, %v935
    %v937 = vsel %vm934, %v936, %v932
    %v938 = vmul.f32 1.0, %v937
    %940 = vrot.lane.b32.xlu0 %v917, 64
    %v941 = vpop.permute.xlu0 %940
    %v943 = vmul.f32 %v938, %v941
    %945 = vrot.lane.b32.xlu0 %v943, 64
    %v946 = vpop.permute.xlu0 %945
    %v948 = vadd.f32 %v893, %v946
    %v949 = vtanh.pop %v948
    %v950 = vsub.f32 1.0, %v938
    %952 = vrot.lane.b32.xlu0 %v949, 96
    %v953 = vpop.permute.xlu0 %952
    %v955 = vmul.f32 %v950, %v953
    %v956 = vmul.f32 %v938, %v892
    %v957 = vadd.f32 %v955, %v956
    %v958 = vld [vmem:[%s404] sm:$0x3]
    %960 = vrot.lane.b32.xlu0 %v957, 96
    %v961 = vpop.permute.xlu0 %960
    %v962 = vsel %vm49, %v961, 0
    %964 = vmatpush.msra.mxu0 0.0
    %965 = vmatpush.msra.mxu0 0.0
    %966 = vmatpush.msra.mxu0 0.0
    %967 = vmatpush.msra.mxu0 0.0
    %968 = vmatpush.msra.mxu0 0.0
    %969 = vmatpush.msra.mxu0 0.0
    %970 = vmatpush.msra.mxu0 0.0
    %971 = vmatpush.msra.mxu0 0.0
    %972 = vmatpush.msra.mxu0 0.0
    %973 = vmatpush.msra.mxu0 0.0
    %974 = vmatpush.msra.mxu0 0.0
    %975 = vmatpush.msra.mxu0 0.0
    %976 = vmatpush.msra.mxu0 %v762
    %977 = vmatpush.msra.mxu0 %v761
    %978 = vmatpush.msra.mxu0 %v760
    %979 = vmatpush.msra.mxu0 %v759
    %980 = vmatmul.f32.gmra.mxu0 %v962
    %v981 = vpop.f32.mrf.mxu0
    %v982 = vadd.f32 %v767, %v981
    %983 = vdwg.mxu0
    %v984 = vadd.f32 %v958, %v982
    %v985 = vsub.f32 0.0, %v984
    %v986 = vmul.f32 %v985, 1.442695
    %v987 = vpow.pop %v986
    %v988 = vadd.f32 %v987, 1.0
    %v989 = vrcp.pop %v988
    %v990 = vmul.f32 %v988, %v989
    %v991 = vsub.f32 1.0, %v990
    %v992 = vmul.f32 %v989, %v991
    %v993 = vadd.f32 %v989, %v992
    %vm994 = vweird.f32 %v988
    %vm995 = vweird.f32 %v989
    %vm996 = vmor %vm994, %vm995
    %v997 = vsel %vm996, %v989, %v993
    %v998 = vand.u32 2147483647, %v988
    %vm999 = vcmp.eq.f32.partialorder %v998, 8.507059e+37
    %v1000 = vand.u32 %v988, 2147483648
    %v1001 = vor.u32 1.1754944e-38, %v1000
    %v1002 = vsel %vm999, %v1001, %v997
    %v1003 = vmul.f32 1.0, %v1002
    %1005 = vrot.lane.b32.xlu0 %v982, 64
    %v1006 = vpop.permute.xlu0 %1005
    %v1008 = vmul.f32 %v1003, %v1006
    %1010 = vrot.lane.b32.xlu0 %v1008, 64
    %v1011 = vpop.permute.xlu0 %1010
    %v1013 = vadd.f32 %v958, %v1011
    %v1014 = vtanh.pop %v1013
    %v1015 = vsub.f32 1.0, %v1003
    %1017 = vrot.lane.b32.xlu0 %v1014, 96
    %v1018 = vpop.permute.xlu0 %1017
    %v1020 = vmul.f32 %v1015, %v1018
    %v1021 = vmul.f32 %v1003, %v957
    %v1022 = vadd.f32 %v1020, %v1021
    %v1023 = vld [vmem:[%s492] sm:$0x3]
    %1025 = vrot.lane.b32.xlu0 %v1022, 96
    %v1026 = vpop.permute.xlu0 %1025
    %v1027 = vsel %vm49, %v1026, 0
    %1029 = vmatpush.msra.mxu0 0.0
    %1030 = vmatpush.msra.mxu0 0.0
    %1031 = vmatpush.msra.mxu0 0.0
    %1032 = vmatpush.msra.mxu0 0.0
    %1033 = vmatpush.msra.mxu0 0.0
    %1034 = vmatpush.msra.mxu0 0.0
    %1035 = vmatpush.msra.mxu0 0.0
    %1036 = vmatpush.msra.mxu0 0.0
    %1037 = vmatpush.msra.mxu0 0.0
    %1038 = vmatpush.msra.mxu0 0.0
    %1039 = vmatpush.msra.mxu0 0.0
    %1040 = vmatpush.msra.mxu0 0.0
    %1041 = vmatpush.msra.mxu0 %v762
    %1042 = vmatpush.msra.mxu0 %v761
    %1043 = vmatpush.msra.mxu0 %v760
    %1044 = vmatpush.msra.mxu0 %v759
    %1045 = vmatmul.f32.gmra.mxu0 %v1027
    %v1046 = vpop.f32.mrf.mxu0
    %v1047 = vadd.f32 %v767, %v1046
    %1048 = vdwg.mxu0
    %v1049 = vadd.f32 %v1023, %v1047
    %v1050 = vsub.f32 0.0, %v1049
    %v1051 = vmul.f32 %v1050, 1.442695
    %v1052 = vpow.pop %v1051
    %v1053 = vadd.f32 %v1052, 1.0
    %v1054 = vrcp.pop %v1053
    %v1055 = vmul.f32 %v1053, %v1054
    %v1056 = vsub.f32 1.0, %v1055
    %v1057 = vmul.f32 %v1054, %v1056
    %v1058 = vadd.f32 %v1054, %v1057
    %vm1059 = vweird.f32 %v1053
    %vm1060 = vweird.f32 %v1054
    %vm1061 = vmor %vm1059, %vm1060
    %v1062 = vsel %vm1061, %v1054, %v1058
    %v1063 = vand.u32 2147483647, %v1053
    %vm1064 = vcmp.eq.f32.partialorder %v1063, 8.507059e+37
    %v1065 = vand.u32 %v1053, 2147483648
    %v1066 = vor.u32 1.1754944e-38, %v1065
    %v1067 = vsel %vm1064, %v1066, %v1062
    %v1068 = vmul.f32 1.0, %v1067
    %1070 = vrot.lane.b32.xlu0 %v1047, 64
    %v1071 = vpop.permute.xlu0 %1070
    %v1073 = vmul.f32 %v1068, %v1071
    %1075 = vrot.lane.b32.xlu0 %v1073, 64
    %v1076 = vpop.permute.xlu0 %1075
    %v1078 = vadd.f32 %v1023, %v1076
    %v1079 = vtanh.pop %v1078
    %v1080 = vsub.f32 1.0, %v1068
    %1082 = vrot.lane.b32.xlu0 %v1079, 96
    %v1083 = vpop.permute.xlu0 %1082
    %v1085 = vmul.f32 %v1080, %v1083
    %v1086 = vmul.f32 %v1068, %v1022
    %v1087 = vadd.f32 %v1085, %v1086
    %v1088 = vld [vmem:[%s580] sm:$0x3]
    %1090 = vrot.lane.b32.xlu0 %v1087, 96
    %v1091 = vpop.permute.xlu0 %1090
    %v1092 = vsel %vm49, %v1091, 0
    %1094 = vmatpush.msra.mxu0 0.0
    %1095 = vmatpush.msra.mxu0 0.0
    %1096 = vmatpush.msra.mxu0 0.0
    %1097 = vmatpush.msra.mxu0 0.0
    %1098 = vmatpush.msra.mxu0 0.0
    %1099 = vmatpush.msra.mxu0 0.0
    %1100 = vmatpush.msra.mxu0 0.0
    %1101 = vmatpush.msra.mxu0 0.0
    %1102 = vmatpush.msra.mxu0 0.0
    %1103 = vmatpush.msra.mxu0 0.0
    %1104 = vmatpush.msra.mxu0 0.0
    %1105 = vmatpush.msra.mxu0 0.0
    %1106 = vmatpush.msra.mxu0 %v762
    %1107 = vmatpush.msra.mxu0 %v761
    %1108 = vmatpush.msra.mxu0 %v760
    %1109 = vmatpush.msra.mxu0 %v759
    %1110 = vmatmul.f32.gmra.mxu0 %v1092
    %v1111 = vpop.f32.mrf.mxu0
    %v1112 = vadd.f32 %v767, %v1111
    %1113 = vdwg.mxu0
    %v1114 = vadd.f32 %v1088, %v1112
    %v1115 = vsub.f32 0.0, %v1114
    %v1116 = vmul.f32 %v1115, 1.442695
    %v1117 = vpow.pop %v1116
    %v1118 = vadd.f32 %v1117, 1.0
    %v1119 = vrcp.pop %v1118
    %v1120 = vmul.f32 %v1118, %v1119
    %v1121 = vsub.f32 1.0, %v1120
    %v1122 = vmul.f32 %v1119, %v1121
    %v1123 = vadd.f32 %v1119, %v1122
    %vm1124 = vweird.f32 %v1118
    %vm1125 = vweird.f32 %v1119
    %vm1126 = vmor %vm1124, %vm1125
    %v1127 = vsel %vm1126, %v1119, %v1123
    %v1128 = vand.u32 2147483647, %v1118
    %vm1129 = vcmp.eq.f32.partialorder %v1128, 8.507059e+37
    %v1130 = vand.u32 %v1118, 2147483648
    %v1131 = vor.u32 1.1754944e-38, %v1130
    %v1132 = vsel %vm1129, %v1131, %v1127
    %v1133 = vmul.f32 1.0, %v1132
    %1135 = vrot.lane.b32.xlu0 %v1112, 64
    %v1136 = vpop.permute.xlu0 %1135
    %v1138 = vmul.f32 %v1133, %v1136
    %1140 = vrot.lane.b32.xlu0 %v1138, 64
    %v1141 = vpop.permute.xlu0 %1140
    %v1143 = vadd.f32 %v1088, %v1141
    %v1144 = vtanh.pop %v1143
    %v1145 = vsub.f32 1.0, %v1133
    %1147 = vrot.lane.b32.xlu0 %v1144, 96
    %v1148 = vpop.permute.xlu0 %1147
    %v1150 = vmul.f32 %v1145, %v1148
    %v1151 = vmul.f32 %v1133, %v1087
    %v1152 = vadd.f32 %v1150, %v1151
    %v1153 = vld [vmem:[%s668] sm:$0x3]
    %1155 = vrot.lane.b32.xlu0 %v1152, 96
    %v1156 = vpop.permute.xlu0 %1155
    %v1157 = vsel %vm49, %v1156, 0
    %1159 = vmatpush.msra.mxu0 0.0
    %1160 = vmatpush.msra.mxu0 0.0
    %1161 = vmatpush.msra.mxu0 0.0
    %1162 = vmatpush.msra.mxu0 0.0
    %1163 = vmatpush.msra.mxu0 0.0
    %1164 = vmatpush.msra.mxu0 0.0
    %1165 = vmatpush.msra.mxu0 0.0
    %1166 = vmatpush.msra.mxu0 0.0
    %1167 = vmatpush.msra.mxu0 0.0
    %1168 = vmatpush.msra.mxu0 0.0
    %1169 = vmatpush.msra.mxu0 0.0
    %1170 = vmatpush.msra.mxu0 0.0
    %1171 = vmatpush.msra.mxu0 %v762
    %1172 = vmatpush.msra.mxu0 %v761
    %1173 = vmatpush.msra.mxu0 %v760
    %1174 = vmatpush.msra.mxu0 %v759
    %1175 = vmatmul.f32.gmra.mxu0 %v1157
    %v1176 = vpop.f32.mrf.mxu0
    %v1177 = vadd.f32 %v767, %v1176
    %1178 = vdwg.mxu0
    %v1179 = vadd.f32 %v1153, %v1177
    %v1180 = vsub.f32 0.0, %v1179
    %v1181 = vmul.f32 %v1180, 1.442695
    %v1182 = vpow.pop %v1181
    %v1183 = vadd.f32 %v1182, 1.0
    %v1184 = vrcp.pop %v1183
    %v1185 = vmul.f32 %v1183, %v1184
    %v1186 = vsub.f32 1.0, %v1185
    %v1187 = vmul.f32 %v1184, %v1186
    %v1188 = vadd.f32 %v1184, %v1187
    %vm1189 = vweird.f32 %v1183
    %vm1190 = vweird.f32 %v1184
    %vm1191 = vmor %vm1189, %vm1190
    %v1192 = vsel %vm1191, %v1184, %v1188
    %v1193 = vand.u32 2147483647, %v1183
    %vm1194 = vcmp.eq.f32.partialorder %v1193, 8.507059e+37
    %v1195 = vand.u32 %v1183, 2147483648
    %v1196 = vor.u32 1.1754944e-38, %v1195
    %v1197 = vsel %vm1194, %v1196, %v1192
    %v1198 = vmul.f32 1.0, %v1197
    %1200 = vrot.lane.b32.xlu0 %v1177, 64
    %v1201 = vpop.permute.xlu0 %1200
    %v1203 = vmul.f32 %v1198, %v1201
    %1205 = vrot.lane.b32.xlu0 %v1203, 64
    %v1206 = vpop.permute.xlu0 %1205
    %v1208 = vadd.f32 %v1153, %v1206
    %v1209 = vtanh.pop %v1208
    %v1210 = vsub.f32 1.0, %v1198
    %1212 = vrot.lane.b32.xlu0 %v1209, 96
    %v1213 = vpop.permute.xlu0 %1212
    %v1215 = vmul.f32 %v1210, %v1213
    %v1216 = vmul.f32 %v1198, %v1152
    %v1217 = vadd.f32 %v1215, %v1216
    %v1218 = vld [vmem:[%s756] sm:$0x3]
    %1220 = vrot.lane.b32.xlu0 %v1217, 96
    %v1221 = vpop.permute.xlu0 %1220
    %v1222 = vsel %vm49, %v1221, 0
    %1224 = vmatpush.msra.mxu0 0.0
    %1225 = vmatpush.msra.mxu0 0.0
    %1226 = vmatpush.msra.mxu0 0.0
    %1227 = vmatpush.msra.mxu0 0.0
    %1228 = vmatpush.msra.mxu0 0.0
    %1229 = vmatpush.msra.mxu0 0.0
    %1230 = vmatpush.msra.mxu0 0.0
    %1231 = vmatpush.msra.mxu0 0.0
    %1232 = vmatpush.msra.mxu0 0.0
    %1233 = vmatpush.msra.mxu0 0.0
    %1234 = vmatpush.msra.mxu0 0.0
    %1235 = vmatpush.msra.mxu0 0.0
    %1236 = vmatpush.msra.mxu0 %v762
    %1237 = vmatpush.msra.mxu0 %v761
    %1238 = vmatpush.msra.mxu0 %v760
    %1239 = vmatpush.msra.mxu0 %v759
    %1240 = vmatmul.f32.gmra.mxu0 %v1222
    %v1241 = vpop.f32.mrf.mxu0
    %v1242 = vadd.f32 %v767, %v1241
    %1243 = vdwg.mxu0
    %v1244 = vadd.f32 %v1218, %v1242
    %v1245 = vsub.f32 0.0, %v1244
    %v1246 = vmul.f32 %v1245, 1.442695
    %v1247 = vpow.pop %v1246
    %v1248 = vadd.f32 %v1247, 1.0
    %v1249 = vrcp.pop %v1248
    %v1250 = vmul.f32 %v1248, %v1249
    %v1251 = vsub.f32 1.0, %v1250
    %v1252 = vmul.f32 %v1249, %v1251
    %v1253 = vadd.f32 %v1249, %v1252
    %vm1254 = vweird.f32 %v1248
    %vm1255 = vweird.f32 %v1249
    %vm1256 = vmor %vm1254, %vm1255
    %v1257 = vsel %vm1256, %v1249, %v1253
    %v1258 = vand.u32 2147483647, %v1248
    %vm1259 = vcmp.eq.f32.partialorder %v1258, 8.507059e+37
    %v1260 = vand.u32 %v1248, 2147483648
    %v1261 = vor.u32 1.1754944e-38, %v1260
    %v1262 = vsel %vm1259, %v1261, %v1257
    %v1263 = vmul.f32 1.0, %v1262
    %1265 = vrot.lane.b32.xlu0 %v1242, 64
    %v1266 = vpop.permute.xlu0 %1265
    %v1268 = vmul.f32 %v1263, %v1266
    %1270 = vrot.lane.b32.xlu0 %v1268, 64
    %v1271 = vpop.permute.xlu0 %1270
    %v1273 = vadd.f32 %v1218, %v1271
    %v1274 = vtanh.pop %v1273
    %v1275 = vsub.f32 1.0, %v1263
    %1277 = vrot.lane.b32.xlu0 %v1274, 96
    %v1278 = vpop.permute.xlu0 %1277
    %v1280 = vmul.f32 %v1275, %v1278
    %v1281 = vmul.f32 %v1263, %v1217
    %v1282 = vadd.f32 %v1280, %v1281
    %v1283 = vtanh.pop %v1282
    %v1284 = vld [vmem:[%s5] sm:$0xff]
    %v1285 = vld [vmem:[%s5 + $0x8] sm:$0xff]
    %v1286 = vld [vmem:[%s5 + $0x10] sm:$0xff]
    %v1287 = vld [vmem:[%s5 + $0x18] sm:$0xff]
    %v1288 = vld [vmem:[%s6] sm:$0x1]
    %v1290 = vperm.slane %v1288, 0
    %1293 = vrot.lane.b32.xlu0 %v1283, 96
    %v1294 = vpop.permute.xlu0 %1293
    %v1295 = vsel %vm49, %v1294, 0
    %1297 = vmatpush.msra.mxu0 0.0
    %1298 = vmatpush.msra.mxu0 0.0
    %1299 = vmatpush.msra.mxu0 0.0
    %1300 = vmatpush.msra.mxu0 0.0
    %1301 = vmatpush.msra.mxu0 0.0
    %1302 = vmatpush.msra.mxu0 0.0
    %1303 = vmatpush.msra.mxu0 0.0
    %1304 = vmatpush.msra.mxu0 0.0
    %1305 = vmatpush.msra.mxu0 0.0
    %1306 = vmatpush.msra.mxu0 0.0
    %1307 = vmatpush.msra.mxu0 0.0
    %1308 = vmatpush.msra.mxu0 0.0
    %1309 = vmatpush.msra.mxu0 %v1287
    %1310 = vmatpush.msra.mxu0 %v1286
    %1311 = vmatpush.msra.mxu0 %v1285
    %1312 = vmatpush.msra.mxu0 %v1284
    %1313 = vmatmul.f32.gmra.mxu0 %v1295
    %v1314 = vpop.f32.mrf.mxu0
    %v1315 = vadd.f32 %v1290, %v1314
    %1316 = vdwg.mxu0
    %v1317 = vmax.f32 %v1315, 0.0
    %v1318 = vld [vmem:[%s7] sm:$0xff]
    %v1319 = vld [vmem:[%s7 + $0x8] sm:$0xff]
    %v1320 = vld [vmem:[%s7 + $0x10] sm:$0xff]
    %v1321 = vld [vmem:[%s7 + $0x18] sm:$0xff]
    %v1322 = vld [vmem:[%s8] sm:$0x1]
    %v1324 = vperm.slane %v1322, 0
    %v1327 = vsel %vm49, %v1317, 0
    %1329 = vmatpush.msra.mxu0 0.0
    %1330 = vmatpush.msra.mxu0 0.0
    %1331 = vmatpush.msra.mxu0 0.0
    %1332 = vmatpush.msra.mxu0 0.0
    %1333 = vmatpush.msra.mxu0 0.0
    %1334 = vmatpush.msra.mxu0 0.0
    %1335 = vmatpush.msra.mxu0 0.0
    %1336 = vmatpush.msra.mxu0 0.0
    %1337 = vmatpush.msra.mxu0 0.0
    %1338 = vmatpush.msra.mxu0 0.0
    %1339 = vmatpush.msra.mxu0 0.0
    %1340 = vmatpush.msra.mxu0 0.0
    %1341 = vmatpush.msra.mxu0 %v1321
    %1342 = vmatpush.msra.mxu0 %v1320
    %1343 = vmatpush.msra.mxu0 %v1319
    %1344 = vmatpush.msra.mxu0 %v1318
    %1345 = vmatmul.f32.gmra.mxu0 %v1327
    %v1346 = vpop.f32.mrf.mxu0
    %v1347 = vadd.f32 %v1324, %v1346
    %1348 = vdwg.mxu0
    %vm1349 = vcmask 33792
    %1350 = vst.msk [vmem:[#allocation4] sm:$0x3] %vm1349, %v1347
    // Predicated region
    $region38: #{cnngru_forward.3} parent=1 // pred_check
      _
    $region39: #{cnngru_forward.3} parent=1 // pred_check_branch
      %1352 = sbr.rel (0) target = $region41
    $region40: #{cnngru_forward.3} parent=1 // pred_region
      %1354 = vsyncadd [#allocation5], 0
      %s1356 = sshll.u32 [#allocation4], 4
      %s1357 = int_to_ptr.vmem [resolvable:$true] %s1356
      %s1358 = sshll.u32 %s9, 4
      %s1359 = int_to_ptr.hbm [resolvable:$true] %s1358
      %1361 = dma.vmem_to_hbm [thread:$0]  %s1357, 32, %s1359, [#allocation5]
    $region41: #{cnngru_forward.3} parent=1 // pred_fallthru
      _
    // Predicated region
    $region42: #{cnngru_forward.3} parent=1 // pred_check
      _
    $region43: #{cnngru_forward.3} parent=1 // pred_check_branch
      %1363 = sbr.rel (0) target = $region45
    $region44: #{cnngru_forward.3} parent=1 // pred_region
      %1365 = dma.done [#allocation5], 32
    $region45: #{cnngru_forward.3} parent=1 // pred_fallthru
      _
    %1366 = vsyncpa [#allocation5], 1

// kernel: cnngru_forward.2
$region0: #{cnngru_forward.2}
  #allocation0 [shape = 'u32[]', space=smem, size = 0x4, offset = 0x4, fixed_abs, tag = 'smem constant byte address 0x4 - core index']
  #allocation1 [shape = 'u32[72,128]{1,0:T(1,128)}', space=vmem, size = 0x9000, scoped, tag = 'internal scratch']
  #allocation2 [shape = 'f32[12,192]{1,0:T(8,128)}', space=vmem, size = 0x4000, scoped, tag = 'scratch operand']
  #allocation3 [shape = 'f32[10,192]{1,0:T(8,128)}', space=vmem, size = 0x4000, scoped, tag = 'scratch operand']
  %s0 = inlined_call_operand.vmem [shape: bf16[2,16,30], index: 0, kind: input, shape index: {}]
  %s1 = inlined_call_operand.hbm [shape: bf16[30,192], index: 1, kind: input, shape index: {}]
  %s2 = inlined_call_operand.vmem [shape: f32[1,192], index: 2, kind: input, shape index: {}]
  %s3 = inlined_call_operand.hbm [shape: bf16[3,192,192], index: 3, kind: input, shape index: {}]
  %s4 = inlined_call_operand.vmem [shape: f32[1,192], index: 4, kind: input, shape index: {}]
  %s5 = inlined_call_operand.hbm [shape: bf16[5,192,192], index: 5, kind: input, shape index: {}]
  %s6 = inlined_call_operand.vmem [shape: f32[1,192], index: 6, kind: input, shape index: {}]
  %s7 = inlined_call_operand.hbm [shape: bf16[3,192,192], index: 7, kind: input, shape index: {}]
  %s8 = inlined_call_operand.vmem [shape: f32[1,192], index: 8, kind: input, shape index: {}]
  %s9 = inlined_call_operand.vmem [shape: f32[192,96], index: 9, kind: input, shape index: {}]
  %s10 = inlined_call_operand.vmem [shape: f32[1,96], index: 10, kind: input, shape index: {}]
  %s11 = inlined_call_operand.vmem [shape: f32[2,8,96], index: 11, kind: output, shape index: {}]
  %s12 = sld [smem:[#allocation0]]
  $region93: #{cnngru_forward.2} parent=0
    _
  %s14 = ssub.s32 1, %s12
  %s15 = scalar_select 0, %s14, %s12
  $region1: #{cnngru_forward.2} parent=0
    #allocation4 [shape = 'u8[16384]{0}', space=vmem, size = 0x4000, scoped, tag = 'input window, operand 1, single buffered']
    #allocation5 [shape = 's32[2]{0}', space=sflag, size = 0x8, scoped, tag = 'scoped memory for cnngru_forward.2']
    #allocation6 [shape = 'u8[294912]{0}', space=vmem, size = 0x48000, scoped, tag = 'input window, operand 3, single buffered']
    #allocation7 [shape = 's32[1]{0}', space=sflag, size = 0x4, scoped, tag = 'scoped memory for cnngru_forward.2']
    #allocation8 [shape = 'u8[491520]{0}', space=vmem, size = 0x78000, scoped, tag = 'input window, operand 5, single buffered']
    #allocation9 [shape = 'u8[294912]{0}', space=vmem, size = 0x48000, scoped, tag = 'input window, operand 7, single buffered']
    #allocation10 [shape = 's32[1]{0}', space=sflag, size = 0x4, scoped, tag = 'scoped memory for cnngru_forward.2']
    %16 = vsyncpa [#allocation5], 0
    %17 = vsyncpa [#allocation7], 0
    %18 = vsyncpa [#allocation10], 0
    loop: start=0, step=1, limit=4
    $region2: #{cnngru_forward.2} parent=1 // loop_pre_header
      _
    $region3: #{cnngru_forward.2} parent=1 // loop_header
      %s20 = sphi 0, %s24
      %p21 = scmp.ge.s32.totalorder %s20, 4
      %s30 = sphi 0, %s32
      %s33 = sphi 0, %s30
      %s34 = sphi 0, %s33
      %s50 = sphi 0, %s34
      %s54 = sphi 0, %s54
      %s56 = sphi 0, %s54
      %s57 = sphi 0, %s56
      %s71 = sphi 0, %s57
      %s75 = sphi 0, %s75
      %s77 = sphi 0, %s75
      %s78 = sphi 0, %s77
      %s92 = sphi 0, %s78
      %s96 = sphi 0, %s96
      %s98 = sphi 0, %s96
      %s99 = sphi 0, %s98
      %s113 = sphi 0, %s99
      %s117 = sphi 0, %s117
      %s119 = sphi 0, %s117
      %s120 = sphi 0, %s119
      %s134 = sphi 0, %s120
      %s138 = sphi 0, %s138
      %s140 = sphi 0, %s138
      %s141 = sphi 0, %s140
      %s155 = sphi 0, %s141
      %s159 = sphi 0, %s159
      %s161 = sphi 0, %s159
      %s162 = sphi 0, %s161
      %s176 = sphi 0, %s162
      %s180 = sphi 0, %s180
      %s182 = sphi 0, %s180
      %s183 = sphi 0, %s182
      %s197 = sphi 0, %s183
      %s201 = sphi 0, %s201
      %s203 = sphi 0, %s201
      %s204 = sphi 0, %s203
      %s218 = sphi 0, %s204
      %s222 = sphi 0, %s222
      %s224 = sphi 0, %s222
      %s225 = sphi 0, %s224
      %s239 = sphi 0, %s225
      %s243 = sphi 0, %s243
      %s245 = sphi 0, %s243
      %s246 = sphi 0, %s245
      %s260 = sphi 0, %s246
      %s266 = sphi 0, %s268
      %s269 = sphi 0, %s266
      %s270 = sphi 0, %s269
      %s286 = sphi 0, %s270
    $region4: #{cnngru_forward.2} parent=1 // loop_header_branch
      %23 = sbr.rel (%p21) target = $region8
    $region5: #{cnngru_forward.2} parent=1 // loop_body
      %s25 = ssub.s32 %s20, 1
      %s26 = ssub.s32 %s20, 2
      %s27 = sadd.s32 %s20, 1
      %s28 = ssub.s32 %s20, %s27
      %p29 = scmp.eq.s32.totalorder %s28, 0
      %s31 = sadd.s32 %s30, 1
      %s32 = scalar_select %p29, %s30, %s31
      %p35 = pneg %p29
      %p36 = scmp.eq.s32.totalorder %s20, 1
      %p37 = por %p35, %p36
      %p38 = scmp.ne.s32.totalorder %s30, %s33
      %p39 = scmp.eq.s32.totalorder %s20, 0
      %p40 = por %p38, %p39
      %p41 = scmp.ne.s32.totalorder %s30, %s33
      %p42 = scmp.eq.s32.totalorder %s25, 1
      %p43 = por %p41, %p42
      %p44 = scmp.ne.s32.totalorder %s33, %s34
      %p45 = scmp.eq.s32.totalorder %s25, 0
      %p46 = por %p44, %p45
      %p47 = scmp.ne.s32.totalorder %s33, %s34
      %p48 = scmp.eq.s32.totalorder %s26, 1
      %p49 = por %p47, %p48
      %p51 = scmp.ne.s32.totalorder %s34, %s50
      %p52 = scmp.eq.s32.totalorder %s26, 0
      %p53 = por %p51, %p52
      %s55 = sadd.s32 %s54, 1
      %p58 = scmp.eq.s32.totalorder %s20, 1
      %p59 = scmp.ne.s32.totalorder %s54, %s56
      %p60 = scmp.eq.s32.totalorder %s20, 0
      %p61 = por %p59, %p60
      %p62 = scmp.ne.s32.totalorder %s54, %s56
      %p63 = scmp.eq.s32.totalorder %s25, 1
      %p64 = por %p62, %p63
      %p65 = scmp.ne.s32.totalorder %s56, %s57
      %p66 = scmp.eq.s32.totalorder %s25, 0
      %p67 = por %p65, %p66
      %p68 = scmp.ne.s32.totalorder %s56, %s57
      %p69 = scmp.eq.s32.totalorder %s26, 1
      %p70 = por %p68, %p69
      %p72 = scmp.ne.s32.totalorder %s57, %s71
      %p73 = scmp.eq.s32.totalorder %s26, 0
      %p74 = por %p72, %p73
      %s76 = sadd.s32 %s75, 1
      %p79 = scmp.eq.s32.totalorder %s20, 1
      %p80 = scmp.ne.s32.totalorder %s75, %s77
      %p81 = scmp.eq.s32.totalorder %s20, 0
      %p82 = por %p80, %p81
      %p83 = scmp.ne.s32.totalorder %s75, %s77
      %p84 = scmp.eq.s32.totalorder %s25, 1
      %p85 = por %p83, %p84
      %p86 = scmp.ne.s32.totalorder %s77, %s78
      %p87 = scmp.eq.s32.totalorder %s25, 0
      %p88 = por %p86, %p87
      %p89 = scmp.ne.s32.totalorder %s77, %s78
      %p90 = scmp.eq.s32.totalorder %s26, 1
      %p91 = por %p89, %p90
      %p93 = scmp.ne.s32.totalorder %s78, %s92
      %p94 = scmp.eq.s32.totalorder %s26, 0
      %p95 = por %p93, %p94
      %s97 = sadd.s32 %s96, 1
      %p100 = scmp.eq.s32.totalorder %s20, 1
      %p101 = scmp.ne.s32.totalorder %s96, %s98
      %p102 = scmp.eq.s32.totalorder %s20, 0
      %p103 = por %p101, %p102
      %p104 = scmp.ne.s32.totalorder %s96, %s98
      %p105 = scmp.eq.s32.totalorder %s25, 1
      %p106 = por %p104, %p105
      %p107 = scmp.ne.s32.totalorder %s98, %s99
      %p108 = scmp.eq.s32.totalorder %s25, 0
      %p109 = por %p107, %p108
      %p110 = scmp.ne.s32.totalorder %s98, %s99
      %p111 = scmp.eq.s32.totalorder %s26, 1
      %p112 = por %p110, %p111
      %p114 = scmp.ne.s32.totalorder %s99, %s113
      %p115 = scmp.eq.s32.totalorder %s26, 0
      %p116 = por %p114, %p115
      %s118 = sadd.s32 %s117, 1
      %p121 = scmp.eq.s32.totalorder %s20, 1
      %p122 = scmp.ne.s32.totalorder %s117, %s119
      %p123 = scmp.eq.s32.totalorder %s20, 0
      %p124 = por %p122, %p123
      %p125 = scmp.ne.s32.totalorder %s117, %s119
      %p126 = scmp.eq.s32.totalorder %s25, 1
      %p127 = por %p125, %p126
      %p128 = scmp.ne.s32.totalorder %s119, %s120
      %p129 = scmp.eq.s32.totalorder %s25, 0
      %p130 = por %p128, %p129
      %p131 = scmp.ne.s32.totalorder %s119, %s120
      %p132 = scmp.eq.s32.totalorder %s26, 1
      %p133 = por %p131, %p132
      %p135 = scmp.ne.s32.totalorder %s120, %s134
      %p136 = scmp.eq.s32.totalorder %s26, 0
      %p137 = por %p135, %p136
      %s139 = sadd.s32 %s138, 1
      %p142 = scmp.eq.s32.totalorder %s20, 1
      %p143 = scmp.ne.s32.totalorder %s138, %s140
      %p144 = scmp.eq.s32.totalorder %s20, 0
      %p145 = por %p143, %p144
      %p146 = scmp.ne.s32.totalorder %s138, %s140
      %p147 = scmp.eq.s32.totalorder %s25, 1
      %p148 = por %p146, %p147
      %p149 = scmp.ne.s32.totalorder %s140, %s141
      %p150 = scmp.eq.s32.totalorder %s25, 0
      %p151 = por %p149, %p150
      %p152 = scmp.ne.s32.totalorder %s140, %s141
      %p153 = scmp.eq.s32.totalorder %s26, 1
      %p154 = por %p152, %p153
      %p156 = scmp.ne.s32.totalorder %s141, %s155
      %p157 = scmp.eq.s32.totalorder %s26, 0
      %p158 = por %p156, %p157
      %s160 = sadd.s32 %s159, 1
      %p163 = scmp.eq.s32.totalorder %s20, 1
      %p164 = scmp.ne.s32.totalorder %s159, %s161
      %p165 = scmp.eq.s32.totalorder %s20, 0
      %p166 = por %p164, %p165
      %p167 = scmp.ne.s32.totalorder %s159, %s161
      %p168 = scmp.eq.s32.totalorder %s25, 1
      %p169 = por %p167, %p168
      %p170 = scmp.ne.s32.totalorder %s161, %s162
      %p171 = scmp.eq.s32.totalorder %s25, 0
      %p172 = por %p170, %p171
      %p173 = scmp.ne.s32.totalorder %s161, %s162
      %p174 = scmp.eq.s32.totalorder %s26, 1
      %p175 = por %p173, %p174
      %p177 = scmp.ne.s32.totalorder %s162, %s176
      %p178 = scmp.eq.s32.totalorder %s26, 0
      %p179 = por %p177, %p178
      %s181 = sadd.s32 %s180, 1
      %p184 = scmp.eq.s32.totalorder %s20, 1
      %p185 = scmp.ne.s32.totalorder %s180, %s182
      %p186 = scmp.eq.s32.totalorder %s20, 0
      %p187 = por %p185, %p186
      %p188 = scmp.ne.s32.totalorder %s180, %s182
      %p189 = scmp.eq.s32.totalorder %s25, 1
      %p190 = por %p188, %p189
      %p191 = scmp.ne.s32.totalorder %s182, %s183
      %p192 = scmp.eq.s32.totalorder %s25, 0
      %p193 = por %p191, %p192
      %p194 = scmp.ne.s32.totalorder %s182, %s183
      %p195 = scmp.eq.s32.totalorder %s26, 1
      %p196 = por %p194, %p195
      %p198 = scmp.ne.s32.totalorder %s183, %s197
      %p199 = scmp.eq.s32.totalorder %s26, 0
      %p200 = por %p198, %p199
      %s202 = sadd.s32 %s201, 1
      %p205 = scmp.eq.s32.totalorder %s20, 1
      %p206 = scmp.ne.s32.totalorder %s201, %s203
      %p207 = scmp.eq.s32.totalorder %s20, 0
      %p208 = por %p206, %p207
      %p209 = scmp.ne.s32.totalorder %s201, %s203
      %p210 = scmp.eq.s32.totalorder %s25, 1
      %p211 = por %p209, %p210
      %p212 = scmp.ne.s32.totalorder %s203, %s204
      %p213 = scmp.eq.s32.totalorder %s25, 0
      %p214 = por %p212, %p213
      %p215 = scmp.ne.s32.totalorder %s203, %s204
      %p216 = scmp.eq.s32.totalorder %s26, 1
      %p217 = por %p215, %p216
      %p219 = scmp.ne.s32.totalorder %s204, %s218
      %p220 = scmp.eq.s32.totalorder %s26, 0
      %p221 = por %p219, %p220
      %s223 = sadd.s32 %s222, 1
      %p226 = scmp.eq.s32.totalorder %s20, 1
      %p227 = scmp.ne.s32.totalorder %s222, %s224
      %p228 = scmp.eq.s32.totalorder %s20, 0
      %p229 = por %p227, %p228
      %p230 = scmp.ne.s32.totalorder %s222, %s224
      %p231 = scmp.eq.s32.totalorder %s25, 1
      %p232 = por %p230, %p231
      %p233 = scmp.ne.s32.totalorder %s224, %s225
      %p234 = scmp.eq.s32.totalorder %s25, 0
      %p235 = por %p233, %p234
      %p236 = scmp.ne.s32.totalorder %s224, %s225
      %p237 = scmp.eq.s32.totalorder %s26, 1
      %p238 = por %p236, %p237
      %p240 = scmp.ne.s32.totalorder %s225, %s239
      %p241 = scmp.eq.s32.totalorder %s26, 0
      %p242 = por %p240, %p241
      %s244 = sadd.s32 %s243, 1
      %p247 = scmp.eq.s32.totalorder %s20, 1
      %p248 = scmp.ne.s32.totalorder %s243, %s245
      %p249 = scmp.eq.s32.totalorder %s20, 0
      %p250 = por %p248, %p249
      %p251 = scmp.ne.s32.totalorder %s243, %s245
      %p252 = scmp.eq.s32.totalorder %s25, 1
      %p253 = por %p251, %p252
      %p254 = scmp.ne.s32.totalorder %s245, %s246
      %p255 = scmp.eq.s32.totalorder %s25, 0
      %p256 = por %p254, %p255
      %p257 = scmp.ne.s32.totalorder %s245, %s246
      %p258 = scmp.eq.s32.totalorder %s26, 1
      %p259 = por %p257, %p258
      %p261 = scmp.ne.s32.totalorder %s246, %s260
      %p262 = scmp.eq.s32.totalorder %s26, 0
      %p263 = por %p261, %p262
      %s264 = ssub.s32 %s20, %s27
      %p265 = scmp.eq.s32.totalorder %s264, 0
      %s267 = sadd.s32 %s266, 1
      %s268 = scalar_select %p265, %s266, %s267
      %p271 = pneg %p265
      %p272 = scmp.eq.s32.totalorder %s20, 1
      %p273 = por %p271, %p272
      %p274 = scmp.ne.s32.totalorder %s266, %s269
      %p275 = scmp.eq.s32.totalorder %s20, 0
      %p276 = por %p274, %p275
      %p277 = scmp.ne.s32.totalorder %s266, %s269
      %p278 = scmp.eq.s32.totalorder %s25, 1
      %p279 = por %p277, %p278
      %p280 = scmp.ne.s32.totalorder %s269, %s270
      %p281 = scmp.eq.s32.totalorder %s25, 0
      %p282 = por %p280, %p281
      %p283 = scmp.ne.s32.totalorder %s269, %s270
      %p284 = scmp.eq.s32.totalorder %s26, 1
      %p285 = por %p283, %p284
      %p287 = scmp.ne.s32.totalorder %s270, %s286
      %p288 = scmp.eq.s32.totalorder %s26, 0
      %p289 = por %p287, %p288
      %p290 = scmp.le.s32.totalorder 1, %s20
      %p291 = scmp.lt.s32.totalorder %s20, 3
      %p292 = pnand %p290, %p291
      %p293 = pneg %p292
      // Predicated region
      $region9: #{cnngru_forward.2} parent=5 // pred_check
        _
      $region10: #{cnngru_forward.2} parent=5 // pred_check_branch
        %295 = sbr.rel (%p292) target = $region12
      $region11: #{cnngru_forward.2} parent=5 // pred_region
        %s296 = ssub.s32 %s20, 1
        // Predicated region
        $region13: #{cnngru_forward.2} parent=11 // pred_check
          %p297 = pneg %p67
        $region14: #{cnngru_forward.2} parent=11 // pred_check_branch
          %299 = sbr.rel (%p297) target = $region16
        $region15: #{cnngru_forward.2} parent=11 // pred_region
          %301 = vsyncadd [#allocation5], 0
          %s302 = sshll.u32 %s1, 4
          %s303 = int_to_ptr.hbm [resolvable:$true] %s302
          %s304 = sshll.u32 [#allocation4], 4
          %s305 = int_to_ptr.vmem [resolvable:$true] %s304
          %310 = dma.hbm_to_vmem [thread:$0]  %s303, 512, %s305, [#allocation5], 128, 128, 8
        $region16: #{cnngru_forward.2} parent=11 // pred_fallthru
          _
        // Predicated region
        $region17: #{cnngru_forward.2} parent=11 // pred_check
          %p311 = pneg %p88
        $region18: #{cnngru_forward.2} parent=11 // pred_check_branch
          %313 = sbr.rel (%p311) target = $region20
        $region19: #{cnngru_forward.2} parent=11 // pred_region
          _
        $region20: #{cnngru_forward.2} parent=11 // pred_fallthru
          _
        // Predicated region
        $region21: #{cnngru_forward.2} parent=11 // pred_check
          %p314 = pneg %p109
        $region22: #{cnngru_forward.2} parent=11 // pred_check_branch
          %316 = sbr.rel (%p314) target = $region24
        $region23: #{cnngru_forward.2} parent=11 // pred_region
          %318 = vsyncadd [#allocation7], 0
          %s319 = sshll.u32 %s3, 4
          %s320 = int_to_ptr.hbm [resolvable:$true] %s319
          %s321 = sshll.u32 [#allocation6], 4
          %s322 = int_to_ptr.vmem [resolvable:$true] %s321
          %327 = dma.hbm_to_vmem [thread:$0]  %s320, 9216, %s322, [#allocation7], 128, 128, 8
        $region24: #{cnngru_forward.2} parent=11 // pred_fallthru
          _
        // Predicated region
        $region25: #{cnngru_forward.2} parent=11 // pred_check
          %p328 = pneg %p130
        $region26: #{cnngru_forward.2} parent=11 // pred_check_branch
          %330 = sbr.rel (%p328) target = $region28
        $region27: #{cnngru_forward.2} parent=11 // pred_region
          _
        $region28: #{cnngru_forward.2} parent=11 // pred_fallthru
          _
        // Predicated region
        $region29: #{cnngru_forward.2} parent=11 // pred_check
          %p331 = pneg %p151
        $region30: #{cnngru_forward.2} parent=11 // pred_check_branch
          %333 = sbr.rel (%p331) target = $region32
        $region31: #{cnngru_forward.2} parent=11 // pred_region
          %335 = vsyncadd [#allocation7], 0
          %s336 = sshll.u32 %s5, 4
          %s337 = int_to_ptr.hbm [resolvable:$true] %s336
          %s338 = sshll.u32 [#allocation8], 4
          %s339 = int_to_ptr.vmem [resolvable:$true] %s338
          %344 = dma.hbm_to_vmem [thread:$0]  %s337, 15360, %s339, [#allocation7], 128, 128, 8
        $region32: #{cnngru_forward.2} parent=11 // pred_fallthru
          _
        // Predicated region
        $region33: #{cnngru_forward.2} parent=11 // pred_check
          %p345 = pneg %p172
        $region34: #{cnngru_forward.2} parent=11 // pred_check_branch
          %347 = sbr.rel (%p345) target = $region36
        $region35: #{cnngru_forward.2} parent=11 // pred_region
          _
        $region36: #{cnngru_forward.2} parent=11 // pred_fallthru
          _
        // Predicated region
        $region37: #{cnngru_forward.2} parent=11 // pred_check
          %p348 = pneg %p193
        $region38: #{cnngru_forward.2} parent=11 // pred_check_branch
          %350 = sbr.rel (%p348) target = $region40
        $region39: #{cnngru_forward.2} parent=11 // pred_region
          %352 = vsyncadd [#allocation10], 0
          %s353 = sshll.u32 %s7, 4
          %s354 = int_to_ptr.hbm [resolvable:$true] %s353
          %s355 = sshll.u32 [#allocation9], 4
          %s356 = int_to_ptr.vmem [resolvable:$true] %s355
          %361 = dma.hbm_to_vmem [thread:$0]  %s354, 9216, %s356, [#allocation10], 128, 128, 8
        $region40: #{cnngru_forward.2} parent=11 // pred_fallthru
          _
        // Predicated region
        $region41: #{cnngru_forward.2} parent=11 // pred_check
          %p362 = pneg %p214
        $region42: #{cnngru_forward.2} parent=11 // pred_check_branch
          %364 = sbr.rel (%p362) target = $region44
        $region43: #{cnngru_forward.2} parent=11 // pred_region
          _
        $region44: #{cnngru_forward.2} parent=11 // pred_fallthru
          _
        // Predicated region
        $region45: #{cnngru_forward.2} parent=11 // pred_check
          %p365 = pneg %p235
        $region46: #{cnngru_forward.2} parent=11 // pred_check_branch
          %367 = sbr.rel (%p365) target = $region48
        $region47: #{cnngru_forward.2} parent=11 // pred_region
          _
        $region48: #{cnngru_forward.2} parent=11 // pred_fallthru
          _
        // Predicated region
        $region49: #{cnngru_forward.2} parent=11 // pred_check
          %p368 = pneg %p256
        $region50: #{cnngru_forward.2} parent=11 // pred_check_branch
          %370 = sbr.rel (%p368) target = $region52
        $region51: #{cnngru_forward.2} parent=11 // pred_region
          _
        $region52: #{cnngru_forward.2} parent=11 // pred_fallthru
          _
      $region12: #{cnngru_forward.2} parent=5 // pred_fallthru
        _
      %p371 = scmp.lt.s32.totalorder %s20, 2
      // Predicated region
      $region53: #{cnngru_forward.2} parent=5 // pred_check
        %p372 = pneg %p371
      $region54: #{cnngru_forward.2} parent=5 // pred_check_branch
        %374 = sbr.rel (%p372) target = $region56
      $region55: #{cnngru_forward.2} parent=5 // pred_region
        // Predicated region
        $region57: #{cnngru_forward.2} parent=55 // pred_check
          %p375 = pneg %p40
        $region58: #{cnngru_forward.2} parent=55 // pred_check_branch
          %377 = sbr.rel (%p375) target = $region60
        $region59: #{cnngru_forward.2} parent=55 // pred_region
          %p378 = scmp.lt.s32.totalorder %s20, 1
          %s379 = scalar_select %p378, %s20, 1
          %s380 = smul.addr %s379, 2
          %s381 = smul.addr %s380, 4
          %s382 = scalar_lea.vmem %s0, %s381
        $region60: #{cnngru_forward.2} parent=55 // pred_fallthru
          _
      $region56: #{cnngru_forward.2} parent=5 // pred_fallthru
        _
      %p383 = scmp.le.s32.totalorder 1, %s20
      %p384 = scmp.lt.s32.totalorder %s20, 3
      %p385 = pnand %p383, %p384
      %p386 = pneg %p385
      // Predicated region
      $region61: #{cnngru_forward.2} parent=5 // pred_check
        _
      $region62: #{cnngru_forward.2} parent=5 // pred_check_branch
        %388 = sbr.rel (%p385) target = $region64
      $region63: #{cnngru_forward.2} parent=5 // pred_region
        %s389 = ssub.s32 %s20, 1
        // Predicated region
        $region65: #{cnngru_forward.2} parent=63 // pred_check
          %p390 = pneg %p67
        $region66: #{cnngru_forward.2} parent=63 // pred_check_branch
          %392 = sbr.rel (%p390) target = $region68
        $region67: #{cnngru_forward.2} parent=63 // pred_region
          %394 = dma.done [#allocation5], 512
        $region68: #{cnngru_forward.2} parent=63 // pred_fallthru
          _
        // Predicated region
        $region69: #{cnngru_forward.2} parent=63 // pred_check
          %p395 = pneg %p109
        $region70: #{cnngru_forward.2} parent=63 // pred_check_branch
          %397 = sbr.rel (%p395) target = $region72
        $region71: #{cnngru_forward.2} parent=63 // pred_region
          %399 = dma.done [#allocation7], 9216
        $region72: #{cnngru_forward.2} parent=63 // pred_fallthru
          _
        // Predicated region
        $region73: #{cnngru_forward.2} parent=63 // pred_check
          %p400 = pneg %p151
        $region74: #{cnngru_forward.2} parent=63 // pred_check_branch
          %402 = sbr.rel (%p400) target = $region76
        $region75: #{cnngru_forward.2} parent=63 // pred_region
          %404 = dma.done [#allocation7], 15360
        $region76: #{cnngru_forward.2} parent=63 // pred_fallthru
          _
        // Predicated region
        $region77: #{cnngru_forward.2} parent=63 // pred_check
          %p405 = pneg %p193
        $region78: #{cnngru_forward.2} parent=63 // pred_check_branch
          %407 = sbr.rel (%p405) target = $region80
        $region79: #{cnngru_forward.2} parent=63 // pred_region
          %409 = dma.done [#allocation10], 9216
        $region80: #{cnngru_forward.2} parent=63 // pred_fallthru
          _
        %p410 = scmp.lt.s32.totalorder %s25, 1
        %s411 = scalar_select %p410, %s25, 1
        %s412 = smul.addr %s411, 2
        %s413 = smul.addr %s412, 4
        %s414 = scalar_lea.vmem %s0, %s413
        %p415 = pneg %p46
        %p416 = pneg %p43
        %p417 = pneg %p67
        %p418 = pneg %p64
        %p419 = pneg %p88
        %p420 = pneg %p85
        %p421 = pneg %p109
        %p422 = pneg %p106
        %p423 = pneg %p130
        %p424 = pneg %p127
        %p425 = pneg %p151
        %p426 = pneg %p148
        %p427 = pneg %p172
        %p428 = pneg %p169
        %p429 = pneg %p193
        %p430 = pneg %p190
        %p431 = pneg %p214
        %p432 = pneg %p211
        %p433 = pneg %p235
        %p434 = pneg %p232
        %p435 = pneg %p256
        %p436 = pneg %p253
        %p437 = pneg %p282
        %p438 = pneg %p279
        %p439 = scmp.lt.s32.totalorder %s25, 1
        %s440 = scalar_select %p439, %s25, 1
        %s441 = smul.addr %s440, 8
        %s442 = scalar_lea.vmem %s11, %s441
        %p443 = scmp.lt.s32.totalorder %s25, 1
        %s444 = scalar_select %p443, %s25, 1
        %s445 = smul.addr %s444, 2
        %s446 = smul.addr %s445, 4
        %s447 = scalar_lea.vmem %s0, %s446
        %p448 = scmp.lt.s32.totalorder %s25, 1
        %s449 = scalar_select %p448, %s25, 1
        %s450 = smul.addr %s449, 8
        %s451 = scalar_lea.vmem %s11, %s450
        %v453 = vld [vmem:[%s447] sm:$0xf]
        %v454 = vld [vmem:[%s447 + $0x4] sm:$0xf]
        %v455 = vld [vmem:[#allocation4] sm:$0xff]
        %v456 = vld [vmem:[#allocation4 + $0x8] sm:$0xff]
        %v457 = vld [vmem:[#allocation4 + $0x10] sm:$0xff]
        %v458 = vld [vmem:[#allocation4 + $0x18] sm:$0x77]
        %v459 = vld [vmem:[%s2] sm:$0x3]
        %v461 = vperm.slane %v459, 0
        %v462 = vperm.slane %v459, 1
        %v467 = vunpack.c.l.b16 %v453
        %v468 = vunpack.c.l.b16 %v454
        %v469 = vpack.c.b16 %v468, %v467
        %v474 = vunpack.c.l.b16 %v455
        %v475 = vunpack.c.h.b16 %v455
        %v476 = vunpack.c.l.b16 %v456
        %v477 = vunpack.c.h.b16 %v456
        %v478 = vunpack.c.l.b16 %v457
        %v479 = vunpack.c.h.b16 %v457
        %v480 = vunpack.c.l.b16 %v458
        %v481 = vunpack.c.h.b16 %v458
        %v482 = vpack.c.b16 %v476, %v474
        %v483 = vpack.c.b16 %v477, %v475
        %v484 = vpack.c.b16 %v480, %v478
        %v485 = vpack.c.b16 %v481, %v479
        %vm488 = vcmask 244736
        %v490 = vsel %vm488, %v469, 0
        %vm492 = vcmask 1046528
        %v494 = vsel %vm492, %v484, 0
        %v497 = vsel %vm492, %v485, 0
        %499 = vmatpush.bf16.msra.mxu0 0
        %500 = vmatpush.bf16.msra.mxu0 0
        %501 = vmatpush.bf16.msra.mxu0 0
        %502 = vmatpush.bf16.msra.mxu0 0
        %503 = vmatpush.bf16.msra.mxu0 0
        %504 = vmatpush.bf16.msra.mxu0 0
        %505 = vmatpush.bf16.msra.mxu0 %v494
        %506 = vmatpush.bf16.msra.mxu0 %v482
        %507 = vmatmul.bf16.gmra.mxu0 %v490
        %v508 = vpop.f32.mrf.mxu0
        %v509 = vadd.f32 %v461, %v508
        %v510 = vpop.f32.mrf.mxu0
        %v511 = vadd.f32 %v461, %v510
        %512 = vdwg.mxu0
        %513 = vmatpush.bf16.msra.mxu0 0
        %514 = vmatpush.bf16.msra.mxu0 0
        %515 = vmatpush.bf16.msra.mxu0 0
        %516 = vmatpush.bf16.msra.mxu0 0
        %517 = vmatpush.bf16.msra.mxu0 0
        %518 = vmatpush.bf16.msra.mxu0 0
        %519 = vmatpush.bf16.msra.mxu0 %v497
        %520 = vmatpush.bf16.msra.mxu0 %v483
        %521 = vmatmul.bf16.gmra.mxu0 %v490
        %v522 = vpop.f32.mrf.mxu0
        %v523 = vadd.f32 %v462, %v522
        %v524 = vpop.f32.mrf.mxu0
        %v525 = vadd.f32 %v462, %v524
        %526 = vdwg.mxu0
        %v527 = vmax.f32 %v509, %v511
        %v528 = vmax.f32 %v523, %v525
        %v529 = vmax.f32 %v527, 0.0
        %v530 = vmax.f32 %v528, 0.0
        %v531 = vlaneseq
        %vm532 = vcmp.ge.s32.totalorder %v531, 0
        %vm533 = vcmp.lt.s32.totalorder %v531, 192
        %vm534 = vmand %vm532, %vm533
        %535 = vst.msk [vmem:[#allocation3] ss:$8 sm:$0x3] %vm534, 0.0
        %536 = vst.msk [vmem:[#allocation3] ss:$8 sm:$0x0] %vm534, 0.0
        %s537 = scalar_lea.vmem [#allocation3], 17
        %538 = vst.msk [vmem:[%s537] ss:$8 sm:$0x3] %vm534, 0.0
        %539 = vst.msk [vmem:[%s537] ss:$8 sm:$0x0] %vm534, 0.0
        %v542 = vrot.slane %v529, 7
        %v543 = vrot.slane %v530, 7
        %546 = vst [vmem:[#allocation3] sm:$0xfe] %v542
        %vm547 = vcmask 523265
        %548 = vst.msk [vmem:[#allocation3 + $0x8] sm:$0xfe] %vm547, %v543
        %549 = vst [vmem:[#allocation3 + $0x10] sm:$0x1] %v542
        %vm550 = vcmask 516096
        %551 = vst.msk [vmem:[#allocation3 + $0x18] sm:$0x1] %vm550, %v543
        %v552 = vld [vmem:[%s4] sm:$0x3]
        %v553 = vld [vmem:[#allocation3] sm:$0xff]
        %v554 = vld [vmem:[#allocation3 + $0x8] sm:$0xff]
        %v555 = vpack.c.bf16 %v553, %v553
        %v556 = vpack.c.bf16 %v554, %v554
        %v557 = vld [vmem:[#allocation6] sm:$0xff]
        %v558 = vld [vmem:[#allocation6 + $0x8] sm:$0xff]
        %v559 = vld [vmem:[#allocation6 + $0x10] sm:$0xff]
        %v560 = vld [vmem:[#allocation6 + $0x18] sm:$0xff]
        %v561 = vld [vmem:[#allocation6 + $0x20] sm:$0xff]
        %v562 = vld [vmem:[#allocation6 + $0x28] sm:$0xff]
        %v563 = vld [vmem:[#allocation6 + $0x30] sm:$0xff]
        %v564 = vld [vmem:[#allocation6 + $0x38] sm:$0xff]
        %v565 = vld [vmem:[#allocation6 + $0x40] sm:$0xff]
        %v566 = vld [vmem:[#allocation6 + $0x48] sm:$0xff]
        %v567 = vld [vmem:[#allocation6 + $0x50] sm:$0xff]
        %v568 = vld [vmem:[#allocation6 + $0x58] sm:$0xff]
        %v569 = vld [vmem:[#allocation6 + $0x60] sm:$0xff]
        %v570 = vld [vmem:[#allocation6 + $0x68] sm:$0xff]
        %v571 = vld [vmem:[#allocation6 + $0x70] sm:$0xff]
        %v572 = vld [vmem:[#allocation6 + $0x78] sm:$0xff]
        %v573 = vld [vmem:[#allocation6 + $0x80] sm:$0xff]
        %v574 = vld [vmem:[#allocation6 + $0x88] sm:$0xff]
        %v575 = vld [vmem:[#allocation6 + $0x90] sm:$0xff]
        %v576 = vld [vmem:[#allocation6 + $0x98] sm:$0xff]
        %v577 = vld [vmem:[#allocation6 + $0xa0] sm:$0xff]
        %v578 = vld [vmem:[#allocation6 + $0xa8] sm:$0xff]
        %v579 = vld [vmem:[#allocation6 + $0xb0] sm:$0xff]
        %v580 = vld [vmem:[#allocation6 + $0xb8] sm:$0xff]
        %v605 = vunpack.c.l.b16 %v557
        %v606 = vunpack.c.h.b16 %v557
        %v607 = vunpack.c.l.b16 %v558
        %v608 = vunpack.c.h.b16 %v558
        %v609 = vunpack.c.l.b16 %v559
        %v610 = vunpack.c.h.b16 %v559
        %v611 = vunpack.c.l.b16 %v560
        %v612 = vunpack.c.h.b16 %v560
        %v613 = vunpack.c.l.b16 %v561
        %v614 = vunpack.c.h.b16 %v561
        %v615 = vunpack.c.l.b16 %v562
        %v616 = vunpack.c.h.b16 %v562
        %v617 = vunpack.c.l.b16 %v563
        %v618 = vunpack.c.h.b16 %v563
        %v619 = vunpack.c.l.b16 %v564
        %v620 = vunpack.c.h.b16 %v564
        %v621 = vunpack.c.l.b16 %v565
        %v622 = vunpack.c.h.b16 %v565
        %v623 = vunpack.c.l.b16 %v566
        %v624 = vunpack.c.h.b16 %v566
        %v625 = vunpack.c.l.b16 %v567
        %v626 = vunpack.c.h.b16 %v567
        %v627 = vunpack.c.l.b16 %v568
        %v628 = vunpack.c.h.b16 %v568
        %v629 = vunpack.c.l.b16 %v569
        %v630 = vunpack.c.h.b16 %v569
        %v631 = vunpack.c.l.b16 %v570
        %v632 = vunpack.c.h.b16 %v570
        %v633 = vunpack.c.l.b16 %v571
        %v634 = vunpack.c.h.b16 %v571
        %v635 = vunpack.c.l.b16 %v572
        %v636 = vunpack.c.h.b16 %v572
        %v637 = vunpack.c.l.b16 %v573
        %v638 = vunpack.c.h.b16 %v573
        %v639 = vunpack.c.l.b16 %v574
        %v640 = vunpack.c.h.b16 %v574
        %v641 = vunpack.c.l.b16 %v575
        %v642 = vunpack.c.h.b16 %v575
        %v643 = vunpack.c.l.b16 %v576
        %v644 = vunpack.c.h.b16 %v576
        %v645 = vunpack.c.l.b16 %v577
        %v646 = vunpack.c.h.b16 %v577
        %v647 = vunpack.c.l.b16 %v578
        %v648 = vunpack.c.h.b16 %v578
        %v649 = vunpack.c.l.b16 %v579
        %v650 = vunpack.c.h.b16 %v579
        %v651 = vunpack.c.l.b16 %v580
        %v652 = vunpack.c.h.b16 %v580
        %v653 = vpack.c.b16 %v607, %v605
        %v654 = vpack.c.b16 %v608, %v606
        %v655 = vpack.c.b16 %v611, %v609
        %v656 = vpack.c.b16 %v612, %v610
        %v657 = vpack.c.b16 %v615, %v613
        %v658 = vpack.c.b16 %v616, %v614
        %v659 = vpack.c.b16 %v619, %v617
        %v660 = vpack.c.b16 %v620, %v618
        %v661 = vpack.c.b16 %v623, %v621
        %v662 = vpack.c.b16 %v624, %v622
        %v663 = vpack.c.b16 %v627, %v625
        %v664 = vpack.c.b16 %v628, %v626
        %v665 = vpack.c.b16 %v631, %v629
        %v666 = vpack.c.b16 %v632, %v630
        %v667 = vpack.c.b16 %v635, %v633
        %v668 = vpack.c.b16 %v636, %v634
        %v669 = vpack.c.b16 %v639, %v637
        %v670 = vpack.c.b16 %v640, %v638
        %v671 = vpack.c.b16 %v643, %v641
        %v672 = vpack.c.b16 %v644, %v642
        %v673 = vpack.c.b16 %v647, %v645
        %v674 = vpack.c.b16 %v648, %v646
        %v675 = vpack.c.b16 %v651, %v649
        %v676 = vpack.c.b16 %v652, %v650
        %vm701 = vcmask 523264
        %v703 = vsel %vm701, %v556, 0
        %705 = vmatpush.bf16.msra.mxu0 %v667
        %706 = vmatpush.bf16.msra.mxu0 %v665
        %707 = vmatpush.bf16.msra.mxu0 %v663
        %708 = vmatpush.bf16.msra.mxu0 %v661
        %709 = vmatpush.bf16.msra.mxu0 %v659
        %710 = vmatpush.bf16.msra.mxu0 %v657
        %711 = vmatpush.bf16.msra.mxu0 %v655
        %712 = vmatpush.bf16.msra.mxu0 %v653
        %713 = vmatmul.bf16.gmra.mxu0 %v555
        %v714 = vpop.f32.mrf.mxu0
        %v715 = vadd.f32 0.0, %v714
        %v716 = vpop.f32.mrf.mxu0
        %717 = vdwg.mxu0
        %718 = vmatpush.bf16.msra.mxu0 0
        %719 = vmatpush.bf16.msra.mxu0 0
        %720 = vmatpush.bf16.msra.mxu0 0
        %721 = vmatpush.bf16.msra.mxu0 0
        %722 = vmatpush.bf16.msra.mxu0 %v675
        %723 = vmatpush.bf16.msra.mxu0 %v673
        %724 = vmatpush.bf16.msra.mxu0 %v671
        %725 = vmatpush.bf16.msra.mxu0 %v669
        %726 = vmatmul.bf16.gmra.mxu0 %v703
        %v727 = vpop.f32.mrf.mxu0
        %v728 = vadd.f32 %v715, %v727
        %v729 = vpop.f32.mrf.mxu0
        %730 = vdwg.mxu0
        %731 = vmatpush.bf16.msra.mxu0 %v668
        %732 = vmatpush.bf16.msra.mxu0 %v666
        %733 = vmatpush.bf16.msra.mxu0 %v664
        %734 = vmatpush.bf16.msra.mxu0 %v662
        %735 = vmatpush.bf16.msra.mxu0 %v660
        %736 = vmatpush.bf16.msra.mxu0 %v658
        %737 = vmatpush.bf16.msra.mxu0 %v656
        %738 = vmatpush.bf16.msra.mxu0 %v654
        %739 = vmatmul.bf16.gmra.mxu0 %v555
        %v740 = vpop.f32.mrf.mxu0
        %v741 = vadd.f32 0.0, %v740
        %v742 = vpop.f32.mrf.mxu0
        %743 = vdwg.mxu0
        %744 = vmatpush.bf16.msra.mxu0 0
        %745 = vmatpush.bf16.msra.mxu0 0
        %746 = vmatpush.bf16.msra.mxu0 0
        %747 = vmatpush.bf16.msra.mxu0 0
        %748 = vmatpush.bf16.msra.mxu0 %v676
        %749 = vmatpush.bf16.msra.mxu0 %v674
        %750 = vmatpush.bf16.msra.mxu0 %v672
        %751 = vmatpush.bf16.msra.mxu0 %v670
        %752 = vmatmul.bf16.gmra.mxu0 %v703
        %v753 = vpop.f32.mrf.mxu0
        %v754 = vadd.f32 %v741, %v753
        %v755 = vpop.f32.mrf.mxu0
        %756 = vdwg.mxu0
        %v758 = vperm.slane %v552, 0
        %v759 = vperm.slane %v552, 1
        %v762 = vadd.f32 %v758, %v728
        %v763 = vadd.f32 %v759, %v754
        %v764 = vld [vmem:[#allocation3] sm:$0xfe]
        %v765 = vld [vmem:[#allocation3 + $0x8] sm:$0xfe]
        %v766 = vld [vmem:[#allocation3 + $0x10] sm:$0x1]
        %v767 = vld [vmem:[#allocation3 + $0x18] sm:$0x1]
        %v768 = vpack.c.bf16 %v766, %v764
        %v769 = vpack.c.bf16 %v767, %v765
        %s770 = scalar_lea.vmem [#allocation6], 192
        %v771 = vld [vmem:[%s770] sm:$0xff]
        %v772 = vld [vmem:[%s770 + $0x8] sm:$0xff]
        %v773 = vld [vmem:[%s770 + $0x10] sm:$0xff]
        %v774 = vld [vmem:[%s770 + $0x18] sm:$0xff]
        %v775 = vld [vmem:[%s770 + $0x20] sm:$0xff]
        %v776 = vld [vmem:[%s770 + $0x28] sm:$0xff]
        %v777 = vld [vmem:[%s770 + $0x30] sm:$0xff]
        %v778 = vld [vmem:[%s770 + $0x38] sm:$0xff]
        %v779 = vld [vmem:[%s770 + $0x40] sm:$0xff]
        %v780 = vld [vmem:[%s770 + $0x48] sm:$0xff]
        %v781 = vld [vmem:[%s770 + $0x50] sm:$0xff]
        %v782 = vld [vmem:[%s770 + $0x58] sm:$0xff]
        %v783 = vld [vmem:[%s770 + $0x60] sm:$0xff]
        %v784 = vld [vmem:[%s770 + $0x68] sm:$0xff]
        %v785 = vld [vmem:[%s770 + $0x70] sm:$0xff]
        %v786 = vld [vmem:[%s770 + $0x78] sm:$0xff]
        %v787 = vld [vmem:[%s770 + $0x80] sm:$0xff]
        %v788 = vld [vmem:[%s770 + $0x88] sm:$0xff]
        %v789 = vld [vmem:[%s770 + $0x90] sm:$0xff]
        %v790 = vld [vmem:[%s770 + $0x98] sm:$0xff]
        %v791 = vld [vmem:[%s770 + $0xa0] sm:$0xff]
        %v792 = vld [vmem:[%s770 + $0xa8] sm:$0xff]
        %v793 = vld [vmem:[%s770 + $0xb0] sm:$0xff]
        %v794 = vld [vmem:[%s770 + $0xb8] sm:$0xff]
        %v796 = vshrl.u32 %v768, 16
        %v798 = vshll.u32 %v768, 16
        %v800 = vrot.slane %v798, 1
        %v801 = vor.u32 %v796, %v800
        %v803 = vshrl.u32 %v769, 16
        %v805 = vshll.u32 %v769, 16
        %v807 = vrot.slane %v805, 1
        %v808 = vor.u32 %v803, %v807
        %v834 = vunpack.c.l.b16 %v771
        %v835 = vunpack.c.h.b16 %v771
        %v836 = vunpack.c.l.b16 %v772
        %v837 = vunpack.c.h.b16 %v772
        %v838 = vunpack.c.l.b16 %v773
        %v839 = vunpack.c.h.b16 %v773
        %v840 = vunpack.c.l.b16 %v774
        %v841 = vunpack.c.h.b16 %v774
        %v842 = vunpack.c.l.b16 %v775
        %v843 = vunpack.c.h.b16 %v775
        %v844 = vunpack.c.l.b16 %v776
        %v845 = vunpack.c.h.b16 %v776
        %v846 = vunpack.c.l.b16 %v777
        %v847 = vunpack.c.h.b16 %v777
        %v848 = vunpack.c.l.b16 %v778
        %v849 = vunpack.c.h.b16 %v778
        %v850 = vunpack.c.l.b16 %v779
        %v851 = vunpack.c.h.b16 %v779
        %v852 = vunpack.c.l.b16 %v780
        %v853 = vunpack.c.h.b16 %v780
        %v854 = vunpack.c.l.b16 %v781
        %v855 = vunpack.c.h.b16 %v781
        %v856 = vunpack.c.l.b16 %v782
        %v857 = vunpack.c.h.b16 %v782
        %v858 = vunpack.c.l.b16 %v783
        %v859 = vunpack.c.h.b16 %v783
        %v860 = vunpack.c.l.b16 %v784
        %v861 = vunpack.c.h.b16 %v784
        %v862 = vunpack.c.l.b16 %v785
        %v863 = vunpack.c.h.b16 %v785
        %v864 = vunpack.c.l.b16 %v786
        %v865 = vunpack.c.h.b16 %v786
        %v866 = vunpack.c.l.b16 %v787
        %v867 = vunpack.c.h.b16 %v787
        %v868 = vunpack.c.l.b16 %v788
        %v869 = vunpack.c.h.b16 %v788
        %v870 = vunpack.c.l.b16 %v789
        %v871 = vunpack.c.h.b16 %v789
        %v872 = vunpack.c.l.b16 %v790
        %v873 = vunpack.c.h.b16 %v790
        %v874 = vunpack.c.l.b16 %v791
        %v875 = vunpack.c.h.b16 %v791
        %v876 = vunpack.c.l.b16 %v792
        %v877 = vunpack.c.h.b16 %v792
        %v878 = vunpack.c.l.b16 %v793
        %v879 = vunpack.c.h.b16 %v793
        %v880 = vunpack.c.l.b16 %v794
        %v881 = vunpack.c.h.b16 %v794
        %v882 = vpack.c.b16 %v836, %v834
        %v883 = vpack.c.b16 %v837, %v835
        %v884 = vpack.c.b16 %v840, %v838
        %v885 = vpack.c.b16 %v841, %v839
        %v886 = vpack.c.b16 %v844, %v842
        %v887 = vpack.c.b16 %v845, %v843
        %v888 = vpack.c.b16 %v848, %v846
        %v889 = vpack.c.b16 %v849, %v847
        %v890 = vpack.c.b16 %v852, %v850
        %v891 = vpack.c.b16 %v853, %v851
        %v892 = vpack.c.b16 %v856, %v854
        %v893 = vpack.c.b16 %v857, %v855
        %v894 = vpack.c.b16 %v860, %v858
        %v895 = vpack.c.b16 %v861, %v859
        %v896 = vpack.c.b16 %v864, %v862
        %v897 = vpack.c.b16 %v865, %v863
        %v898 = vpack.c.b16 %v868, %v866
        %v899 = vpack.c.b16 %v869, %v867
        %v900 = vpack.c.b16 %v872, %v870
        %v901 = vpack.c.b16 %v873, %v871
        %v902 = vpack.c.b16 %v876, %v874
        %v903 = vpack.c.b16 %v877, %v875
        %v904 = vpack.c.b16 %v880, %v878
        %v905 = vpack.c.b16 %v881, %v879
        %v931 = vsel %vm701, %v808, 0
        %933 = vmatpush.bf16.msra.mxu0 %v896
        %934 = vmatpush.bf16.msra.mxu0 %v894
        %935 = vmatpush.bf16.msra.mxu0 %v892
        %936 = vmatpush.bf16.msra.mxu0 %v890
        %937 = vmatpush.bf16.msra.mxu0 %v888
        %938 = vmatpush.bf16.msra.mxu0 %v886
        %939 = vmatpush.bf16.msra.mxu0 %v884
        %940 = vmatpush.bf16.msra.mxu0 %v882
        %941 = vmatmul.bf16.gmra.mxu0 %v801
        %v942 = vpop.f32.mrf.mxu0
        %v943 = vadd.f32 0.0, %v942
        %v944 = vpop.f32.mrf.mxu0
        %945 = vdwg.mxu0
        %946 = vmatpush.bf16.msra.mxu0 0
        %947 = vmatpush.bf16.msra.mxu0 0
        %948 = vmatpush.bf16.msra.mxu0 0
        %949 = vmatpush.bf16.msra.mxu0 0
        %950 = vmatpush.bf16.msra.mxu0 %v904
        %951 = vmatpush.bf16.msra.mxu0 %v902
        %952 = vmatpush.bf16.msra.mxu0 %v900
        %953 = vmatpush.bf16.msra.mxu0 %v898
        %954 = vmatmul.bf16.gmra.mxu0 %v931
        %v955 = vpop.f32.mrf.mxu0
        %v956 = vadd.f32 %v943, %v955
        %v957 = vpop.f32.mrf.mxu0
        %958 = vdwg.mxu0
        %959 = vmatpush.bf16.msra.mxu0 %v897
        %960 = vmatpush.bf16.msra.mxu0 %v895
        %961 = vmatpush.bf16.msra.mxu0 %v893
        %962 = vmatpush.bf16.msra.mxu0 %v891
        %963 = vmatpush.bf16.msra.mxu0 %v889
        %964 = vmatpush.bf16.msra.mxu0 %v887
        %965 = vmatpush.bf16.msra.mxu0 %v885
        %966 = vmatpush.bf16.msra.mxu0 %v883
        %967 = vmatmul.bf16.gmra.mxu0 %v801
        %v968 = vpop.f32.mrf.mxu0
        %v969 = vadd.f32 0.0, %v968
        %v970 = vpop.f32.mrf.mxu0
        %971 = vdwg.mxu0
        %972 = vmatpush.bf16.msra.mxu0 0
        %973 = vmatpush.bf16.msra.mxu0 0
        %974 = vmatpush.bf16.msra.mxu0 0
        %975 = vmatpush.bf16.msra.mxu0 0
        %976 = vmatpush.bf16.msra.mxu0 %v905
        %977 = vmatpush.bf16.msra.mxu0 %v903
        %978 = vmatpush.bf16.msra.mxu0 %v901
        %979 = vmatpush.bf16.msra.mxu0 %v899
        %980 = vmatmul.bf16.gmra.mxu0 %v931
        %v981 = vpop.f32.mrf.mxu0
        %v982 = vadd.f32 %v969, %v981
        %v983 = vpop.f32.mrf.mxu0
        %984 = vdwg.mxu0
        %v985 = vadd.f32 %v762, %v956
        %v986 = vadd.f32 %v763, %v982
        %v987 = vld [vmem:[#allocation3] sm:$0xfc]
        %v988 = vld [vmem:[#allocation3 + $0x8] sm:$0xfc]
        %v989 = vld [vmem:[#allocation3 + $0x10] sm:$0x3]
        %v990 = vld [vmem:[#allocation3 + $0x18] sm:$0x3]
        %v991 = vpack.c.bf16 %v989, %v987
        %v992 = vpack.c.bf16 %v990, %v988
        %s993 = scalar_lea.vmem [#allocation6], 384
        %v994 = vld [vmem:[%s993] sm:$0xff]
        %v995 = vld [vmem:[%s993 + $0x8] sm:$0xff]
        %v996 = vld [vmem:[%s993 + $0x10] sm:$0xff]
        %v997 = vld [vmem:[%s993 + $0x18] sm:$0xff]
        %v998 = vld [vmem:[%s993 + $0x20] sm:$0xff]
        %v999 = vld [vmem:[%s993 + $0x28] sm:$0xff]
        %v1000 = vld [vmem:[%s993 + $0x30] sm:$0xff]
        %v1001 = vld [vmem:[%s993 + $0x38] sm:$0xff]
        %v1002 = vld [vmem:[%s993 + $0x40] sm:$0xff]
        %v1003 = vld [vmem:[%s993 + $0x48] sm:$0xff]
        %v1004 = vld [vmem:[%s993 + $0x50] sm:$0xff]
        %v1005 = vld [vmem:[%s993 + $0x58] sm:$0xff]
        %v1006 = vld [vmem:[%s993 + $0x60] sm:$0xff]
        %v1007 = vld [vmem:[%s993 + $0x68] sm:$0xff]
        %v1008 = vld [vmem:[%s993 + $0x70] sm:$0xff]
        %v1009 = vld [vmem:[%s993 + $0x78] sm:$0xff]
        %v1010 = vld [vmem:[%s993 + $0x80] sm:$0xff]
        %v1011 = vld [vmem:[%s993 + $0x88] sm:$0xff]
        %v1012 = vld [vmem:[%s993 + $0x90] sm:$0xff]
        %v1013 = vld [vmem:[%s993 + $0x98] sm:$0xff]
        %v1014 = vld [vmem:[%s993 + $0xa0] sm:$0xff]
        %v1015 = vld [vmem:[%s993 + $0xa8] sm:$0xff]
        %v1016 = vld [vmem:[%s993 + $0xb0] sm:$0xff]
        %v1017 = vld [vmem:[%s993 + $0xb8] sm:$0xff]
        %v1020 = vrot.slane %v991, 1
        %v1021 = vrot.slane %v992, 1
        %v1047 = vunpack.c.l.b16 %v994
        %v1048 = vunpack.c.h.b16 %v994
        %v1049 = vunpack.c.l.b16 %v995
        %v1050 = vunpack.c.h.b16 %v995
        %v1051 = vunpack.c.l.b16 %v996
        %v1052 = vunpack.c.h.b16 %v996
        %v1053 = vunpack.c.l.b16 %v997
        %v1054 = vunpack.c.h.b16 %v997
        %v1055 = vunpack.c.l.b16 %v998
        %v1056 = vunpack.c.h.b16 %v998
        %v1057 = vunpack.c.l.b16 %v999
        %v1058 = vunpack.c.h.b16 %v999
        %v1059 = vunpack.c.l.b16 %v1000
        %v1060 = vunpack.c.h.b16 %v1000
        %v1061 = vunpack.c.l.b16 %v1001
        %v1062 = vunpack.c.h.b16 %v1001
        %v1063 = vunpack.c.l.b16 %v1002
        %v1064 = vunpack.c.h.b16 %v1002
        %v1065 = vunpack.c.l.b16 %v1003
        %v1066 = vunpack.c.h.b16 %v1003
        %v1067 = vunpack.c.l.b16 %v1004
        %v1068 = vunpack.c.h.b16 %v1004
        %v1069 = vunpack.c.l.b16 %v1005
        %v1070 = vunpack.c.h.b16 %v1005
        %v1071 = vunpack.c.l.b16 %v1006
        %v1072 = vunpack.c.h.b16 %v1006
        %v1073 = vunpack.c.l.b16 %v1007
        %v1074 = vunpack.c.h.b16 %v1007
        %v1075 = vunpack.c.l.b16 %v1008
        %v1076 = vunpack.c.h.b16 %v1008
        %v1077 = vunpack.c.l.b16 %v1009
        %v1078 = vunpack.c.h.b16 %v1009
        %v1079 = vunpack.c.l.b16 %v1010
        %v1080 = vunpack.c.h.b16 %v1010
        %v1081 = vunpack.c.l.b16 %v1011
        %v1082 = vunpack.c.h.b16 %v1011
        %v1083 = vunpack.c.l.b16 %v1012
        %v1084 = vunpack.c.h.b16 %v1012
        %v1085 = vunpack.c.l.b16 %v1013
        %v1086 = vunpack.c.h.b16 %v1013
        %v1087 = vunpack.c.l.b16 %v1014
        %v1088 = vunpack.c.h.b16 %v1014
        %v1089 = vunpack.c.l.b16 %v1015
        %v1090 = vunpack.c.h.b16 %v1015
        %v1091 = vunpack.c.l.b16 %v1016
        %v1092 = vunpack.c.h.b16 %v1016
        %v1093 = vunpack.c.l.b16 %v1017
        %v1094 = vunpack.c.h.b16 %v1017
        %v1095 = vpack.c.b16 %v1049, %v1047
        %v1096 = vpack.c.b16 %v1050, %v1048
        %v1097 = vpack.c.b16 %v1053, %v1051
        %v1098 = vpack.c.b16 %v1054, %v1052
        %v1099 = vpack.c.b16 %v1057, %v1055
        %v1100 = vpack.c.b16 %v1058, %v1056
        %v1101 = vpack.c.b16 %v1061, %v1059
        %v1102 = vpack.c.b16 %v1062, %v1060
        %v1103 = vpack.c.b16 %v1065, %v1063
        %v1104 = vpack.c.b16 %v1066, %v1064
        %v1105 = vpack.c.b16 %v1069, %v1067
        %v1106 = vpack.c.b16 %v1070, %v1068
        %v1107 = vpack.c.b16 %v1073, %v1071
        %v1108 = vpack.c.b16 %v1074, %v1072
        %v1109 = vpack.c.b16 %v1077, %v1075
        %v1110 = vpack.c.b16 %v1078, %v1076
        %v1111 = vpack.c.b16 %v1081, %v1079
        %v1112 = vpack.c.b16 %v1082, %v1080
        %v1113 = vpack.c.b16 %v1085, %v1083
        %v1114 = vpack.c.b16 %v1086, %v1084
        %v1115 = vpack.c.b16 %v1089, %v1087
        %v1116 = vpack.c.b16 %v1090, %v1088
        %v1117 = vpack.c.b16 %v1093, %v1091
        %v1118 = vpack.c.b16 %v1094, %v1092
        %v1144 = vsel %vm701, %v1021, 0
        %1146 = vmatpush.bf16.msra.mxu0 %v1109
        %1147 = vmatpush.bf16.msra.mxu0 %v1107
        %1148 = vmatpush.bf16.msra.mxu0 %v1105
        %1149 = vmatpush.bf16.msra.mxu0 %v1103
        %1150 = vmatpush.bf16.msra.mxu0 %v1101
        %1151 = vmatpush.bf16.msra.mxu0 %v1099
        %1152 = vmatpush.bf16.msra.mxu0 %v1097
        %1153 = vmatpush.bf16.msra.mxu0 %v1095
        %1154 = vmatmul.bf16.gmra.mxu0 %v1020
        %v1155 = vpop.f32.mrf.mxu0
        %v1156 = vadd.f32 0.0, %v1155
        %v1157 = vpop.f32.mrf.mxu0
        %1158 = vdwg.mxu0
        %1159 = vmatpush.bf16.msra.mxu0 0
        %1160 = vmatpush.bf16.msra.mxu0 0
        %1161 = vmatpush.bf16.msra.mxu0 0
        %1162 = vmatpush.bf16.msra.mxu0 0
        %1163 = vmatpush.bf16.msra.mxu0 %v1117
        %1164 = vmatpush.bf16.msra.mxu0 %v1115
        %1165 = vmatpush.bf16.msra.mxu0 %v1113
        %1166 = vmatpush.bf16.msra.mxu0 %v1111
        %1167 = vmatmul.bf16.gmra.mxu0 %v1144
        %v1168 = vpop.f32.mrf.mxu0
        %v1169 = vadd.f32 %v1156, %v1168
        %v1170 = vpop.f32.mrf.mxu0
        %1171 = vdwg.mxu0
        %1172 = vmatpush.bf16.msra.mxu0 %v1110
        %1173 = vmatpush.bf16.msra.mxu0 %v1108
        %1174 = vmatpush.bf16.msra.mxu0 %v1106
        %1175 = vmatpush.bf16.msra.mxu0 %v1104
        %1176 = vmatpush.bf16.msra.mxu0 %v1102
        %1177 = vmatpush.bf16.msra.mxu0 %v1100
        %1178 = vmatpush.bf16.msra.mxu0 %v1098
        %1179 = vmatpush.bf16.msra.mxu0 %v1096
        %1180 = vmatmul.bf16.gmra.mxu0 %v1020
        %v1181 = vpop.f32.mrf.mxu0
        %v1182 = vadd.f32 0.0, %v1181
        %v1183 = vpop.f32.mrf.mxu0
        %1184 = vdwg.mxu0
        %1185 = vmatpush.bf16.msra.mxu0 0
        %1186 = vmatpush.bf16.msra.mxu0 0
        %1187 = vmatpush.bf16.msra.mxu0 0
        %1188 = vmatpush.bf16.msra.mxu0 0
        %1189 = vmatpush.bf16.msra.mxu0 %v1118
        %1190 = vmatpush.bf16.msra.mxu0 %v1116
        %1191 = vmatpush.bf16.msra.mxu0 %v1114
        %1192 = vmatpush.bf16.msra.mxu0 %v1112
        %1193 = vmatmul.bf16.gmra.mxu0 %v1144
        %v1194 = vpop.f32.mrf.mxu0
        %v1195 = vadd.f32 %v1182, %v1194
        %v1196 = vpop.f32.mrf.mxu0
        %1197 = vdwg.mxu0
        %v1198 = vadd.f32 %v985, %v1169
        %v1199 = vadd.f32 %v986, %v1195
        %v1200 = vmax.f32 %v1198, 0.0
        %v1201 = vmax.f32 %v1199, 0.0
        %1202 = vst [vmem:[#allocation2] sm:$0x3] 0.0
        %vm1203 = vcmask 517120
        %1204 = vst.msk [vmem:[#allocation2 + $0x8] sm:$0x3] %vm1203, 0.0
        %1205 = vst [vmem:[#allocation2 + $0x10] sm:$0xc] 0.0
        %vm1206 = vcmask 519170
        %1207 = vst.msk [vmem:[#allocation2 + $0x18] sm:$0xc] %vm1206, 0.0
        %v1210 = vrot.slane %v1200, 6
        %v1211 = vrot.slane %v1201, 6
        %1214 = vst [vmem:[#allocation2] sm:$0xfc] %v1210
        %vm1215 = vcmask 523266
        %1216 = vst.msk [vmem:[#allocation2 + $0x8] sm:$0xfc] %vm1215, %v1211
        %1217 = vst [vmem:[#allocation2 + $0x10] sm:$0x3] %v1210
        %1218 = vst.msk [vmem:[#allocation2 + $0x18] sm:$0x3] %vm1203, %v1211
        %v1219 = vld [vmem:[%s6] sm:$0x3]
        %v1220 = vld [vmem:[#allocation2] sm:$0xff]
        %v1221 = vld [vmem:[#allocation2 + $0x8] sm:$0xff]
        %v1222 = vpack.c.bf16 %v1220, %v1220
        %v1223 = vpack.c.bf16 %v1221, %v1221
        %v1224 = vld [vmem:[#allocation8] sm:$0xff]
        %v1225 = vld [vmem:[#allocation8 + $0x8] sm:$0xff]
        %v1226 = vld [vmem:[#allocation8 + $0x10] sm:$0xff]
        %v1227 = vld [vmem:[#allocation8 + $0x18] sm:$0xff]
        %v1228 = vld [vmem:[#allocation8 + $0x20] sm:$0xff]
        %v1229 = vld [vmem:[#allocation8 + $0x28] sm:$0xff]
        %v1230 = vld [vmem:[#allocation8 + $0x30] sm:$0xff]
        %v1231 = vld [vmem:[#allocation8 + $0x38] sm:$0xff]
        %v1232 = vld [vmem:[#allocation8 + $0x40] sm:$0xff]
        %v1233 = vld [vmem:[#allocation8 + $0x48] sm:$0xff]
        %v1234 = vld [vmem:[#allocation8 + $0x50] sm:$0xff]
        %v1235 = vld [vmem:[#allocation8 + $0x58] sm:$0xff]
        %v1236 = vld [vmem:[#allocation8 + $0x60] sm:$0xff]
        %v1237 = vld [vmem:[#allocation8 + $0x68] sm:$0xff]
        %v1238 = vld [vmem:[#allocation8 + $0x70] sm:$0xff]
        %v1239 = vld [vmem:[#allocation8 + $0x78] sm:$0xff]
        %v1240 = vld [vmem:[#allocation8 + $0x80] sm:$0xff]
        %v1241 = vld [vmem:[#allocation8 + $0x88] sm:$0xff]
        %v1242 = vld [vmem:[#allocation8 + $0x90] sm:$0xff]
        %v1243 = vld [vmem:[#allocation8 + $0x98] sm:$0xff]
        %v1244 = vld [vmem:[#allocation8 + $0xa0] sm:$0xff]
        %v1245 = vld [vmem:[#allocation8 + $0xa8] sm:$0xff]
        %v1246 = vld [vmem:[#allocation8 + $0xb0] sm:$0xff]
        %v1247 = vld [vmem:[#allocation8 + $0xb8] sm:$0xff]
        %v1272 = vunpack.c.l.b16 %v1224
        %v1273 = vunpack.c.h.b16 %v1224
        %v1274 = vunpack.c.l.b16 %v1225
        %v1275 = vunpack.c.h.b16 %v1225
        %v1276 = vunpack.c.l.b16 %v1226
        %v1277 = vunpack.c.h.b16 %v1226
        %v1278 = vunpack.c.l.b16 %v1227
        %v1279 = vunpack.c.h.b16 %v1227
        %v1280 = vunpack.c.l.b16 %v1228
        %v1281 = vunpack.c.h.b16 %v1228
        %v1282 = vunpack.c.l.b16 %v1229
        %v1283 = vunpack.c.h.b16 %v1229
        %v1284 = vunpack.c.l.b16 %v1230
        %v1285 = vunpack.c.h.b16 %v1230
        %v1286 = vunpack.c.l.b16 %v1231
        %v1287 = vunpack.c.h.b16 %v1231
        %v1288 = vunpack.c.l.b16 %v1232
        %v1289 = vunpack.c.h.b16 %v1232
        %v1290 = vunpack.c.l.b16 %v1233
        %v1291 = vunpack.c.h.b16 %v1233
        %v1292 = vunpack.c.l.b16 %v1234
        %v1293 = vunpack.c.h.b16 %v1234
        %v1294 = vunpack.c.l.b16 %v1235
        %v1295 = vunpack.c.h.b16 %v1235
        %v1296 = vunpack.c.l.b16 %v1236
        %v1297 = vunpack.c.h.b16 %v1236
        %v1298 = vunpack.c.l.b16 %v1237
        %v1299 = vunpack.c.h.b16 %v1237
        %v1300 = vunpack.c.l.b16 %v1238
        %v1301 = vunpack.c.h.b16 %v1238
        %v1302 = vunpack.c.l.b16 %v1239
        %v1303 = vunpack.c.h.b16 %v1239
        %v1304 = vunpack.c.l.b16 %v1240
        %v1305 = vunpack.c.h.b16 %v1240
        %v1306 = vunpack.c.l.b16 %v1241
        %v1307 = vunpack.c.h.b16 %v1241
        %v1308 = vunpack.c.l.b16 %v1242
        %v1309 = vunpack.c.h.b16 %v1242
        %v1310 = vunpack.c.l.b16 %v1243
        %v1311 = vunpack.c.h.b16 %v1243
        %v1312 = vunpack.c.l.b16 %v1244
        %v1313 = vunpack.c.h.b16 %v1244
        %v1314 = vunpack.c.l.b16 %v1245
        %v1315 = vunpack.c.h.b16 %v1245
        %v1316 = vunpack.c.l.b16 %v1246
        %v1317 = vunpack.c.h.b16 %v1246
        %v1318 = vunpack.c.l.b16 %v1247
        %v1319 = vunpack.c.h.b16 %v1247
        %v1320 = vpack.c.b16 %v1274, %v1272
        %v1321 = vpack.c.b16 %v1275, %v1273
        %v1322 = vpack.c.b16 %v1278, %v1276
        %v1323 = vpack.c.b16 %v1279, %v1277
        %v1324 = vpack.c.b16 %v1282, %v1280
        %v1325 = vpack.c.b16 %v1283, %v1281
        %v1326 = vpack.c.b16 %v1286, %v1284
        %v1327 = vpack.c.b16 %v1287, %v1285
        %v1328 = vpack.c.b16 %v1290, %v1288
        %v1329 = vpack.c.b16 %v1291, %v1289
        %v1330 = vpack.c.b16 %v1294, %v1292
        %v1331 = vpack.c.b16 %v1295, %v1293
        %v1332 = vpack.c.b16 %v1298, %v1296
        %v1333 = vpack.c.b16 %v1299, %v1297
        %v1334 = vpack.c.b16 %v1302, %v1300
        %v1335 = vpack.c.b16 %v1303, %v1301
        %v1336 = vpack.c.b16 %v1306, %v1304
        %v1337 = vpack.c.b16 %v1307, %v1305
        %v1338 = vpack.c.b16 %v1310, %v1308
        %v1339 = vpack.c.b16 %v1311, %v1309
        %v1340 = vpack.c.b16 %v1314, %v1312
        %v1341 = vpack.c.b16 %v1315, %v1313
        %v1342 = vpack.c.b16 %v1318, %v1316
        %v1343 = vpack.c.b16 %v1319, %v1317
        %v1369 = vsel %vm701, %v1223, 0
        %1371 = vmatpush.bf16.msra.mxu0 %v1334
        %1372 = vmatpush.bf16.msra.mxu0 %v1332
        %1373 = vmatpush.bf16.msra.mxu0 %v1330
        %1374 = vmatpush.bf16.msra.mxu0 %v1328
        %1375 = vmatpush.bf16.msra.mxu0 %v1326
        %1376 = vmatpush.bf16.msra.mxu0 %v1324
        %1377 = vmatpush.bf16.msra.mxu0 %v1322
        %1378 = vmatpush.bf16.msra.mxu0 %v1320
        %1379 = vmatmul.bf16.gmra.mxu0 %v1222
        %v1380 = vpop.f32.mrf.mxu0
        %v1381 = vadd.f32 0.0, %v1380
        %v1382 = vpop.f32.mrf.mxu0
        %1383 = vdwg.mxu0
        %1384 = vmatpush.bf16.msra.mxu0 0
        %1385 = vmatpush.bf16.msra.mxu0 0
        %1386 = vmatpush.bf16.msra.mxu0 0
        %1387 = vmatpush.bf16.msra.mxu0 0
        %1388 = vmatpush.bf16.msra.mxu0 %v1342
        %1389 = vmatpush.bf16.msra.mxu0 %v1340
        %1390 = vmatpush.bf16.msra.mxu0 %v1338
        %1391 = vmatpush.bf16.msra.mxu0 %v1336
        %1392 = vmatmul.bf16.gmra.mxu0 %v1369
        %v1393 = vpop.f32.mrf.mxu0
        %v1394 = vadd.f32 %v1381, %v1393
        %v1395 = vpop.f32.mrf.mxu0
        %1396 = vdwg.mxu0
        %1397 = vmatpush.bf16.msra.mxu0 %v1335
        %1398 = vmatpush.bf16.msra.mxu0 %v1333
        %1399 = vmatpush.bf16.msra.mxu0 %v1331
        %1400 = vmatpush.bf16.msra.mxu0 %v1329
        %1401 = vmatpush.bf16.msra.mxu0 %v1327
        %1402 = vmatpush.bf16.msra.mxu0 %v1325
        %1403 = vmatpush.bf16.msra.mxu0 %v1323
        %1404 = vmatpush.bf16.msra.mxu0 %v1321
        %1405 = vmatmul.bf16.gmra.mxu0 %v1222
        %v1406 = vpop.f32.mrf.mxu0
        %v1407 = vadd.f32 0.0, %v1406
        %v1408 = vpop.f32.mrf.mxu0
        %1409 = vdwg.mxu0
        %1410 = vmatpush.bf16.msra.mxu0 0
        %1411 = vmatpush.bf16.msra.mxu0 0
        %1412 = vmatpush.bf16.msra.mxu0 0
        %1413 = vmatpush.bf16.msra.mxu0 0
        %1414 = vmatpush.bf16.msra.mxu0 %v1343
        %1415 = vmatpush.bf16.msra.mxu0 %v1341
        %1416 = vmatpush.bf16.msra.mxu0 %v1339
        %1417 = vmatpush.bf16.msra.mxu0 %v1337
        %1418 = vmatmul.bf16.gmra.mxu0 %v1369
        %v1419 = vpop.f32.mrf.mxu0
        %v1420 = vadd.f32 %v1407, %v1419
        %v1421 = vpop.f32.mrf.mxu0
        %1422 = vdwg.mxu0
        %v1424 = vperm.slane %v1219, 0
        %v1425 = vperm.slane %v1219, 1
        %v1428 = vadd.f32 %v1424, %v1394
        %v1429 = vadd.f32 %v1425, %v1420
        %v1430 = vld [vmem:[#allocation2] sm:$0xfe]
        %v1431 = vld [vmem:[#allocation2 + $0x8] sm:$0xfe]
        %v1432 = vld [vmem:[#allocation2 + $0x10] sm:$0x1]
        %v1433 = vld [vmem:[#allocation2 + $0x18] sm:$0x1]
        %v1434 = vpack.c.bf16 %v1432, %v1430
        %v1435 = vpack.c.bf16 %v1433, %v1431
        %s1436 = scalar_lea.vmem [#allocation8], 192
        %v1437 = vld [vmem:[%s1436] sm:$0xff]
        %v1438 = vld [vmem:[%s1436 + $0x8] sm:$0xff]
        %v1439 = vld [vmem:[%s1436 + $0x10] sm:$0xff]
        %v1440 = vld [vmem:[%s1436 + $0x18] sm:$0xff]
        %v1441 = vld [vmem:[%s1436 + $0x20] sm:$0xff]
        %v1442 = vld [vmem:[%s1436 + $0x28] sm:$0xff]
        %v1443 = vld [vmem:[%s1436 + $0x30] sm:$0xff]
        %v1444 = vld [vmem:[%s1436 + $0x38] sm:$0xff]
        %v1445 = vld [vmem:[%s1436 + $0x40] sm:$0xff]
        %v1446 = vld [vmem:[%s1436 + $0x48] sm:$0xff]
        %v1447 = vld [vmem:[%s1436 + $0x50] sm:$0xff]
        %v1448 = vld [vmem:[%s1436 + $0x58] sm:$0xff]
        %v1449 = vld [vmem:[%s1436 + $0x60] sm:$0xff]
        %v1450 = vld [vmem:[%s1436 + $0x68] sm:$0xff]
        %v1451 = vld [vmem:[%s1436 + $0x70] sm:$0xff]
        %v1452 = vld [vmem:[%s1436 + $0x78] sm:$0xff]
        %v1453 = vld [vmem:[%s1436 + $0x80] sm:$0xff]
        %v1454 = vld [vmem:[%s1436 + $0x88] sm:$0xff]
        %v1455 = vld [vmem:[%s1436 + $0x90] sm:$0xff]
        %v1456 = vld [vmem:[%s1436 + $0x98] sm:$0xff]
        %v1457 = vld [vmem:[%s1436 + $0xa0] sm:$0xff]
        %v1458 = vld [vmem:[%s1436 + $0xa8] sm:$0xff]
        %v1459 = vld [vmem:[%s1436 + $0xb0] sm:$0xff]
        %v1460 = vld [vmem:[%s1436 + $0xb8] sm:$0xff]
        %v1462 = vshrl.u32 %v1434, 16
        %v1464 = vshll.u32 %v1434, 16
        %v1466 = vrot.slane %v1464, 1
        %v1467 = vor.u32 %v1462, %v1466
        %v1469 = vshrl.u32 %v1435, 16
        %v1471 = vshll.u32 %v1435, 16
        %v1473 = vrot.slane %v1471, 1
        %v1474 = vor.u32 %v1469, %v1473
        %v1500 = vunpack.c.l.b16 %v1437
        %v1501 = vunpack.c.h.b16 %v1437
        %v1502 = vunpack.c.l.b16 %v1438
        %v1503 = vunpack.c.h.b16 %v1438
        %v1504 = vunpack.c.l.b16 %v1439
        %v1505 = vunpack.c.h.b16 %v1439
        %v1506 = vunpack.c.l.b16 %v1440
        %v1507 = vunpack.c.h.b16 %v1440
        %v1508 = vunpack.c.l.b16 %v1441
        %v1509 = vunpack.c.h.b16 %v1441
        %v1510 = vunpack.c.l.b16 %v1442
        %v1511 = vunpack.c.h.b16 %v1442
        %v1512 = vunpack.c.l.b16 %v1443
        %v1513 = vunpack.c.h.b16 %v1443
        %v1514 = vunpack.c.l.b16 %v1444
        %v1515 = vunpack.c.h.b16 %v1444
        %v1516 = vunpack.c.l.b16 %v1445
        %v1517 = vunpack.c.h.b16 %v1445
        %v1518 = vunpack.c.l.b16 %v1446
        %v1519 = vunpack.c.h.b16 %v1446
        %v1520 = vunpack.c.l.b16 %v1447
        %v1521 = vunpack.c.h.b16 %v1447
        %v1522 = vunpack.c.l.b16 %v1448
        %v1523 = vunpack.c.h.b16 %v1448
        %v1524 = vunpack.c.l.b16 %v1449
        %v1525 = vunpack.c.h.b16 %v1449
        %v1526 = vunpack.c.l.b16 %v1450
        %v1527 = vunpack.c.h.b16 %v1450
        %v1528 = vunpack.c.l.b16 %v1451
        %v1529 = vunpack.c.h.b16 %v1451
        %v1530 = vunpack.c.l.b16 %v1452
        %v1531 = vunpack.c.h.b16 %v1452
        %v1532 = vunpack.c.l.b16 %v1453
        %v1533 = vunpack.c.h.b16 %v1453
        %v1534 = vunpack.c.l.b16 %v1454
        %v1535 = vunpack.c.h.b16 %v1454
        %v1536 = vunpack.c.l.b16 %v1455
        %v1537 = vunpack.c.h.b16 %v1455
        %v1538 = vunpack.c.l.b16 %v1456
        %v1539 = vunpack.c.h.b16 %v1456
        %v1540 = vunpack.c.l.b16 %v1457
        %v1541 = vunpack.c.h.b16 %v1457
        %v1542 = vunpack.c.l.b16 %v1458
        %v1543 = vunpack.c.h.b16 %v1458
        %v1544 = vunpack.c.l.b16 %v1459
        %v1545 = vunpack.c.h.b16 %v1459
        %v1546 = vunpack.c.l.b16 %v1460
        %v1547 = vunpack.c.h.b16 %v1460
        %v1548 = vpack.c.b16 %v1502, %v1500
        %v1549 = vpack.c.b16 %v1503, %v1501
        %v1550 = vpack.c.b16 %v1506, %v1504
        %v1551 = vpack.c.b16 %v1507, %v1505
        %v1552 = vpack.c.b16 %v1510, %v1508
        %v1553 = vpack.c.b16 %v1511, %v1509
        %v1554 = vpack.c.b16 %v1514, %v1512
        %v1555 = vpack.c.b16 %v1515, %v1513
        %v1556 = vpack.c.b16 %v1518, %v1516
        %v1557 = vpack.c.b16 %v1519, %v1517
        %v1558 = vpack.c.b16 %v1522, %v1520
        %v1559 = vpack.c.b16 %v1523, %v1521
        %v1560 = vpack.c.b16 %v1526, %v1524
        %v1561 = vpack.c.b16 %v1527, %v1525
        %v1562 = vpack.c.b16 %v1530, %v1528
        %v1563 = vpack.c.b16 %v1531, %v1529
        %v1564 = vpack.c.b16 %v1534, %v1532
        %v1565 = vpack.c.b16 %v1535, %v1533
        %v1566 = vpack.c.b16 %v1538, %v1536
        %v1567 = vpack.c.b16 %v1539, %v1537
        %v1568 = vpack.c.b16 %v1542, %v1540
        %v1569 = vpack.c.b16 %v1543, %v1541
        %v1570 = vpack.c.b16 %v1546, %v1544
        %v1571 = vpack.c.b16 %v1547, %v1545
        %v1597 = vsel %vm701, %v1474, 0
        %1599 = vmatpush.bf16.msra.mxu0 %v1562
        %1600 = vmatpush.bf16.msra.mxu0 %v1560
        %1601 = vmatpush.bf16.msra.mxu0 %v1558
        %1602 = vmatpush.bf16.msra.mxu0 %v1556
        %1603 = vmatpush.bf16.msra.mxu0 %v1554
        %1604 = vmatpush.bf16.msra.mxu0 %v1552
        %1605 = vmatpush.bf16.msra.mxu0 %v1550
        %1606 = vmatpush.bf16.msra.mxu0 %v1548
        %1607 = vmatmul.bf16.gmra.mxu0 %v1467
        %v1608 = vpop.f32.mrf.mxu0
        %v1609 = vadd.f32 0.0, %v1608
        %v1610 = vpop.f32.mrf.mxu0
        %1611 = vdwg.mxu0
        %1612 = vmatpush.bf16.msra.mxu0 0
        %1613 = vmatpush.bf16.msra.mxu0 0
        %1614 = vmatpush.bf16.msra.mxu0 0
        %1615 = vmatpush.bf16.msra.mxu0 0
        %1616 = vmatpush.bf16.msra.mxu0 %v1570
        %1617 = vmatpush.bf16.msra.mxu0 %v1568
        %1618 = vmatpush.bf16.msra.mxu0 %v1566
        %1619 = vmatpush.bf16.msra.mxu0 %v1564
        %1620 = vmatmul.bf16.gmra.mxu0 %v1597
        %v1621 = vpop.f32.mrf.mxu0
        %v1622 = vadd.f32 %v1609, %v1621
        %v1623 = vpop.f32.mrf.mxu0
        %1624 = vdwg.mxu0
        %1625 = vmatpush.bf16.msra.mxu0 %v1563
        %1626 = vmatpush.bf16.msra.mxu0 %v1561
        %1627 = vmatpush.bf16.msra.mxu0 %v1559
        %1628 = vmatpush.bf16.msra.mxu0 %v1557
        %1629 = vmatpush.bf16.msra.mxu0 %v1555
        %1630 = vmatpush.bf16.msra.mxu0 %v1553
        %1631 = vmatpush.bf16.msra.mxu0 %v1551
        %1632 = vmatpush.bf16.msra.mxu0 %v1549
        %1633 = vmatmul.bf16.gmra.mxu0 %v1467
        %v1634 = vpop.f32.mrf.mxu0
        %v1635 = vadd.f32 0.0, %v1634
        %v1636 = vpop.f32.mrf.mxu0
        %1637 = vdwg.mxu0
        %1638 = vmatpush.bf16.msra.mxu0 0
        %1639 = vmatpush.bf16.msra.mxu0 0
        %1640 = vmatpush.bf16.msra.mxu0 0
        %1641 = vmatpush.bf16.msra.mxu0 0
        %1642 = vmatpush.bf16.msra.mxu0 %v1571
        %1643 = vmatpush.bf16.msra.mxu0 %v1569
        %1644 = vmatpush.bf16.msra.mxu0 %v1567
        %1645 = vmatpush.bf16.msra.mxu0 %v1565
        %1646 = vmatmul.bf16.gmra.mxu0 %v1597
        %v1647 = vpop.f32.mrf.mxu0
        %v1648 = vadd.f32 %v1635, %v1647
        %v1649 = vpop.f32.mrf.mxu0
        %1650 = vdwg.mxu0
        %v1651 = vadd.f32 %v1428, %v1622
        %v1652 = vadd.f32 %v1429, %v1648
        %v1653 = vld [vmem:[#allocation2] sm:$0xfc]
        %v1654 = vld [vmem:[#allocation2 + $0x8] sm:$0xfc]
        %v1655 = vld [vmem:[#allocation2 + $0x10] sm:$0x3]
        %v1656 = vld [vmem:[#allocation2 + $0x18] sm:$0x3]
        %v1657 = vpack.c.bf16 %v1655, %v1653
        %v1658 = vpack.c.bf16 %v1656, %v1654
        %s1659 = scalar_lea.vmem [#allocation8], 384
        %v1660 = vld [vmem:[%s1659] sm:$0xff]
        %v1661 = vld [vmem:[%s1659 + $0x8] sm:$0xff]
        %v1662 = vld [vmem:[%s1659 + $0x10] sm:$0xff]
        %v1663 = vld [vmem:[%s1659 + $0x18] sm:$0xff]
        %v1664 = vld [vmem:[%s1659 + $0x20] sm:$0xff]
        %v1665 = vld [vmem:[%s1659 + $0x28] sm:$0xff]
        %v1666 = vld [vmem:[%s1659 + $0x30] sm:$0xff]
        %v1667 = vld [vmem:[%s1659 + $0x38] sm:$0xff]
        %v1668 = vld [vmem:[%s1659 + $0x40] sm:$0xff]
        %v1669 = vld [vmem:[%s1659 + $0x48] sm:$0xff]
        %v1670 = vld [vmem:[%s1659 + $0x50] sm:$0xff]
        %v1671 = vld [vmem:[%s1659 + $0x58] sm:$0xff]
        %v1672 = vld [vmem:[%s1659 + $0x60] sm:$0xff]
        %v1673 = vld [vmem:[%s1659 + $0x68] sm:$0xff]
        %v1674 = vld [vmem:[%s1659 + $0x70] sm:$0xff]
        %v1675 = vld [vmem:[%s1659 + $0x78] sm:$0xff]
        %v1676 = vld [vmem:[%s1659 + $0x80] sm:$0xff]
        %v1677 = vld [vmem:[%s1659 + $0x88] sm:$0xff]
        %v1678 = vld [vmem:[%s1659 + $0x90] sm:$0xff]
        %v1679 = vld [vmem:[%s1659 + $0x98] sm:$0xff]
        %v1680 = vld [vmem:[%s1659 + $0xa0] sm:$0xff]
        %v1681 = vld [vmem:[%s1659 + $0xa8] sm:$0xff]
        %v1682 = vld [vmem:[%s1659 + $0xb0] sm:$0xff]
        %v1683 = vld [vmem:[%s1659 + $0xb8] sm:$0xff]
        %v1686 = vrot.slane %v1657, 1
        %v1687 = vrot.slane %v1658, 1
        %v1713 = vunpack.c.l.b16 %v1660
        %v1714 = vunpack.c.h.b16 %v1660
        %v1715 = vunpack.c.l.b16 %v1661
        %v1716 = vunpack.c.h.b16 %v1661
        %v1717 = vunpack.c.l.b16 %v1662
        %v1718 = vunpack.c.h.b16 %v1662
        %v1719 = vunpack.c.l.b16 %v1663
        %v1720 = vunpack.c.h.b16 %v1663
        %v1721 = vunpack.c.l.b16 %v1664
        %v1722 = vunpack.c.h.b16 %v1664
        %v1723 = vunpack.c.l.b16 %v1665
        %v1724 = vunpack.c.h.b16 %v1665
        %v1725 = vunpack.c.l.b16 %v1666
        %v1726 = vunpack.c.h.b16 %v1666
        %v1727 = vunpack.c.l.b16 %v1667
        %v1728 = vunpack.c.h.b16 %v1667
        %v1729 = vunpack.c.l.b16 %v1668
        %v1730 = vunpack.c.h.b16 %v1668
        %v1731 = vunpack.c.l.b16 %v1669
        %v1732 = vunpack.c.h.b16 %v1669
        %v1733 = vunpack.c.l.b16 %v1670
        %v1734 = vunpack.c.h.b16 %v1670
        %v1735 = vunpack.c.l.b16 %v1671
        %v1736 = vunpack.c.h.b16 %v1671
        %v1737 = vunpack.c.l.b16 %v1672
        %v1738 = vunpack.c.h.b16 %v1672
        %v1739 = vunpack.c.l.b16 %v1673
        %v1740 = vunpack.c.h.b16 %v1673
        %v1741 = vunpack.c.l.b16 %v1674
        %v1742 = vunpack.c.h.b16 %v1674
        %v1743 = vunpack.c.l.b16 %v1675
        %v1744 = vunpack.c.h.b16 %v1675
        %v1745 = vunpack.c.l.b16 %v1676
        %v1746 = vunpack.c.h.b16 %v1676
        %v1747 = vunpack.c.l.b16 %v1677
        %v1748 = vunpack.c.h.b16 %v1677
        %v1749 = vunpack.c.l.b16 %v1678
        %v1750 = vunpack.c.h.b16 %v1678
        %v1751 = vunpack.c.l.b16 %v1679
        %v1752 = vunpack.c.h.b16 %v1679
        %v1753 = vunpack.c.l.b16 %v1680
        %v1754 = vunpack.c.h.b16 %v1680
        %v1755 = vunpack.c.l.b16 %v1681
        %v1756 = vunpack.c.h.b16 %v1681
        %v1757 = vunpack.c.l.b16 %v1682
        %v1758 = vunpack.c.h.b16 %v1682
        %v1759 = vunpack.c.l.b16 %v1683
        %v1760 = vunpack.c.h.b16 %v1683
        %v1761 = vpack.c.b16 %v1715, %v1713
        %v1762 = vpack.c.b16 %v1716, %v1714
        %v1763 = vpack.c.b16 %v1719, %v1717
        %v1764 = vpack.c.b16 %v1720, %v1718
        %v1765 = vpack.c.b16 %v1723, %v1721
        %v1766 = vpack.c.b16 %v1724, %v1722
        %v1767 = vpack.c.b16 %v1727, %v1725
        %v1768 = vpack.c.b16 %v1728, %v1726
        %v1769 = vpack.c.b16 %v1731, %v1729
        %v1770 = vpack.c.b16 %v1732, %v1730
        %v1771 = vpack.c.b16 %v1735, %v1733
        %v1772 = vpack.c.b16 %v1736, %v1734
        %v1773 = vpack.c.b16 %v1739, %v1737
        %v1774 = vpack.c.b16 %v1740, %v1738
        %v1775 = vpack.c.b16 %v1743, %v1741
        %v1776 = vpack.c.b16 %v1744, %v1742
        %v1777 = vpack.c.b16 %v1747, %v1745
        %v1778 = vpack.c.b16 %v1748, %v1746
        %v1779 = vpack.c.b16 %v1751, %v1749
        %v1780 = vpack.c.b16 %v1752, %v1750
        %v1781 = vpack.c.b16 %v1755, %v1753
        %v1782 = vpack.c.b16 %v1756, %v1754
        %v1783 = vpack.c.b16 %v1759, %v1757
        %v1784 = vpack.c.b16 %v1760, %v1758
        %v1810 = vsel %vm701, %v1687, 0
        %1812 = vmatpush.bf16.msra.mxu0 %v1775
        %1813 = vmatpush.bf16.msra.mxu0 %v1773
        %1814 = vmatpush.bf16.msra.mxu0 %v1771
        %1815 = vmatpush.bf16.msra.mxu0 %v1769
        %1816 = vmatpush.bf16.msra.mxu0 %v1767
        %1817 = vmatpush.bf16.msra.mxu0 %v1765
        %1818 = vmatpush.bf16.msra.mxu0 %v1763
        %1819 = vmatpush.bf16.msra.mxu0 %v1761
        %1820 = vmatmul.bf16.gmra.mxu0 %v1686
        %v1821 = vpop.f32.mrf.mxu0
        %v1822 = vadd.f32 0.0, %v1821
        %v1823 = vpop.f32.mrf.mxu0
        %1824 = vdwg.mxu0
        %1825 = vmatpush.bf16.msra.mxu0 0
        %1826 = vmatpush.bf16.msra.mxu0 0
        %1827 = vmatpush.bf16.msra.mxu0 0
        %1828 = vmatpush.bf16.msra.mxu0 0
        %1829 = vmatpush.bf16.msra.mxu0 %v1783
        %1830 = vmatpush.bf16.msra.mxu0 %v1781
        %1831 = vmatpush.bf16.msra.mxu0 %v1779
        %1832 = vmatpush.bf16.msra.mxu0 %v1777
        %1833 = vmatmul.bf16.gmra.mxu0 %v1810
        %v1834 = vpop.f32.mrf.mxu0
        %v1835 = vadd.f32 %v1822, %v1834
        %v1836 = vpop.f32.mrf.mxu0
        %1837 = vdwg.mxu0
        %1838 = vmatpush.bf16.msra.mxu0 %v1776
        %1839 = vmatpush.bf16.msra.mxu0 %v1774
        %1840 = vmatpush.bf16.msra.mxu0 %v1772
        %1841 = vmatpush.bf16.msra.mxu0 %v1770
        %1842 = vmatpush.bf16.msra.mxu0 %v1768
        %1843 = vmatpush.bf16.msra.mxu0 %v1766
        %1844 = vmatpush.bf16.msra.mxu0 %v1764
        %1845 = vmatpush.bf16.msra.mxu0 %v1762
        %1846 = vmatmul.bf16.gmra.mxu0 %v1686
        %v1847 = vpop.f32.mrf.mxu0
        %v1848 = vadd.f32 0.0, %v1847
        %v1849 = vpop.f32.mrf.mxu0
        %1850 = vdwg.mxu0
        %1851 = vmatpush.bf16.msra.mxu0 0
        %1852 = vmatpush.bf16.msra.mxu0 0
        %1853 = vmatpush.bf16.msra.mxu0 0
        %1854 = vmatpush.bf16.msra.mxu0 0
        %1855 = vmatpush.bf16.msra.mxu0 %v1784
        %1856 = vmatpush.bf16.msra.mxu0 %v1782
        %1857 = vmatpush.bf16.msra.mxu0 %v1780
        %1858 = vmatpush.bf16.msra.mxu0 %v1778
        %1859 = vmatmul.bf16.gmra.mxu0 %v1810
        %v1860 = vpop.f32.mrf.mxu0
        %v1861 = vadd.f32 %v1848, %v1860
        %v1862 = vpop.f32.mrf.mxu0
        %1863 = vdwg.mxu0
        %v1864 = vadd.f32 %v1651, %v1835
        %v1865 = vadd.f32 %v1652, %v1861
        %v1866 = vld [vmem:[#allocation2] sm:$0xf8]
        %v1867 = vld [vmem:[#allocation2 + $0x8] sm:$0xf8]
        %v1868 = vld [vmem:[#allocation2 + $0x10] sm:$0x7]
        %v1869 = vld [vmem:[#allocation2 + $0x18] sm:$0x7]
        %v1870 = vpack.c.bf16 %v1868, %v1866
        %v1871 = vpack.c.bf16 %v1869, %v1867
        %s1872 = scalar_lea.vmem [#allocation8], 576
        %v1873 = vld [vmem:[%s1872] sm:$0xff]
        %v1874 = vld [vmem:[%s1872 + $0x8] sm:$0xff]
        %v1875 = vld [vmem:[%s1872 + $0x10] sm:$0xff]
        %v1876 = vld [vmem:[%s1872 + $0x18] sm:$0xff]
        %v1877 = vld [vmem:[%s1872 + $0x20] sm:$0xff]
        %v1878 = vld [vmem:[%s1872 + $0x28] sm:$0xff]
        %v1879 = vld [vmem:[%s1872 + $0x30] sm:$0xff]
        %v1880 = vld [vmem:[%s1872 + $0x38] sm:$0xff]
        %v1881 = vld [vmem:[%s1872 + $0x40] sm:$0xff]
        %v1882 = vld [vmem:[%s1872 + $0x48] sm:$0xff]
        %v1883 = vld [vmem:[%s1872 + $0x50] sm:$0xff]
        %v1884 = vld [vmem:[%s1872 + $0x58] sm:$0xff]
        %v1885 = vld [vmem:[%s1872 + $0x60] sm:$0xff]
        %v1886 = vld [vmem:[%s1872 + $0x68] sm:$0xff]
        %v1887 = vld [vmem:[%s1872 + $0x70] sm:$0xff]
        %v1888 = vld [vmem:[%s1872 + $0x78] sm:$0xff]
        %v1889 = vld [vmem:[%s1872 + $0x80] sm:$0xff]
        %v1890 = vld [vmem:[%s1872 + $0x88] sm:$0xff]
        %v1891 = vld [vmem:[%s1872 + $0x90] sm:$0xff]
        %v1892 = vld [vmem:[%s1872 + $0x98] sm:$0xff]
        %v1893 = vld [vmem:[%s1872 + $0xa0] sm:$0xff]
        %v1894 = vld [vmem:[%s1872 + $0xa8] sm:$0xff]
        %v1895 = vld [vmem:[%s1872 + $0xb0] sm:$0xff]
        %v1896 = vld [vmem:[%s1872 + $0xb8] sm:$0xff]
        %v1898 = vshrl.u32 %v1870, 16
        %v1900 = vrot.slane %v1898, 1
        %v1901 = vshll.u32 %v1870, 16
        %v1903 = vrot.slane %v1901, 2
        %v1904 = vor.u32 %v1900, %v1903
        %v1906 = vshrl.u32 %v1871, 16
        %v1908 = vrot.slane %v1906, 1
        %v1909 = vshll.u32 %v1871, 16
        %v1911 = vrot.slane %v1909, 2
        %v1912 = vor.u32 %v1908, %v1911
        %v1938 = vunpack.c.l.b16 %v1873
        %v1939 = vunpack.c.h.b16 %v1873
        %v1940 = vunpack.c.l.b16 %v1874
        %v1941 = vunpack.c.h.b16 %v1874
        %v1942 = vunpack.c.l.b16 %v1875
        %v1943 = vunpack.c.h.b16 %v1875
        %v1944 = vunpack.c.l.b16 %v1876
        %v1945 = vunpack.c.h.b16 %v1876
        %v1946 = vunpack.c.l.b16 %v1877
        %v1947 = vunpack.c.h.b16 %v1877
        %v1948 = vunpack.c.l.b16 %v1878
        %v1949 = vunpack.c.h.b16 %v1878
        %v1950 = vunpack.c.l.b16 %v1879
        %v1951 = vunpack.c.h.b16 %v1879
        %v1952 = vunpack.c.l.b16 %v1880
        %v1953 = vunpack.c.h.b16 %v1880
        %v1954 = vunpack.c.l.b16 %v1881
        %v1955 = vunpack.c.h.b16 %v1881
        %v1956 = vunpack.c.l.b16 %v1882
        %v1957 = vunpack.c.h.b16 %v1882
        %v1958 = vunpack.c.l.b16 %v1883
        %v1959 = vunpack.c.h.b16 %v1883
        %v1960 = vunpack.c.l.b16 %v1884
        %v1961 = vunpack.c.h.b16 %v1884
        %v1962 = vunpack.c.l.b16 %v1885
        %v1963 = vunpack.c.h.b16 %v1885
        %v1964 = vunpack.c.l.b16 %v1886
        %v1965 = vunpack.c.h.b16 %v1886
        %v1966 = vunpack.c.l.b16 %v1887
        %v1967 = vunpack.c.h.b16 %v1887
        %v1968 = vunpack.c.l.b16 %v1888
        %v1969 = vunpack.c.h.b16 %v1888
        %v1970 = vunpack.c.l.b16 %v1889
        %v1971 = vunpack.c.h.b16 %v1889
        %v1972 = vunpack.c.l.b16 %v1890
        %v1973 = vunpack.c.h.b16 %v1890
        %v1974 = vunpack.c.l.b16 %v1891
        %v1975 = vunpack.c.h.b16 %v1891
        %v1976 = vunpack.c.l.b16 %v1892
        %v1977 = vunpack.c.h.b16 %v1892
        %v1978 = vunpack.c.l.b16 %v1893
        %v1979 = vunpack.c.h.b16 %v1893
        %v1980 = vunpack.c.l.b16 %v1894
        %v1981 = vunpack.c.h.b16 %v1894
        %v1982 = vunpack.c.l.b16 %v1895
        %v1983 = vunpack.c.h.b16 %v1895
        %v1984 = vunpack.c.l.b16 %v1896
        %v1985 = vunpack.c.h.b16 %v1896
        %v1986 = vpack.c.b16 %v1940, %v1938
        %v1987 = vpack.c.b16 %v1941, %v1939
        %v1988 = vpack.c.b16 %v1944, %v1942
        %v1989 = vpack.c.b16 %v1945, %v1943
        %v1990 = vpack.c.b16 %v1948, %v1946
        %v1991 = vpack.c.b16 %v1949, %v1947
        %v1992 = vpack.c.b16 %v1952, %v1950
        %v1993 = vpack.c.b16 %v1953, %v1951
        %v1994 = vpack.c.b16 %v1956, %v1954
        %v1995 = vpack.c.b16 %v1957, %v1955
        %v1996 = vpack.c.b16 %v1960, %v1958
        %v1997 = vpack.c.b16 %v1961, %v1959
        %v1998 = vpack.c.b16 %v1964, %v1962
        %v1999 = vpack.c.b16 %v1965, %v1963
        %v2000 = vpack.c.b16 %v1968, %v1966
        %v2001 = vpack.c.b16 %v1969, %v1967
        %v2002 = vpack.c.b16 %v1972, %v1970
        %v2003 = vpack.c.b16 %v1973, %v1971
        %v2004 = vpack.c.b16 %v1976, %v1974
        %v2005 = vpack.c.b16 %v1977, %v1975
        %v2006 = vpack.c.b16 %v1980, %v1978
        %v2007 = vpack.c.b16 %v1981, %v1979
        %v2008 = vpack.c.b16 %v1984, %v1982
        %v2009 = vpack.c.b16 %v1985, %v1983
        %v2035 = vsel %vm701, %v1912, 0
        %2037 = vmatpush.bf16.msra.mxu0 %v2000
        %2038 = vmatpush.bf16.msra.mxu0 %v1998
        %2039 = vmatpush.bf16.msra.mxu0 %v1996
        %2040 = vmatpush.bf16.msra.mxu0 %v1994
        %2041 = vmatpush.bf16.msra.mxu0 %v1992
        %2042 = vmatpush.bf16.msra.mxu0 %v1990
        %2043 = vmatpush.bf16.msra.mxu0 %v1988
        %2044 = vmatpush.bf16.msra.mxu0 %v1986
        %2045 = vmatmul.bf16.gmra.mxu0 %v1904
        %v2046 = vpop.f32.mrf.mxu0
        %v2047 = vadd.f32 0.0, %v2046
        %v2048 = vpop.f32.mrf.mxu0
        %2049 = vdwg.mxu0
        %2050 = vmatpush.bf16.msra.mxu0 0
        %2051 = vmatpush.bf16.msra.mxu0 0
        %2052 = vmatpush.bf16.msra.mxu0 0
        %2053 = vmatpush.bf16.msra.mxu0 0
        %2054 = vmatpush.bf16.msra.mxu0 %v2008
        %2055 = vmatpush.bf16.msra.mxu0 %v2006
        %2056 = vmatpush.bf16.msra.mxu0 %v2004
        %2057 = vmatpush.bf16.msra.mxu0 %v2002
        %2058 = vmatmul.bf16.gmra.mxu0 %v2035
        %v2059 = vpop.f32.mrf.mxu0
        %v2060 = vadd.f32 %v2047, %v2059
        %v2061 = vpop.f32.mrf.mxu0
        %2062 = vdwg.mxu0
        %2063 = vmatpush.bf16.msra.mxu0 %v2001
        %2064 = vmatpush.bf16.msra.mxu0 %v1999
        %2065 = vmatpush.bf16.msra.mxu0 %v1997
        %2066 = vmatpush.bf16.msra.mxu0 %v1995
        %2067 = vmatpush.bf16.msra.mxu0 %v1993
        %2068 = vmatpush.bf16.msra.mxu0 %v1991
        %2069 = vmatpush.bf16.msra.mxu0 %v1989
        %2070 = vmatpush.bf16.msra.mxu0 %v1987
        %2071 = vmatmul.bf16.gmra.mxu0 %v1904
        %v2072 = vpop.f32.mrf.mxu0
        %v2073 = vadd.f32 0.0, %v2072
        %v2074 = vpop.f32.mrf.mxu0
        %2075 = vdwg.mxu0
        %2076 = vmatpush.bf16.msra.mxu0 0
        %2077 = vmatpush.bf16.msra.mxu0 0
        %2078 = vmatpush.bf16.msra.mxu0 0
        %2079 = vmatpush.bf16.msra.mxu0 0
        %2080 = vmatpush.bf16.msra.mxu0 %v2009
        %2081 = vmatpush.bf16.msra.mxu0 %v2007
        %2082 = vmatpush.bf16.msra.mxu0 %v2005
        %2083 = vmatpush.bf16.msra.mxu0 %v2003
        %2084 = vmatmul.bf16.gmra.mxu0 %v2035
        %v2085 = vpop.f32.mrf.mxu0
        %v2086 = vadd.f32 %v2073, %v2085
        %v2087 = vpop.f32.mrf.mxu0
        %2088 = vdwg.mxu0
        %v2089 = vadd.f32 %v1864, %v2060
        %v2090 = vadd.f32 %v1865, %v2086
        %v2091 = vld [vmem:[#allocation2] sm:$0xf0]
        %v2092 = vld [vmem:[#allocation2 + $0x8] sm:$0xf0]
        %v2093 = vld [vmem:[#allocation2 + $0x10] sm:$0xf]
        %v2094 = vld [vmem:[#allocation2 + $0x18] sm:$0xf]
        %v2095 = vpack.c.bf16 %v2093, %v2091
        %v2096 = vpack.c.bf16 %v2094, %v2092
        %s2097 = scalar_lea.vmem [#allocation8], 768
        %v2098 = vld [vmem:[%s2097] sm:$0xff]
        %v2099 = vld [vmem:[%s2097 + $0x8] sm:$0xff]
        %v2100 = vld [vmem:[%s2097 + $0x10] sm:$0xff]
        %v2101 = vld [vmem:[%s2097 + $0x18] sm:$0xff]
        %v2102 = vld [vmem:[%s2097 + $0x20] sm:$0xff]
        %v2103 = vld [vmem:[%s2097 + $0x28] sm:$0xff]
        %v2104 = vld [vmem:[%s2097 + $0x30] sm:$0xff]
        %v2105 = vld [vmem:[%s2097 + $0x38] sm:$0xff]
        %v2106 = vld [vmem:[%s2097 + $0x40] sm:$0xff]
        %v2107 = vld [vmem:[%s2097 + $0x48] sm:$0xff]
        %v2108 = vld [vmem:[%s2097 + $0x50] sm:$0xff]
        %v2109 = vld [vmem:[%s2097 + $0x58] sm:$0xff]
        %v2110 = vld [vmem:[%s2097 + $0x60] sm:$0xff]
        %v2111 = vld [vmem:[%s2097 + $0x68] sm:$0xff]
        %v2112 = vld [vmem:[%s2097 + $0x70] sm:$0xff]
        %v2113 = vld [vmem:[%s2097 + $0x78] sm:$0xff]
        %v2114 = vld [vmem:[%s2097 + $0x80] sm:$0xff]
        %v2115 = vld [vmem:[%s2097 + $0x88] sm:$0xff]
        %v2116 = vld [vmem:[%s2097 + $0x90] sm:$0xff]
        %v2117 = vld [vmem:[%s2097 + $0x98] sm:$0xff]
        %v2118 = vld [vmem:[%s2097 + $0xa0] sm:$0xff]
        %v2119 = vld [vmem:[%s2097 + $0xa8] sm:$0xff]
        %v2120 = vld [vmem:[%s2097 + $0xb0] sm:$0xff]
        %v2121 = vld [vmem:[%s2097 + $0xb8] sm:$0xff]
        %v2124 = vrot.slane %v2095, 2
        %v2125 = vrot.slane %v2096, 2
        %v2151 = vunpack.c.l.b16 %v2098
        %v2152 = vunpack.c.h.b16 %v2098
        %v2153 = vunpack.c.l.b16 %v2099
        %v2154 = vunpack.c.h.b16 %v2099
        %v2155 = vunpack.c.l.b16 %v2100
        %v2156 = vunpack.c.h.b16 %v2100
        %v2157 = vunpack.c.l.b16 %v2101
        %v2158 = vunpack.c.h.b16 %v2101
        %v2159 = vunpack.c.l.b16 %v2102
        %v2160 = vunpack.c.h.b16 %v2102
        %v2161 = vunpack.c.l.b16 %v2103
        %v2162 = vunpack.c.h.b16 %v2103
        %v2163 = vunpack.c.l.b16 %v2104
        %v2164 = vunpack.c.h.b16 %v2104
        %v2165 = vunpack.c.l.b16 %v2105
        %v2166 = vunpack.c.h.b16 %v2105
        %v2167 = vunpack.c.l.b16 %v2106
        %v2168 = vunpack.c.h.b16 %v2106
        %v2169 = vunpack.c.l.b16 %v2107
        %v2170 = vunpack.c.h.b16 %v2107
        %v2171 = vunpack.c.l.b16 %v2108
        %v2172 = vunpack.c.h.b16 %v2108
        %v2173 = vunpack.c.l.b16 %v2109
        %v2174 = vunpack.c.h.b16 %v2109
        %v2175 = vunpack.c.l.b16 %v2110
        %v2176 = vunpack.c.h.b16 %v2110
        %v2177 = vunpack.c.l.b16 %v2111
        %v2178 = vunpack.c.h.b16 %v2111
        %v2179 = vunpack.c.l.b16 %v2112
        %v2180 = vunpack.c.h.b16 %v2112
        %v2181 = vunpack.c.l.b16 %v2113
        %v2182 = vunpack.c.h.b16 %v2113
        %v2183 = vunpack.c.l.b16 %v2114
        %v2184 = vunpack.c.h.b16 %v2114
        %v2185 = vunpack.c.l.b16 %v2115
        %v2186 = vunpack.c.h.b16 %v2115
        %v2187 = vunpack.c.l.b16 %v2116
        %v2188 = vunpack.c.h.b16 %v2116
        %v2189 = vunpack.c.l.b16 %v2117
        %v2190 = vunpack.c.h.b16 %v2117
        %v2191 = vunpack.c.l.b16 %v2118
        %v2192 = vunpack.c.h.b16 %v2118
        %v2193 = vunpack.c.l.b16 %v2119
        %v2194 = vunpack.c.h.b16 %v2119
        %v2195 = vunpack.c.l.b16 %v2120
        %v2196 = vunpack.c.h.b16 %v2120
        %v2197 = vunpack.c.l.b16 %v2121
        %v2198 = vunpack.c.h.b16 %v2121
        %v2199 = vpack.c.b16 %v2153, %v2151
        %v2200 = vpack.c.b16 %v2154, %v2152
        %v2201 = vpack.c.b16 %v2157, %v2155
        %v2202 = vpack.c.b16 %v2158, %v2156
        %v2203 = vpack.c.b16 %v2161, %v2159
        %v2204 = vpack.c.b16 %v2162, %v2160
        %v2205 = vpack.c.b16 %v2165, %v2163
        %v2206 = vpack.c.b16 %v2166, %v2164
        %v2207 = vpack.c.b16 %v2169, %v2167
        %v2208 = vpack.c.b16 %v2170, %v2168
        %v2209 = vpack.c.b16 %v2173, %v2171
        %v2210 = vpack.c.b16 %v2174, %v2172
        %v2211 = vpack.c.b16 %v2177, %v2175
        %v2212 = vpack.c.b16 %v2178, %v2176
        %v2213 = vpack.c.b16 %v2181, %v2179
        %v2214 = vpack.c.b16 %v2182, %v2180
        %v2215 = vpack.c.b16 %v2185, %v2183
        %v2216 = vpack.c.b16 %v2186, %v2184
        %v2217 = vpack.c.b16 %v2189, %v2187
        %v2218 = vpack.c.b16 %v2190, %v2188
        %v2219 = vpack.c.b16 %v2193, %v2191
        %v2220 = vpack.c.b16 %v2194, %v2192
        %v2221 = vpack.c.b16 %v2197, %v2195
        %v2222 = vpack.c.b16 %v2198, %v2196
        %v2248 = vsel %vm701, %v2125, 0
        %2250 = vmatpush.bf16.msra.mxu0 %v2213
        %2251 = vmatpush.bf16.msra.mxu0 %v2211
        %2252 = vmatpush.bf16.msra.mxu0 %v2209
        %2253 = vmatpush.bf16.msra.mxu0 %v2207
        %2254 = vmatpush.bf16.msra.mxu0 %v2205
        %2255 = vmatpush.bf16.msra.mxu0 %v2203
        %2256 = vmatpush.bf16.msra.mxu0 %v2201
        %2257 = vmatpush.bf16.msra.mxu0 %v2199
        %2258 = vmatmul.bf16.gmra.mxu0 %v2124
        %v2259 = vpop.f32.mrf.mxu0
        %v2260 = vadd.f32 0.0, %v2259
        %v2261 = vpop.f32.mrf.mxu0
        %2262 = vdwg.mxu0
        %2263 = vmatpush.bf16.msra.mxu0 0
        %2264 = vmatpush.bf16.msra.mxu0 0
        %2265 = vmatpush.bf16.msra.mxu0 0
        %2266 = vmatpush.bf16.msra.mxu0 0
        %2267 = vmatpush.bf16.msra.mxu0 %v2221
        %2268 = vmatpush.bf16.msra.mxu0 %v2219
        %2269 = vmatpush.bf16.msra.mxu0 %v2217
        %2270 = vmatpush.bf16.msra.mxu0 %v2215
        %2271 = vmatmul.bf16.gmra.mxu0 %v2248
        %v2272 = vpop.f32.mrf.mxu0
        %v2273 = vadd.f32 %v2260, %v2272
        %v2274 = vpop.f32.mrf.mxu0
        %2275 = vdwg.mxu0
        %2276 = vmatpush.bf16.msra.mxu0 %v2214
        %2277 = vmatpush.bf16.msra.mxu0 %v2212
        %2278 = vmatpush.bf16.msra.mxu0 %v2210
        %2279 = vmatpush.bf16.msra.mxu0 %v2208
        %2280 = vmatpush.bf16.msra.mxu0 %v2206
        %2281 = vmatpush.bf16.msra.mxu0 %v2204
        %2282 = vmatpush.bf16.msra.mxu0 %v2202
        %2283 = vmatpush.bf16.msra.mxu0 %v2200
        %2284 = vmatmul.bf16.gmra.mxu0 %v2124
        %v2285 = vpop.f32.mrf.mxu0
        %v2286 = vadd.f32 0.0, %v2285
        %v2287 = vpop.f32.mrf.mxu0
        %2288 = vdwg.mxu0
        %2289 = vmatpush.bf16.msra.mxu0 0
        %2290 = vmatpush.bf16.msra.mxu0 0
        %2291 = vmatpush.bf16.msra.mxu0 0
        %2292 = vmatpush.bf16.msra.mxu0 0
        %2293 = vmatpush.bf16.msra.mxu0 %v2222
        %2294 = vmatpush.bf16.msra.mxu0 %v2220
        %2295 = vmatpush.bf16.msra.mxu0 %v2218
        %2296 = vmatpush.bf16.msra.mxu0 %v2216
        %2297 = vmatmul.bf16.gmra.mxu0 %v2248
        %v2298 = vpop.f32.mrf.mxu0
        %v2299 = vadd.f32 %v2286, %v2298
        %v2300 = vpop.f32.mrf.mxu0
        %2301 = vdwg.mxu0
        %v2302 = vadd.f32 %v2089, %v2273
        %v2303 = vadd.f32 %v2090, %v2299
        %v2304 = vmax.f32 %v2302, 0.0
        %v2305 = vmax.f32 %v2303, 0.0
        %v2308 = vrot.slane %v2304, 7
        %v2309 = vrot.slane %v2305, 7
        %2312 = vst [vmem:[#allocation3] sm:$0xfe] %v2308
        %2313 = vst.msk [vmem:[#allocation3 + $0x8] sm:$0xfe] %vm547, %v2309
        %2314 = vst [vmem:[#allocation3 + $0x10] sm:$0x1] %v2308
        %2315 = vst.msk [vmem:[#allocation3 + $0x18] sm:$0x1] %vm550, %v2309
        %v2316 = vld [vmem:[%s8] sm:$0x3]
        %v2317 = vld [vmem:[#allocation3] sm:$0xff]
        %v2318 = vld [vmem:[#allocation3 + $0x8] sm:$0xff]
        %v2319 = vpack.c.bf16 %v2317, %v2317
        %v2320 = vpack.c.bf16 %v2318, %v2318
        %v2321 = vld [vmem:[#allocation9] sm:$0xff]
        %v2322 = vld [vmem:[#allocation9 + $0x8] sm:$0xff]
        %v2323 = vld [vmem:[#allocation9 + $0x10] sm:$0xff]
        %v2324 = vld [vmem:[#allocation9 + $0x18] sm:$0xff]
        %v2325 = vld [vmem:[#allocation9 + $0x20] sm:$0xff]
        %v2326 = vld [vmem:[#allocation9 + $0x28] sm:$0xff]
        %v2327 = vld [vmem:[#allocation9 + $0x30] sm:$0xff]
        %v2328 = vld [vmem:[#allocation9 + $0x38] sm:$0xff]
        %v2329 = vld [vmem:[#allocation9 + $0x40] sm:$0xff]
        %v2330 = vld [vmem:[#allocation9 + $0x48] sm:$0xff]
        %v2331 = vld [vmem:[#allocation9 + $0x50] sm:$0xff]
        %v2332 = vld [vmem:[#allocation9 + $0x58] sm:$0xff]
        %v2333 = vld [vmem:[#allocation9 + $0x60] sm:$0xff]
        %v2334 = vld [vmem:[#allocation9 + $0x68] sm:$0xff]
        %v2335 = vld [vmem:[#allocation9 + $0x70] sm:$0xff]
        %v2336 = vld [vmem:[#allocation9 + $0x78] sm:$0xff]
        %v2337 = vld [vmem:[#allocation9 + $0x80] sm:$0xff]
        %v2338 = vld [vmem:[#allocation9 + $0x88] sm:$0xff]
        %v2339 = vld [vmem:[#allocation9 + $0x90] sm:$0xff]
        %v2340 = vld [vmem:[#allocation9 + $0x98] sm:$0xff]
        %v2341 = vld [vmem:[#allocation9 + $0xa0] sm:$0xff]
        %v2342 = vld [vmem:[#allocation9 + $0xa8] sm:$0xff]
        %v2343 = vld [vmem:[#allocation9 + $0xb0] sm:$0xff]
        %v2344 = vld [vmem:[#allocation9 + $0xb8] sm:$0xff]
        %v2369 = vunpack.c.l.b16 %v2321
        %v2370 = vunpack.c.h.b16 %v2321
        %v2371 = vunpack.c.l.b16 %v2322
        %v2372 = vunpack.c.h.b16 %v2322
        %v2373 = vunpack.c.l.b16 %v2323
        %v2374 = vunpack.c.h.b16 %v2323
        %v2375 = vunpack.c.l.b16 %v2324
        %v2376 = vunpack.c.h.b16 %v2324
        %v2377 = vunpack.c.l.b16 %v2325
        %v2378 = vunpack.c.h.b16 %v2325
        %v2379 = vunpack.c.l.b16 %v2326
        %v2380 = vunpack.c.h.b16 %v2326
        %v2381 = vunpack.c.l.b16 %v2327
        %v2382 = vunpack.c.h.b16 %v2327
        %v2383 = vunpack.c.l.b16 %v2328
        %v2384 = vunpack.c.h.b16 %v2328
        %v2385 = vunpack.c.l.b16 %v2329
        %v2386 = vunpack.c.h.b16 %v2329
        %v2387 = vunpack.c.l.b16 %v2330
        %v2388 = vunpack.c.h.b16 %v2330
        %v2389 = vunpack.c.l.b16 %v2331
        %v2390 = vunpack.c.h.b16 %v2331
        %v2391 = vunpack.c.l.b16 %v2332
        %v2392 = vunpack.c.h.b16 %v2332
        %v2393 = vunpack.c.l.b16 %v2333
        %v2394 = vunpack.c.h.b16 %v2333
        %v2395 = vunpack.c.l.b16 %v2334
        %v2396 = vunpack.c.h.b16 %v2334
        %v2397 = vunpack.c.l.b16 %v2335
        %v2398 = vunpack.c.h.b16 %v2335
        %v2399 = vunpack.c.l.b16 %v2336
        %v2400 = vunpack.c.h.b16 %v2336
        %v2401 = vunpack.c.l.b16 %v2337
        %v2402 = vunpack.c.h.b16 %v2337
        %v2403 = vunpack.c.l.b16 %v2338
        %v2404 = vunpack.c.h.b16 %v2338
        %v2405 = vunpack.c.l.b16 %v2339
        %v2406 = vunpack.c.h.b16 %v2339
        %v2407 = vunpack.c.l.b16 %v2340
        %v2408 = vunpack.c.h.b16 %v2340
        %v2409 = vunpack.c.l.b16 %v2341
        %v2410 = vunpack.c.h.b16 %v2341
        %v2411 = vunpack.c.l.b16 %v2342
        %v2412 = vunpack.c.h.b16 %v2342
        %v2413 = vunpack.c.l.b16 %v2343
        %v2414 = vunpack.c.h.b16 %v2343
        %v2415 = vunpack.c.l.b16 %v2344
        %v2416 = vunpack.c.h.b16 %v2344
        %v2417 = vpack.c.b16 %v2371, %v2369
        %v2418 = vpack.c.b16 %v2372, %v2370
        %v2419 = vpack.c.b16 %v2375, %v2373
        %v2420 = vpack.c.b16 %v2376, %v2374
        %v2421 = vpack.c.b16 %v2379, %v2377
        %v2422 = vpack.c.b16 %v2380, %v2378
        %v2423 = vpack.c.b16 %v2383, %v2381
        %v2424 = vpack.c.b16 %v2384, %v2382
        %v2425 = vpack.c.b16 %v2387, %v2385
        %v2426 = vpack.c.b16 %v2388, %v2386
        %v2427 = vpack.c.b16 %v2391, %v2389
        %v2428 = vpack.c.b16 %v2392, %v2390
        %v2429 = vpack.c.b16 %v2395, %v2393
        %v2430 = vpack.c.b16 %v2396, %v2394
        %v2431 = vpack.c.b16 %v2399, %v2397
        %v2432 = vpack.c.b16 %v2400, %v2398
        %v2433 = vpack.c.b16 %v2403, %v2401
        %v2434 = vpack.c.b16 %v2404, %v2402
        %v2435 = vpack.c.b16 %v2407, %v2405
        %v2436 = vpack.c.b16 %v2408, %v2406
        %v2437 = vpack.c.b16 %v2411, %v2409
        %v2438 = vpack.c.b16 %v2412, %v2410
        %v2439 = vpack.c.b16 %v2415, %v2413
        %v2440 = vpack.c.b16 %v2416, %v2414
        %v2466 = vsel %vm701, %v2320, 0
        %2468 = vmatpush.bf16.msra.mxu0 %v2431
        %2469 = vmatpush.bf16.msra.mxu0 %v2429
        %2470 = vmatpush.bf16.msra.mxu0 %v2427
        %2471 = vmatpush.bf16.msra.mxu0 %v2425
        %2472 = vmatpush.bf16.msra.mxu0 %v2423
        %2473 = vmatpush.bf16.msra.mxu0 %v2421
        %2474 = vmatpush.bf16.msra.mxu0 %v2419
        %2475 = vmatpush.bf16.msra.mxu0 %v2417
        %2476 = vmatmul.bf16.gmra.mxu0 %v2319
        %v2477 = vpop.f32.mrf.mxu0
        %v2478 = vadd.f32 0.0, %v2477
        %v2479 = vpop.f32.mrf.mxu0
        %2480 = vdwg.mxu0
        %2481 = vmatpush.bf16.msra.mxu0 0
        %2482 = vmatpush.bf16.msra.mxu0 0
        %2483 = vmatpush.bf16.msra.mxu0 0
        %2484 = vmatpush.bf16.msra.mxu0 0
        %2485 = vmatpush.bf16.msra.mxu0 %v2439
        %2486 = vmatpush.bf16.msra.mxu0 %v2437
        %2487 = vmatpush.bf16.msra.mxu0 %v2435
        %2488 = vmatpush.bf16.msra.mxu0 %v2433
        %2489 = vmatmul.bf16.gmra.mxu0 %v2466
        %v2490 = vpop.f32.mrf.mxu0
        %v2491 = vadd.f32 %v2478, %v2490
        %v2492 = vpop.f32.mrf.mxu0
        %2493 = vdwg.mxu0
        %2494 = vmatpush.bf16.msra.mxu0 %v2432
        %2495 = vmatpush.bf16.msra.mxu0 %v2430
        %2496 = vmatpush.bf16.msra.mxu0 %v2428
        %2497 = vmatpush.bf16.msra.mxu0 %v2426
        %2498 = vmatpush.bf16.msra.mxu0 %v2424
        %2499 = vmatpush.bf16.msra.mxu0 %v2422
        %2500 = vmatpush.bf16.msra.mxu0 %v2420
        %2501 = vmatpush.bf16.msra.mxu0 %v2418
        %2502 = vmatmul.bf16.gmra.mxu0 %v2319
        %v2503 = vpop.f32.mrf.mxu0
        %v2504 = vadd.f32 0.0, %v2503
        %v2505 = vpop.f32.mrf.mxu0
        %2506 = vdwg.mxu0
        %2507 = vmatpush.bf16.msra.mxu0 0
        %2508 = vmatpush.bf16.msra.mxu0 0
        %2509 = vmatpush.bf16.msra.mxu0 0
        %2510 = vmatpush.bf16.msra.mxu0 0
        %2511 = vmatpush.bf16.msra.mxu0 %v2440
        %2512 = vmatpush.bf16.msra.mxu0 %v2438
        %2513 = vmatpush.bf16.msra.mxu0 %v2436
        %2514 = vmatpush.bf16.msra.mxu0 %v2434
        %2515 = vmatmul.bf16.gmra.mxu0 %v2466
        %v2516 = vpop.f32.mrf.mxu0
        %v2517 = vadd.f32 %v2504, %v2516
        %v2518 = vpop.f32.mrf.mxu0
        %2519 = vdwg.mxu0
        %v2521 = vperm.slane %v2316, 0
        %v2522 = vperm.slane %v2316, 1
        %v2525 = vadd.f32 %v2521, %v2491
        %v2526 = vadd.f32 %v2522, %v2517
        %v2527 = vld [vmem:[#allocation3] sm:$0xfe]
        %v2528 = vld [vmem:[#allocation3 + $0x8] sm:$0xfe]
        %v2529 = vld [vmem:[#allocation3 + $0x10] sm:$0x1]
        %v2530 = vld [vmem:[#allocation3 + $0x18] sm:$0x1]
        %v2531 = vpack.c.bf16 %v2529, %v2527
        %v2532 = vpack.c.bf16 %v2530, %v2528
        %s2533 = scalar_lea.vmem [#allocation9], 192
        %v2534 = vld [vmem:[%s2533] sm:$0xff]
        %v2535 = vld [vmem:[%s2533 + $0x8] sm:$0xff]
        %v2536 = vld [vmem:[%s2533 + $0x10] sm:$0xff]
        %v2537 = vld [vmem:[%s2533 + $0x18] sm:$0xff]
        %v2538 = vld [vmem:[%s2533 + $0x20] sm:$0xff]
        %v2539 = vld [vmem:[%s2533 + $0x28] sm:$0xff]
        %v2540 = vld [vmem:[%s2533 + $0x30] sm:$0xff]
        %v2541 = vld [vmem:[%s2533 + $0x38] sm:$0xff]
        %v2542 = vld [vmem:[%s2533 + $0x40] sm:$0xff]
        %v2543 = vld [vmem:[%s2533 + $0x48] sm:$0xff]
        %v2544 = vld [vmem:[%s2533 + $0x50] sm:$0xff]
        %v2545 = vld [vmem:[%s2533 + $0x58] sm:$0xff]
        %v2546 = vld [vmem:[%s2533 + $0x60] sm:$0xff]
        %v2547 = vld [vmem:[%s2533 + $0x68] sm:$0xff]
        %v2548 = vld [vmem:[%s2533 + $0x70] sm:$0xff]
        %v2549 = vld [vmem:[%s2533 + $0x78] sm:$0xff]
        %v2550 = vld [vmem:[%s2533 + $0x80] sm:$0xff]
        %v2551 = vld [vmem:[%s2533 + $0x88] sm:$0xff]
        %v2552 = vld [vmem:[%s2533 + $0x90] sm:$0xff]
        %v2553 = vld [vmem:[%s2533 + $0x98] sm:$0xff]
        %v2554 = vld [vmem:[%s2533 + $0xa0] sm:$0xff]
        %v2555 = vld [vmem:[%s2533 + $0xa8] sm:$0xff]
        %v2556 = vld [vmem:[%s2533 + $0xb0] sm:$0xff]
        %v2557 = vld [vmem:[%s2533 + $0xb8] sm:$0xff]
        %v2559 = vshrl.u32 %v2531, 16
        %v2561 = vshll.u32 %v2531, 16
        %v2563 = vrot.slane %v2561, 1
        %v2564 = vor.u32 %v2559, %v2563
        %v2566 = vshrl.u32 %v2532, 16
        %v2568 = vshll.u32 %v2532, 16
        %v2570 = vrot.slane %v2568, 1
        %v2571 = vor.u32 %v2566, %v2570
        %v2597 = vunpack.c.l.b16 %v2534
        %v2598 = vunpack.c.h.b16 %v2534
        %v2599 = vunpack.c.l.b16 %v2535
        %v2600 = vunpack.c.h.b16 %v2535
        %v2601 = vunpack.c.l.b16 %v2536
        %v2602 = vunpack.c.h.b16 %v2536
        %v2603 = vunpack.c.l.b16 %v2537
        %v2604 = vunpack.c.h.b16 %v2537
        %v2605 = vunpack.c.l.b16 %v2538
        %v2606 = vunpack.c.h.b16 %v2538
        %v2607 = vunpack.c.l.b16 %v2539
        %v2608 = vunpack.c.h.b16 %v2539
        %v2609 = vunpack.c.l.b16 %v2540
        %v2610 = vunpack.c.h.b16 %v2540
        %v2611 = vunpack.c.l.b16 %v2541
        %v2612 = vunpack.c.h.b16 %v2541
        %v2613 = vunpack.c.l.b16 %v2542
        %v2614 = vunpack.c.h.b16 %v2542
        %v2615 = vunpack.c.l.b16 %v2543
        %v2616 = vunpack.c.h.b16 %v2543
        %v2617 = vunpack.c.l.b16 %v2544
        %v2618 = vunpack.c.h.b16 %v2544
        %v2619 = vunpack.c.l.b16 %v2545
        %v2620 = vunpack.c.h.b16 %v2545
        %v2621 = vunpack.c.l.b16 %v2546
        %v2622 = vunpack.c.h.b16 %v2546
        %v2623 = vunpack.c.l.b16 %v2547
        %v2624 = vunpack.c.h.b16 %v2547
        %v2625 = vunpack.c.l.b16 %v2548
        %v2626 = vunpack.c.h.b16 %v2548
        %v2627 = vunpack.c.l.b16 %v2549
        %v2628 = vunpack.c.h.b16 %v2549
        %v2629 = vunpack.c.l.b16 %v2550
        %v2630 = vunpack.c.h.b16 %v2550
        %v2631 = vunpack.c.l.b16 %v2551
        %v2632 = vunpack.c.h.b16 %v2551
        %v2633 = vunpack.c.l.b16 %v2552
        %v2634 = vunpack.c.h.b16 %v2552
        %v2635 = vunpack.c.l.b16 %v2553
        %v2636 = vunpack.c.h.b16 %v2553
        %v2637 = vunpack.c.l.b16 %v2554
        %v2638 = vunpack.c.h.b16 %v2554
        %v2639 = vunpack.c.l.b16 %v2555
        %v2640 = vunpack.c.h.b16 %v2555
        %v2641 = vunpack.c.l.b16 %v2556
        %v2642 = vunpack.c.h.b16 %v2556
        %v2643 = vunpack.c.l.b16 %v2557
        %v2644 = vunpack.c.h.b16 %v2557
        %v2645 = vpack.c.b16 %v2599, %v2597
        %v2646 = vpack.c.b16 %v2600, %v2598
        %v2647 = vpack.c.b16 %v2603, %v2601
        %v2648 = vpack.c.b16 %v2604, %v2602
        %v2649 = vpack.c.b16 %v2607, %v2605
        %v2650 = vpack.c.b16 %v2608, %v2606
        %v2651 = vpack.c.b16 %v2611, %v2609
        %v2652 = vpack.c.b16 %v2612, %v2610
        %v2653 = vpack.c.b16 %v2615, %v2613
        %v2654 = vpack.c.b16 %v2616, %v2614
        %v2655 = vpack.c.b16 %v2619, %v2617
        %v2656 = vpack.c.b16 %v2620, %v2618
        %v2657 = vpack.c.b16 %v2623, %v2621
        %v2658 = vpack.c.b16 %v2624, %v2622
        %v2659 = vpack.c.b16 %v2627, %v2625
        %v2660 = vpack.c.b16 %v2628, %v2626
        %v2661 = vpack.c.b16 %v2631, %v2629
        %v2662 = vpack.c.b16 %v2632, %v2630
        %v2663 = vpack.c.b16 %v2635, %v2633
        %v2664 = vpack.c.b16 %v2636, %v2634
        %v2665 = vpack.c.b16 %v2639, %v2637
        %v2666 = vpack.c.b16 %v2640, %v2638
        %v2667 = vpack.c.b16 %v2643, %v2641
        %v2668 = vpack.c.b16 %v2644, %v2642
        %v2694 = vsel %vm701, %v2571, 0
        %2696 = vmatpush.bf16.msra.mxu0 %v2659
        %2697 = vmatpush.bf16.msra.mxu0 %v2657
        %2698 = vmatpush.bf16.msra.mxu0 %v2655
        %2699 = vmatpush.bf16.msra.mxu0 %v2653
        %2700 = vmatpush.bf16.msra.mxu0 %v2651
        %2701 = vmatpush.bf16.msra.mxu0 %v2649
        %2702 = vmatpush.bf16.msra.mxu0 %v2647
        %2703 = vmatpush.bf16.msra.mxu0 %v2645
        %2704 = vmatmul.bf16.gmra.mxu0 %v2564
        %v2705 = vpop.f32.mrf.mxu0
        %v2706 = vadd.f32 0.0, %v2705
        %v2707 = vpop.f32.mrf.mxu0
        %2708 = vdwg.mxu0
        %2709 = vmatpush.bf16.msra.mxu0 0
        %2710 = vmatpush.bf16.msra.mxu0 0
        %2711 = vmatpush.bf16.msra.mxu0 0
        %2712 = vmatpush.bf16.msra.mxu0 0
        %2713 = vmatpush.bf16.msra.mxu0 %v2667
        %2714 = vmatpush.bf16.msra.mxu0 %v2665
        %2715 = vmatpush.bf16.msra.mxu0 %v2663
        %2716 = vmatpush.bf16.msra.mxu0 %v2661
        %2717 = vmatmul.bf16.gmra.mxu0 %v2694
        %v2718 = vpop.f32.mrf.mxu0
        %v2719 = vadd.f32 %v2706, %v2718
        %v2720 = vpop.f32.mrf.mxu0
        %2721 = vdwg.mxu0
        %2722 = vmatpush.bf16.msra.mxu0 %v2660
        %2723 = vmatpush.bf16.msra.mxu0 %v2658
        %2724 = vmatpush.bf16.msra.mxu0 %v2656
        %2725 = vmatpush.bf16.msra.mxu0 %v2654
        %2726 = vmatpush.bf16.msra.mxu0 %v2652
        %2727 = vmatpush.bf16.msra.mxu0 %v2650
        %2728 = vmatpush.bf16.msra.mxu0 %v2648
        %2729 = vmatpush.bf16.msra.mxu0 %v2646
        %2730 = vmatmul.bf16.gmra.mxu0 %v2564
        %v2731 = vpop.f32.mrf.mxu0
        %v2732 = vadd.f32 0.0, %v2731
        %v2733 = vpop.f32.mrf.mxu0
        %2734 = vdwg.mxu0
        %2735 = vmatpush.bf16.msra.mxu0 0
        %2736 = vmatpush.bf16.msra.mxu0 0
        %2737 = vmatpush.bf16.msra.mxu0 0
        %2738 = vmatpush.bf16.msra.mxu0 0
        %2739 = vmatpush.bf16.msra.mxu0 %v2668
        %2740 = vmatpush.bf16.msra.mxu0 %v2666
        %2741 = vmatpush.bf16.msra.mxu0 %v2664
        %2742 = vmatpush.bf16.msra.mxu0 %v2662
        %2743 = vmatmul.bf16.gmra.mxu0 %v2694
        %v2744 = vpop.f32.mrf.mxu0
        %v2745 = vadd.f32 %v2732, %v2744
        %v2746 = vpop.f32.mrf.mxu0
        %2747 = vdwg.mxu0
        %v2748 = vadd.f32 %v2525, %v2719
        %v2749 = vadd.f32 %v2526, %v2745
        %v2750 = vld [vmem:[#allocation3] sm:$0xfc]
        %v2751 = vld [vmem:[#allocation3 + $0x8] sm:$0xfc]
        %v2752 = vld [vmem:[#allocation3 + $0x10] sm:$0x3]
        %v2753 = vld [vmem:[#allocation3 + $0x18] sm:$0x3]
        %v2754 = vpack.c.bf16 %v2752, %v2750
        %v2755 = vpack.c.bf16 %v2753, %v2751
        %s2756 = scalar_lea.vmem [#allocation9], 384
        %v2757 = vld [vmem:[%s2756] sm:$0xff]
        %v2758 = vld [vmem:[%s2756 + $0x8] sm:$0xff]
        %v2759 = vld [vmem:[%s2756 + $0x10] sm:$0xff]
        %v2760 = vld [vmem:[%s2756 + $0x18] sm:$0xff]
        %v2761 = vld [vmem:[%s2756 + $0x20] sm:$0xff]
        %v2762 = vld [vmem:[%s2756 + $0x28] sm:$0xff]
        %v2763 = vld [vmem:[%s2756 + $0x30] sm:$0xff]
        %v2764 = vld [vmem:[%s2756 + $0x38] sm:$0xff]
        %v2765 = vld [vmem:[%s2756 + $0x40] sm:$0xff]
        %v2766 = vld [vmem:[%s2756 + $0x48] sm:$0xff]
        %v2767 = vld [vmem:[%s2756 + $0x50] sm:$0xff]
        %v2768 = vld [vmem:[%s2756 + $0x58] sm:$0xff]
        %v2769 = vld [vmem:[%s2756 + $0x60] sm:$0xff]
        %v2770 = vld [vmem:[%s2756 + $0x68] sm:$0xff]
        %v2771 = vld [vmem:[%s2756 + $0x70] sm:$0xff]
        %v2772 = vld [vmem:[%s2756 + $0x78] sm:$0xff]
        %v2773 = vld [vmem:[%s2756 + $0x80] sm:$0xff]
        %v2774 = vld [vmem:[%s2756 + $0x88] sm:$0xff]
        %v2775 = vld [vmem:[%s2756 + $0x90] sm:$0xff]
        %v2776 = vld [vmem:[%s2756 + $0x98] sm:$0xff]
        %v2777 = vld [vmem:[%s2756 + $0xa0] sm:$0xff]
        %v2778 = vld [vmem:[%s2756 + $0xa8] sm:$0xff]
        %v2779 = vld [vmem:[%s2756 + $0xb0] sm:$0xff]
        %v2780 = vld [vmem:[%s2756 + $0xb8] sm:$0xff]
        %v2783 = vrot.slane %v2754, 1
        %v2784 = vrot.slane %v2755, 1
        %v2810 = vunpack.c.l.b16 %v2757
        %v2811 = vunpack.c.h.b16 %v2757
        %v2812 = vunpack.c.l.b16 %v2758
        %v2813 = vunpack.c.h.b16 %v2758
        %v2814 = vunpack.c.l.b16 %v2759
        %v2815 = vunpack.c.h.b16 %v2759
        %v2816 = vunpack.c.l.b16 %v2760
        %v2817 = vunpack.c.h.b16 %v2760
        %v2818 = vunpack.c.l.b16 %v2761
        %v2819 = vunpack.c.h.b16 %v2761
        %v2820 = vunpack.c.l.b16 %v2762
        %v2821 = vunpack.c.h.b16 %v2762
        %v2822 = vunpack.c.l.b16 %v2763
        %v2823 = vunpack.c.h.b16 %v2763
        %v2824 = vunpack.c.l.b16 %v2764
        %v2825 = vunpack.c.h.b16 %v2764
        %v2826 = vunpack.c.l.b16 %v2765
        %v2827 = vunpack.c.h.b16 %v2765
        %v2828 = vunpack.c.l.b16 %v2766
        %v2829 = vunpack.c.h.b16 %v2766
        %v2830 = vunpack.c.l.b16 %v2767
        %v2831 = vunpack.c.h.b16 %v2767
        %v2832 = vunpack.c.l.b16 %v2768
        %v2833 = vunpack.c.h.b16 %v2768
        %v2834 = vunpack.c.l.b16 %v2769
        %v2835 = vunpack.c.h.b16 %v2769
        %v2836 = vunpack.c.l.b16 %v2770
        %v2837 = vunpack.c.h.b16 %v2770
        %v2838 = vunpack.c.l.b16 %v2771
        %v2839 = vunpack.c.h.b16 %v2771
        %v2840 = vunpack.c.l.b16 %v2772
        %v2841 = vunpack.c.h.b16 %v2772
        %v2842 = vunpack.c.l.b16 %v2773
        %v2843 = vunpack.c.h.b16 %v2773
        %v2844 = vunpack.c.l.b16 %v2774
        %v2845 = vunpack.c.h.b16 %v2774
        %v2846 = vunpack.c.l.b16 %v2775
        %v2847 = vunpack.c.h.b16 %v2775
        %v2848 = vunpack.c.l.b16 %v2776
        %v2849 = vunpack.c.h.b16 %v2776
        %v2850 = vunpack.c.l.b16 %v2777
        %v2851 = vunpack.c.h.b16 %v2777
        %v2852 = vunpack.c.l.b16 %v2778
        %v2853 = vunpack.c.h.b16 %v2778
        %v2854 = vunpack.c.l.b16 %v2779
        %v2855 = vunpack.c.h.b16 %v2779
        %v2856 = vunpack.c.l.b16 %v2780
        %v2857 = vunpack.c.h.b16 %v2780
        %v2858 = vpack.c.b16 %v2812, %v2810
        %v2859 = vpack.c.b16 %v2813, %v2811
        %v2860 = vpack.c.b16 %v2816, %v2814
        %v2861 = vpack.c.b16 %v2817, %v2815
        %v2862 = vpack.c.b16 %v2820, %v2818
        %v2863 = vpack.c.b16 %v2821, %v2819
        %v2864 = vpack.c.b16 %v2824, %v2822
        %v2865 = vpack.c.b16 %v2825, %v2823
        %v2866 = vpack.c.b16 %v2828, %v2826
        %v2867 = vpack.c.b16 %v2829, %v2827
        %v2868 = vpack.c.b16 %v2832, %v2830
        %v2869 = vpack.c.b16 %v2833, %v2831
        %v2870 = vpack.c.b16 %v2836, %v2834
        %v2871 = vpack.c.b16 %v2837, %v2835
        %v2872 = vpack.c.b16 %v2840, %v2838
        %v2873 = vpack.c.b16 %v2841, %v2839
        %v2874 = vpack.c.b16 %v2844, %v2842
        %v2875 = vpack.c.b16 %v2845, %v2843
        %v2876 = vpack.c.b16 %v2848, %v2846
        %v2877 = vpack.c.b16 %v2849, %v2847
        %v2878 = vpack.c.b16 %v2852, %v2850
        %v2879 = vpack.c.b16 %v2853, %v2851
        %v2880 = vpack.c.b16 %v2856, %v2854
        %v2881 = vpack.c.b16 %v2857, %v2855
        %v2907 = vsel %vm701, %v2784, 0
        %2909 = vmatpush.bf16.msra.mxu0 %v2872
        %2910 = vmatpush.bf16.msra.mxu0 %v2870
        %2911 = vmatpush.bf16.msra.mxu0 %v2868
        %2912 = vmatpush.bf16.msra.mxu0 %v2866
        %2913 = vmatpush.bf16.msra.mxu0 %v2864
        %2914 = vmatpush.bf16.msra.mxu0 %v2862
        %2915 = vmatpush.bf16.msra.mxu0 %v2860
        %2916 = vmatpush.bf16.msra.mxu0 %v2858
        %2917 = vmatmul.bf16.gmra.mxu0 %v2783
        %v2918 = vpop.f32.mrf.mxu0
        %v2919 = vadd.f32 0.0, %v2918
        %v2920 = vpop.f32.mrf.mxu0
        %2921 = vdwg.mxu0
        %2922 = vmatpush.bf16.msra.mxu0 0
        %2923 = vmatpush.bf16.msra.mxu0 0
        %2924 = vmatpush.bf16.msra.mxu0 0
        %2925 = vmatpush.bf16.msra.mxu0 0
        %2926 = vmatpush.bf16.msra.mxu0 %v2880
        %2927 = vmatpush.bf16.msra.mxu0 %v2878
        %2928 = vmatpush.bf16.msra.mxu0 %v2876
        %2929 = vmatpush.bf16.msra.mxu0 %v2874
        %2930 = vmatmul.bf16.gmra.mxu0 %v2907
        %v2931 = vpop.f32.mrf.mxu0
        %v2932 = vadd.f32 %v2919, %v2931
        %v2933 = vpop.f32.mrf.mxu0
        %2934 = vdwg.mxu0
        %2935 = vmatpush.bf16.msra.mxu0 %v2873
        %2936 = vmatpush.bf16.msra.mxu0 %v2871
        %2937 = vmatpush.bf16.msra.mxu0 %v2869
        %2938 = vmatpush.bf16.msra.mxu0 %v2867
        %2939 = vmatpush.bf16.msra.mxu0 %v2865
        %2940 = vmatpush.bf16.msra.mxu0 %v2863
        %2941 = vmatpush.bf16.msra.mxu0 %v2861
        %2942 = vmatpush.bf16.msra.mxu0 %v2859
        %2943 = vmatmul.bf16.gmra.mxu0 %v2783
        %v2944 = vpop.f32.mrf.mxu0
        %v2945 = vadd.f32 0.0, %v2944
        %v2946 = vpop.f32.mrf.mxu0
        %2947 = vdwg.mxu0
        %2948 = vmatpush.bf16.msra.mxu0 0
        %2949 = vmatpush.bf16.msra.mxu0 0
        %2950 = vmatpush.bf16.msra.mxu0 0
        %2951 = vmatpush.bf16.msra.mxu0 0
        %2952 = vmatpush.bf16.msra.mxu0 %v2881
        %2953 = vmatpush.bf16.msra.mxu0 %v2879
        %2954 = vmatpush.bf16.msra.mxu0 %v2877
        %2955 = vmatpush.bf16.msra.mxu0 %v2875
        %2956 = vmatmul.bf16.gmra.mxu0 %v2907
        %v2957 = vpop.f32.mrf.mxu0
        %v2958 = vadd.f32 %v2945, %v2957
        %v2959 = vpop.f32.mrf.mxu0
        %2960 = vdwg.mxu0
        %v2961 = vadd.f32 %v2748, %v2932
        %v2962 = vadd.f32 %v2749, %v2958
        %v2963 = vmax.f32 %v2961, 0.0
        %v2964 = vmax.f32 %v2962, 0.0
        %v2965 = vld [vmem:[%s9] sm:$0xff]
        %v2966 = vld [vmem:[%s9 + $0x8] sm:$0xff]
        %v2967 = vld [vmem:[%s9 + $0x10] sm:$0xff]
        %v2968 = vld [vmem:[%s9 + $0x18] sm:$0xff]
        %v2969 = vld [vmem:[%s9 + $0x20] sm:$0xff]
        %v2970 = vld [vmem:[%s9 + $0x28] sm:$0xff]
        %v2971 = vld [vmem:[%s9 + $0x30] sm:$0xff]
        %v2972 = vld [vmem:[%s9 + $0x38] sm:$0xff]
        %v2973 = vld [vmem:[%s9 + $0x40] sm:$0xff]
        %v2974 = vld [vmem:[%s9 + $0x48] sm:$0xff]
        %v2975 = vld [vmem:[%s9 + $0x50] sm:$0xff]
        %v2976 = vld [vmem:[%s9 + $0x58] sm:$0xff]
        %v2977 = vld [vmem:[%s9 + $0x60] sm:$0xff]
        %v2978 = vld [vmem:[%s9 + $0x68] sm:$0xff]
        %v2979 = vld [vmem:[%s9 + $0x70] sm:$0xff]
        %v2980 = vld [vmem:[%s9 + $0x78] sm:$0xff]
        %v2981 = vld [vmem:[%s9 + $0x80] sm:$0xff]
        %v2982 = vld [vmem:[%s9 + $0x88] sm:$0xff]
        %v2983 = vld [vmem:[%s9 + $0x90] sm:$0xff]
        %v2984 = vld [vmem:[%s9 + $0x98] sm:$0xff]
        %v2985 = vld [vmem:[%s9 + $0xa0] sm:$0xff]
        %v2986 = vld [vmem:[%s9 + $0xa8] sm:$0xff]
        %v2987 = vld [vmem:[%s9 + $0xb0] sm:$0xff]
        %v2988 = vld [vmem:[%s9 + $0xb8] sm:$0xff]
        %v2989 = vld [vmem:[%s10] sm:$0x1]
        %v2991 = vperm.slane %v2989, 0
        %v2994 = vsel %vm701, %v2964, 0
        %2996 = vmatpush.msra.mxu0 %v2980
        %2997 = vmatpush.msra.mxu0 %v2979
        %2998 = vmatpush.msra.mxu0 %v2978
        %2999 = vmatpush.msra.mxu0 %v2977
        %3000 = vmatpush.msra.mxu0 %v2976
        %3001 = vmatpush.msra.mxu0 %v2975
        %3002 = vmatpush.msra.mxu0 %v2974
        %3003 = vmatpush.msra.mxu0 %v2973
        %3004 = vmatpush.msra.mxu0 %v2972
        %3005 = vmatpush.msra.mxu0 %v2971
        %3006 = vmatpush.msra.mxu0 %v2970
        %3007 = vmatpush.msra.mxu0 %v2969
        %3008 = vmatpush.msra.mxu0 %v2968
        %3009 = vmatpush.msra.mxu0 %v2967
        %3010 = vmatpush.msra.mxu0 %v2966
        %3011 = vmatpush.msra.mxu0 %v2965
        %3012 = vmatmul.f32.gmra.mxu0 %v2963
        %v3013 = vpop.f32.mrf.mxu0
        %v3014 = vadd.f32 %v2991, %v3013
        %3015 = vdwg.mxu0
        %3016 = vmatpush.msra.mxu0 0.0
        %3017 = vmatpush.msra.mxu0 0.0
        %3018 = vmatpush.msra.mxu0 0.0
        %3019 = vmatpush.msra.mxu0 0.0
        %3020 = vmatpush.msra.mxu0 0.0
        %3021 = vmatpush.msra.mxu0 0.0
        %3022 = vmatpush.msra.mxu0 0.0
        %3023 = vmatpush.msra.mxu0 0.0
        %3024 = vmatpush.msra.mxu0 %v2988
        %3025 = vmatpush.msra.mxu0 %v2987
        %3026 = vmatpush.msra.mxu0 %v2986
        %3027 = vmatpush.msra.mxu0 %v2985
        %3028 = vmatpush.msra.mxu0 %v2984
        %3029 = vmatpush.msra.mxu0 %v2983
        %3030 = vmatpush.msra.mxu0 %v2982
        %3031 = vmatpush.msra.mxu0 %v2981
        %3032 = vmatmul.f32.gmra.mxu0 %v2994
        %v3033 = vpop.f32.mrf.mxu0
        %v3034 = vadd.f32 %v3014, %v3033
        %3035 = vdwg.mxu0
        %vm3036 = vcmask 785408
        %3037 = vst.msk [vmem:[%s451] sm:$0xff] %vm3036, %v3034
        %p3038 = scmp.lt.s32.totalorder %s25, 1
        %s3039 = scalar_select %p3038, %s25, 1
        %s3040 = smul.addr %s3039, 8
        %s3041 = scalar_lea.vmem %s11, %s3040
        // Predicated region
        $region81: #{cnngru_forward.2} parent=63 // pred_check
          %p3042 = pneg %p279
        $region82: #{cnngru_forward.2} parent=63 // pred_check_branch
          %3044 = sbr.rel (%p3042) target = $region84
        $region83: #{cnngru_forward.2} parent=63 // pred_region
          _
        $region84: #{cnngru_forward.2} parent=63 // pred_fallthru
          _
      $region64: #{cnngru_forward.2} parent=5 // pred_fallthru
        _
      %p3045 = scmp.le.s32.totalorder 2, %s20
      // Predicated region
      $region85: #{cnngru_forward.2} parent=5 // pred_check
        %p3046 = pneg %p3045
      $region86: #{cnngru_forward.2} parent=5 // pred_check_branch
        %3048 = sbr.rel (%p3046) target = $region88
      $region87: #{cnngru_forward.2} parent=5 // pred_region
        %s3049 = ssub.s32 %s20, 2
        // Predicated region
        $region89: #{cnngru_forward.2} parent=87 // pred_check
          %p3050 = pneg %p285
        $region90: #{cnngru_forward.2} parent=87 // pred_check_branch
          %3052 = sbr.rel (%p3050) target = $region92
        $region91: #{cnngru_forward.2} parent=87 // pred_region
          %p3053 = scmp.lt.s32.totalorder %s26, 1
          %s3054 = scalar_select %p3053, %s26, 1
          %s3055 = smul.addr %s3054, 8
          %s3056 = scalar_lea.vmem %s11, %s3055
        $region92: #{cnngru_forward.2} parent=87 // pred_fallthru
          _
      $region88: #{cnngru_forward.2} parent=5 // pred_fallthru
        _
    $region6: #{cnngru_forward.2} parent=1 // loop_footer
      %s24 = sadd.s32 1, %s20
    $region7: #{cnngru_forward.2} parent=1 // loop_footer_branch
      %19 = sbr.rel target = $region3
    $region8: #{cnngru_forward.2} parent=1 // loop_exit
      _
    %3057 = vsyncpa [#allocation5], 1
    %s3058 = scalar_lea.sflag [#allocation5], 1
    %3059 = vsyncpa %s3058, 1
    %3060 = vsyncpa [#allocation7], 1
    %3061 = vsyncpa [#allocation10], 1

</llo_original>
